<compile_context>
chip_gen: v7x
topology: tpu7x:2x2x1
jax: 0.10.0
libtpu: 0.0.40
codegen_flags: <defaults>
</compile_context>

<pallas_src>
import functools

import jax
import jax.numpy as jnp
from jax import lax
from jax.experimental import pallas as pl
from jax.experimental.pallas import tpu as pltpu

_BN_EPS = 1e-5


def _rup(x, m):
    return (x + m - 1) // m * m


# ---------------------------------------------------------------------------
# Fused bottleneck kernel (one grid step == one image)
# ---------------------------------------------------------------------------
def _make_bottleneck_kernel(H, W, Cin, Cmid, dilation, slop):
    M = H * W
    d = dilation
    base = d * W + slop  # flat row offset of mid pixel (0, 0) inside the scratch

    def kernel(x_ref, w1_ref, b1_ref, w2_ref, b2_ref, w3_ref, b3_ref,
               o_ref, mid_ref):
        # ---------- conv1: 1x1 + folded-BN + ReLU (full K in one MXU dot) ----
        x2 = x_ref[...]                                          # (M, Cin) bf16
        h1 = jnp.dot(x2, w1_ref[...], preferred_element_type=jnp.float32)
        h1 = jnp.maximum(h1 + b1_ref[...], 0.0)                  # (M, Cmid) f32

        # ---------- conv2: 3x3 dilated; mid activation stays in VMEM ---------
        # Flat (rows, Cmid) scratch holds the mid activation with `d` zero rows
        # above/below; the W (column) zero-padding is handled by masking the
        # lanes that would wrap into the neighboring image row.
        mid_ref[...] = jnp.zeros_like(mid_ref)
        mid_ref[pl.ds(base, M), :] = h1

        col = lax.broadcasted_iota(jnp.int32, (M, Cmid), 0) % W   # column of pixel
        zero = jnp.zeros((M, Cmid), jnp.float32)
        taps = []
        for kh in range(3):
            for kw in range(3):
                start = slop + kh * d * W + (kw - 1) * d          # static offset
                tap = mid_ref[pl.ds(start, M), :]                 # (M, Cmid) f32
                if kw == 0:                                       # left pad column
                    tap = jnp.where(col >= d, tap, zero)
                elif kw == 2:                                     # right pad column
                    tap = jnp.where(col < W - d, tap, zero)
                taps.append(tap)
        # In-VMEM "im2col": one big dot with K = 9*Cmid instead of 9 small ones.
        patches = jnp.concatenate(taps, axis=1).astype(jnp.bfloat16)  # (M, 9*Cmid)
        h2 = jnp.dot(patches, w2_ref[...], preferred_element_type=jnp.float32)
        h2 = jnp.maximum(h2 + b2_ref[...], 0.0).astype(jnp.bfloat16)  # (M, Cmid)

        # ---------- conv3: 1x1 + folded-BN + ReLU, then + identity -----------
        h3 = jnp.dot(h2, w3_ref[...], preferred_element_type=jnp.float32)
        h3 = jnp.maximum(h3 + b3_ref[...], 0.0)                   # ReLU before add
        o_ref[...] = (h3 + x2.astype(jnp.float32)).astype(o_ref.dtype)

    return kernel


# ---------------------------------------------------------------------------
# Wrapper around pallas_call
# ---------------------------------------------------------------------------
def forward(params, x_nchw, *, dilation=1):
    """MyBottleneck.forward.  x_nchw: (N, Cin, H, W) f32 -> (N, Cin, H, W) f32."""
    w1, b1 = params["w1"], params["b1"]          # (Cin, Cmid) bf16, (1, Cmid) f32
    w2, b2 = params["w2"], params["b2"]          # (9*Cmid, Cmid) bf16, (1, Cmid) f32
    w3, b3 = params["w3"], params["b3"]          # (Cmid, Cin) bf16, (1, Cin) f32

    N, Cin, H, W = x_nchw.shape
    Cmid = w1.shape[1]
    d = dilation
    assert Cin % 128 == 0 and Cmid % 128 == 0, "channels must be multiples of 128"
    assert 0 < d < W and d < H

    M = H * W
    slop = _rup(max(d, 1), 8)                          # safety rows at each end
    mid_rows = _rup((H + 2 * d) * W + 2 * slop, 8)

    # Single layout pass: NCHW f32 -> (N, H*W, Cin) bf16.  All intermediate
    # activations stay inside the kernel; the output comes back as bf16.
    x2d = jnp.transpose(x_nchw, (0, 2, 3, 1)).reshape(N, M, Cin)
    x2d = x2d.astype(jnp.bfloat16)

    kernel = _make_bottleneck_kernel(H, W, Cin, Cmid, d, slop)

    out = pl.pallas_call(
        kernel,
        out_shape=jax.ShapeDtypeStruct((N, M, Cin), jnp.bfloat16),
        grid_spec=pltpu.PrefetchScalarGridSpec(
            num_scalar_prefetch=0,
            grid=(N,),
            in_specs=[
                pl.BlockSpec((None, M, Cin), lambda b: (b, 0, 0)),       # x / identity
                pl.BlockSpec((Cin, Cmid), lambda b: (0, 0)),             # w1
                pl.BlockSpec((1, Cmid), lambda b: (0, 0)),               # b1
                pl.BlockSpec((9 * Cmid, Cmid), lambda b: (0, 0)),        # w2
                pl.BlockSpec((1, Cmid), lambda b: (0, 0)),               # b2
                pl.BlockSpec((Cmid, Cin), lambda b: (0, 0)),             # w3
                pl.BlockSpec((1, Cin), lambda b: (0, 0)),                # b3
            ],
            out_specs=pl.BlockSpec((None, M, Cin), lambda b: (b, 0, 0)),
            scratch_shapes=[pltpu.VMEM((mid_rows, Cmid), jnp.float32)],
        ),
        compiler_params=pltpu.CompilerParams(
            dimension_semantics=("parallel",),
            vmem_limit_bytes=32 * 1024 * 1024,
        ),
    )(x2d, w1, b1, w2, b2, w3, b3)

    out = out.reshape(N, H, W, Cin).astype(jnp.float32)
    return jnp.transpose(out, (0, 3, 1, 2))             # NHWC -> NCHW


# ---------------------------------------------------------------------------
# Parameters: PyTorch-like raw init + folding Conv bias / BN into (W, bias)
# ---------------------------------------------------------------------------
def init_raw_params(key, in_channels=512, mid_channels=128):
    """Deterministic init mirroring PyTorch Conv2d / BatchNorm2d defaults."""
    ks = jax.random.split(key, 6)

    def conv_w(k, cout, cin, kh, kw):
        fan_in = cin * kh * kw
        bound = (1.0 / fan_in) ** 0.5            # kaiming_uniform(a=sqrt(5)) bound
        return jax.random.uniform(k, (cout, cin, kh, kw), jnp.float32, -bound, bound)

    def conv_b(k, cout, fan_in):
        bound = (1.0 / fan_in) ** 0.5
        return jax.random.uniform(k, (cout,), jnp.float32, -bound, bound)

    def bn(c):
        return dict(gamma=jnp.ones((c,), jnp.float32),
                    beta=jnp.zeros((c,), jnp.float32),
                    mean=jnp.zeros((c,), jnp.float32),
                    var=jnp.ones((c,), jnp.float32))

    return {
        "conv1_w": conv_w(ks[0], mid_channels, in_channels, 1, 1),
        "conv1_b": conv_b(ks[1], mid_channels, in_channels),
        "bn1": bn(mid_channels),
        "conv2_w": conv_w(ks[2], mid_channels, mid_channels, 3, 3),
        "conv2_b": conv_b(ks[3], mid_channels, mid_channels * 9),
        "bn2": bn(mid_channels),
        "conv3_w": conv_w(ks[4], in_channels, mid_channels, 1, 1),
        "conv3_b": conv_b(ks[5], in_channels, mid_channels),
        "bn3": bn(in_channels),
    }


def prepare_params(raw):
    """Fold conv bias + inference-mode BN into kernel-ready bf16 W / f32 bias."""
    p = {}
    for i in (1, 2, 3):
        bn = raw[f"bn{i}"]
        w_pt, b_conv = raw[f"conv{i}_w"], raw[f"conv{i}_b"]
        cout = w_pt.shape[0]
        scale = bn["gamma"] / jnp.sqrt(bn["var"] + _BN_EPS)             # (Cout,)
        Wm = jnp.transpose(w_pt, (2, 3, 1, 0)).reshape(-1, cout)        # (kh*kw*Cin, Cout)
        Wm = Wm * scale[None, :]
        bias = (b_conv - bn["mean"]) * scale + bn["beta"]
        p[f"w{i}"] = Wm.astype(jnp.bfloat16)
        p[f"b{i}"] = bias.reshape(1, cout).astype(jnp.float32)
    return p


# ---------------------------------------------------------------------------
# Pure-JAX (XLA) reference for a correctness sanity check
# ---------------------------------------------------------------------------
def reference_forward(raw, x_nchw, *, dilation=1):
    x = jnp.transpose(x_nchw, (0, 2, 3, 1))

    def conv_bn_relu(h, w_pt, b, bn, pad, dil):
        y = lax.conv_general_dilated(
            h, jnp.transpose(w_pt, (2, 3, 1, 0)),
            window_strides=(1, 1), padding=[(pad, pad), (pad, pad)],
            rhs_dilation=(dil, dil),
            dimension_numbers=("NHWC", "HWIO", "NHWC"))
        y = y + b
        y = (y - bn["mean"]) * (bn["gamma"] / jnp.sqrt(bn["var"] + _BN_EPS)) + bn["beta"]
        return jnp.maximum(y, 0.0)

    out = conv_bn_relu(x, raw["conv1_w"], raw["conv1_b"], raw["bn1"], 0, 1)
    out = conv_bn_relu(out, raw["conv2_w"], raw["conv2_b"], raw["bn2"], dilation, dilation)
    out = conv_bn_relu(out, raw["conv3_w"], raw["conv3_b"], raw["bn3"], 0, 1)
    out = out + x
    return jnp.transpose(out, (0, 3, 1, 2))


# ---------------------------------------------------------------------------
if __name__ == "__main__":
    key = jax.random.PRNGKey(0)
    pkey, xkey = jax.random.split(key)

    IN_C, MID_C, DIL = 512, 128, 1                     # MyBottleneck defaults
    raw = init_raw_params(pkey, IN_C, MID_C)
    params = prepare_params(raw)

    x = jax.random.normal(xkey, (2, IN_C, 16, 16), jnp.float32)   # small NCHW input

    fwd = jax.jit(functools.partial(forward, dilation=DIL))
    out = fwd(params, x)
    jax.block_until_ready(out)

    assert out.shape == x.shape, out.shape
    assert bool(jnp.isfinite(out).all())

    ref = reference_forward(raw, x, dilation=DIL)
    max_err = float(jnp.max(jnp.abs(out - ref)))
    assert max_err < 0.2, f"max abs error vs f32 reference = {max_err}"

    print("KERNEL_OK")
</pallas_src>

<mosaic_0001>
module attributes {stable_mosaic.version = 11 : i64} {
  func.func @kernel(%arg0: i32, %arg1: memref<1x256x512xbf16, #tpu.memory_space<vmem>>, %arg2: memref<512x128xbf16, #tpu.memory_space<vmem>>, %arg3: memref<1x128xf32, #tpu.memory_space<vmem>>, %arg4: memref<1152x128xbf16, #tpu.memory_space<vmem>>, %arg5: memref<1x128xf32, #tpu.memory_space<vmem>>, %arg6: memref<128x512xbf16, #tpu.memory_space<vmem>>, %arg7: memref<1x512xf32, #tpu.memory_space<vmem>>, %arg8: memref<1x256x512xbf16, #tpu.memory_space<vmem>>, %arg9: memref<304x128xf32, #tpu.memory_space<vmem>>) attributes {dimension_semantics = [#tpu.dimension_semantics<parallel>], iteration_bounds = array<i64: 2>, scalar_prefetch = 0 : i64, scratch_operands = 1 : i64, tpu.core_type = #tpu.core_type<tc>, window_params = [{transform_indices = @transform_0, window_bounds = array<i64: 1, 256, 512>}, {pipeline_mode = #tpu.pipeline_mode<synchronous>, transform_indices = @transform_1, window_bounds = array<i64: 512, 128>}, {pipeline_mode = #tpu.pipeline_mode<synchronous>, transform_indices = @transform_2, window_bounds = array<i64: 1, 128>}, {pipeline_mode = #tpu.pipeline_mode<synchronous>, transform_indices = @transform_3, window_bounds = array<i64: 1152, 128>}, {pipeline_mode = #tpu.pipeline_mode<synchronous>, transform_indices = @transform_4, window_bounds = array<i64: 1, 128>}, {pipeline_mode = #tpu.pipeline_mode<synchronous>, transform_indices = @transform_5, window_bounds = array<i64: 128, 512>}, {pipeline_mode = #tpu.pipeline_mode<synchronous>, transform_indices = @transform_6, window_bounds = array<i64: 1, 512>}, {transform_indices = @transform_7, window_bounds = array<i64: 1, 256, 512>}]} {
    %c0 = arith.constant 0 : index
    %c0_0 = arith.constant 0 : index
    %c0_1 = arith.constant 0 : index
    %0 = vector.load %arg1[%c0, %c0_0, %c0_1] : memref<1x256x512xbf16, #tpu.memory_space<vmem>>, vector<1x256x512xbf16>
    %1 = vector.shape_cast %0 : vector<1x256x512xbf16> to vector<256x512xbf16>
    %c0_2 = arith.constant 0 : index
    %c0_3 = arith.constant 0 : index
    %2 = vector.load %arg2[%c0_2, %c0_3] : memref<512x128xbf16, #tpu.memory_space<vmem>>, vector<512x128xbf16>
    %cst = arith.constant dense<0.000000e+00> : vector<256x128xf32>
    %3 = tpu.matmul %1, %2, %cst {dimension_numbers = #tpu.dot_dimension_numbers<[1], [0], [0], [1], [0, 0, 1, 1], [], []>} : vector<256x512xbf16>, vector<512x128xbf16>, vector<256x128xf32> -> vector<256x128xf32>
    %c0_4 = arith.constant 0 : index
    %c0_5 = arith.constant 0 : index
    %4 = vector.load %arg3[%c0_4, %c0_5] : memref<1x128xf32, #tpu.memory_space<vmem>>, vector<1x128xf32>
    %5 = vector.broadcast %4 : vector<1x128xf32> to vector<256x128xf32>
    %6 = arith.addf %3, %5 : vector<256x128xf32>
    %cst_6 = arith.constant 0.000000e+00 : f32
    %7 = vector.broadcast %cst_6 : f32 to vector<256x128xf32>
    %8 = arith.maximumf %6, %7 : vector<256x128xf32>
    %cst_7 = arith.constant 0.000000e+00 : f32
    %9 = vector.broadcast %cst_7 : f32 to vector<304x128xf32>
    %c0_8 = arith.constant 0 : index
    %c0_9 = arith.constant 0 : index
    %10 = vector.load %arg9[%c0_8, %c0_9] : memref<304x128xf32, #tpu.memory_space<vmem>>, vector<304x128xf32>
    tpu.vector_store %arg9[%c0_8, %c0_9], %9 {strides = array<i32>} : memref<304x128xf32, #tpu.memory_space<vmem>>, vector<304x128xf32>,
    %c24 = arith.constant 24 : index
    %c0_10 = arith.constant 0 : index
    %11 = vector.load %arg9[%c24, %c0_10] : memref<304x128xf32, #tpu.memory_space<vmem>>, vector<256x128xf32>
    tpu.vector_store %arg9[%c24, %c0_10], %8 {strides = array<i32>} : memref<304x128xf32, #tpu.memory_space<vmem>>, vector<256x128xf32>,
    %12 = tpu.iota {dimensions = array<i32: 0>} : vector<256x128xi32>
    %c16_i32 = arith.constant 16 : i32
    %c0_i32 = arith.constant 0 : i32
    %13 = arith.cmpi eq, %c16_i32, %c0_i32 : i32
    %c1_i32 = arith.constant 1 : i32
    %14 = arith.select %13, %c1_i32, %c16_i32 : i32
    %15 = vector.broadcast %14 : i32 to vector<256x128xi32>
    %16 = arith.remsi %12, %15 : vector<256x128xi32>
    %c0_i32_11 = arith.constant 0 : i32
    %17 = vector.broadcast %c0_i32_11 : i32 to vector<256x128xi32>
    %18 = arith.cmpi ne, %16, %17 : vector<256x128xi32>
    %c0_i32_12 = arith.constant 0 : i32
    %19 = vector.broadcast %c0_i32_12 : i32 to vector<256x128xi32>
    %20 = arith.cmpi slt, %16, %19 : vector<256x128xi32>
    %c0_i32_13 = arith.constant 0 : i32
    %21 = arith.cmpi slt, %14, %c0_i32_13 : i32
    %22 = vector.broadcast %21 : i1 to vector<256x128xi1>
    %23 = vector.broadcast %22 : vector<256x128xi1> to vector<256x128xi1>
    %24 = arith.xori %20, %23 : vector<256x128xi1>
    %25 = arith.andi %24, %18 : vector<256x128xi1>
    %26 = vector.broadcast %14 : i32 to vector<256x128xi32>
    %27 = arith.addi %16, %26 : vector<256x128xi32>
    %28 = arith.select %25, %27, %16 : vector<256x128xi1>, vector<256x128xi32>
    %cst_14 = arith.constant 0.000000e+00 : f32
    %29 = vector.broadcast %cst_14 : f32 to vector<256x128xf32>
    %c7 = arith.constant 7 : index
    %c0_15 = arith.constant 0 : index
    %30 = vector.load %arg9[%c7, %c0_15] : memref<304x128xf32, #tpu.memory_space<vmem>>, vector<256x128xf32>
    %c1_i32_16 = arith.constant 1 : i32
    %31 = vector.broadcast %c1_i32_16 : i32 to vector<256x128xi32>
    %32 = arith.cmpi sge, %28, %31 : vector<256x128xi32>
    %33 = arith.select %32, %30, %29 : vector<256x128xi1>, vector<256x128xf32>
    %c8 = arith.constant 8 : index
    %c0_17 = arith.constant 0 : index
    %34 = vector.load %arg9[%c8, %c0_17] : memref<304x128xf32, #tpu.memory_space<vmem>>, vector<256x128xf32>
    %c9 = arith.constant 9 : index
    %c0_18 = arith.constant 0 : index
    %35 = vector.load %arg9[%c9, %c0_18] : memref<304x128xf32, #tpu.memory_space<vmem>>, vector<256x128xf32>
    %c15_i32 = arith.constant 15 : i32
    %36 = vector.broadcast %c15_i32 : i32 to vector<256x128xi32>
    %37 = arith.cmpi slt, %28, %36 : vector<256x128xi32>
    %38 = arith.select %37, %35, %29 : vector<256x128xi1>, vector<256x128xf32>
    %c23 = arith.constant 23 : index
    %c0_19 = arith.constant 0 : index
    %39 = vector.load %arg9[%c23, %c0_19] : memref<304x128xf32, #tpu.memory_space<vmem>>, vector<256x128xf32>
    %c1_i32_20 = arith.constant 1 : i32
    %40 = vector.broadcast %c1_i32_20 : i32 to vector<256x128xi32>
    %41 = arith.cmpi sge, %28, %40 : vector<256x128xi32>
    %42 = arith.select %41, %39, %29 : vector<256x128xi1>, vector<256x128xf32>
    %c24_21 = arith.constant 24 : index
    %c0_22 = arith.constant 0 : index
    %43 = vector.load %arg9[%c24_21, %c0_22] : memref<304x128xf32, #tpu.memory_space<vmem>>, vector<256x128xf32>
    %c25 = arith.constant 25 : index
    %c0_23 = arith.constant 0 : index
    %44 = vector.load %arg9[%c25, %c0_23] : memref<304x128xf32, #tpu.memory_space<vmem>>, vector<256x128xf32>
    %c15_i32_24 = arith.constant 15 : i32
    %45 = vector.broadcast %c15_i32_24 : i32 to vector<256x128xi32>
    %46 = arith.cmpi slt, %28, %45 : vector<256x128xi32>
    %47 = arith.select %46, %44, %29 : vector<256x128xi1>, vector<256x128xf32>
    %c39 = arith.constant 39 : index
    %c0_25 = arith.constant 0 : index
    %48 = vector.load %arg9[%c39, %c0_25] : memref<304x128xf32, #tpu.memory_space<vmem>>, vector<256x128xf32>
    %c1_i32_26 = arith.constant 1 : i32
    %49 = vector.broadcast %c1_i32_26 : i32 to vector<256x128xi32>
    %50 = arith.cmpi sge, %28, %49 : vector<256x128xi32>
    %51 = arith.select %50, %48, %29 : vector<256x128xi1>, vector<256x128xf32>
    %c40 = arith.constant 40 : index
    %c0_27 = arith.constant 0 : index
    %52 = vector.load %arg9[%c40, %c0_27] : memref<304x128xf32, #tpu.memory_space<vmem>>, vector<256x128xf32>
    %c41 = arith.constant 41 : index
    %c0_28 = arith.constant 0 : index
    %53 = vector.load %arg9[%c41, %c0_28] : memref<304x128xf32, #tpu.memory_space<vmem>>, vector<256x128xf32>
    %c15_i32_29 = arith.constant 15 : i32
    %54 = vector.broadcast %c15_i32_29 : i32 to vector<256x128xi32>
    %55 = arith.cmpi slt, %28, %54 : vector<256x128xi32>
    %56 = arith.select %55, %53, %29 : vector<256x128xi1>, vector<256x128xf32>
    %57 = tpu.concatenate %33, %34, %38, %42, %43, %47, %51, %52, %56 in 1 : vector<256x128xf32>, vector<256x128xf32>, vector<256x128xf32>, vector<256x128xf32>, vector<256x128xf32>, vector<256x128xf32>, vector<256x128xf32>, vector<256x128xf32>, vector<256x128xf32> -> vector<256x1152xf32>
    %58 = arith.truncf %57 : vector<256x1152xf32> to vector<256x1152xbf16>
    %c0_30 = arith.constant 0 : index
    %c0_31 = arith.constant 0 : index
    %59 = vector.load %arg4[%c0_30, %c0_31] : memref<1152x128xbf16, #tpu.memory_space<vmem>>, vector<1152x128xbf16>
    %cst_32 = arith.constant dense<0.000000e+00> : vector<256x128xf32>
    %60 = tpu.matmul %58, %59, %cst_32 {dimension_numbers = #tpu.dot_dimension_numbers<[1], [0], [0], [1], [0, 0, 1, 1], [], []>} : vector<256x1152xbf16>, vector<1152x128xbf16>, vector<256x128xf32> -> vector<256x128xf32>
    %c0_33 = arith.constant 0 : index
    %c0_34 = arith.constant 0 : index
    %61 = vector.load %arg5[%c0_33, %c0_34] : memref<1x128xf32, #tpu.memory_space<vmem>>, vector<1x128xf32>
    %62 = vector.broadcast %61 : vector<1x128xf32> to vector<256x128xf32>
    %63 = arith.addf %60, %62 : vector<256x128xf32>
    %cst_35 = arith.constant 0.000000e+00 : f32
    %64 = vector.broadcast %cst_35 : f32 to vector<256x128xf32>
    %65 = arith.maximumf %63, %64 : vector<256x128xf32>
    %66 = arith.truncf %65 : vector<256x128xf32> to vector<256x128xbf16>
    %c0_36 = arith.constant 0 : index
    %c0_37 = arith.constant 0 : index
    %67 = vector.load %arg6[%c0_36, %c0_37] : memref<128x512xbf16, #tpu.memory_space<vmem>>, vector<128x512xbf16>
    %cst_38 = arith.constant dense<0.000000e+00> : vector<256x512xf32>
    %68 = tpu.matmul %66, %67, %cst_38 {dimension_numbers = #tpu.dot_dimension_numbers<[1], [0], [0], [1], [0, 0, 1, 1], [], []>} : vector<256x128xbf16>, vector<128x512xbf16>, vector<256x512xf32> -> vector<256x512xf32>
    %c0_39 = arith.constant 0 : index
    %c0_40 = arith.constant 0 : index
    %69 = vector.load %arg7[%c0_39, %c0_40] : memref<1x512xf32, #tpu.memory_space<vmem>>, vector<1x512xf32>
    %70 = vector.broadcast %69 : vector<1x512xf32> to vector<256x512xf32>
    %71 = arith.addf %68, %70 : vector<256x512xf32>
    %cst_41 = arith.constant 0.000000e+00 : f32
    %72 = vector.broadcast %cst_41 : f32 to vector<256x512xf32>
    %73 = arith.maximumf %71, %72 : vector<256x512xf32>
    %74 = arith.extf %1 : vector<256x512xbf16> to vector<256x512xf32>
    %75 = arith.addf %73, %74 : vector<256x512xf32>
    %76 = arith.truncf %75 : vector<256x512xf32> to vector<256x512xbf16>
    %c0_42 = arith.constant 0 : index
    %c0_43 = arith.constant 0 : index
    %c0_44 = arith.constant 0 : index
    %77 = vector.load %arg8[%c0_42, %c0_43, %c0_44] : memref<1x256x512xbf16, #tpu.memory_space<vmem>>, vector<1x256x512xbf16>
    %78 = vector.shape_cast %77 : vector<1x256x512xbf16> to vector<256x512xbf16>
    %79 = vector.shape_cast %76 : vector<256x512xbf16> to vector<1x256x512xbf16>
    tpu.vector_store %arg8[%c0_42, %c0_43, %c0_44], %79 {strides = array<i32>} : memref<1x256x512xbf16, #tpu.memory_space<vmem>>, vector<1x256x512xbf16>,
    return
  }
  func.func @transform_0(%arg0: i32) -> (i32, i32, i32) {
    %c0_i32 = arith.constant 0 : i32
    %c0_i32_0 = arith.constant 0 : i32
    %c0_i32_1 = arith.constant 0 : i32
    return %arg0, %c0_i32, %c0_i32_0 : i32, i32, i32
  }
  func.func @transform_1(%arg0: i32) -> (i32, i32) {
    %c0_i32 = arith.constant 0 : i32
    %c0_i32_0 = arith.constant 0 : i32
    %c0_i32_1 = arith.constant 0 : i32
    return %c0_i32, %c0_i32_0 : i32, i32
  }
  func.func @transform_2(%arg0: i32) -> (i32, i32) {
    %c0_i32 = arith.constant 0 : i32
    %c0_i32_0 = arith.constant 0 : i32
    %c0_i32_1 = arith.constant 0 : i32
    return %c0_i32, %c0_i32_0 : i32, i32
  }
  func.func @transform_3(%arg0: i32) -> (i32, i32) {
    %c0_i32 = arith.constant 0 : i32
    %c0_i32_0 = arith.constant 0 : i32
    %c0_i32_1 = arith.constant 0 : i32
    return %c0_i32, %c0_i32_0 : i32, i32
  }
  func.func @transform_4(%arg0: i32) -> (i32, i32) {
    %c0_i32 = arith.constant 0 : i32
    %c0_i32_0 = arith.constant 0 : i32
    %c0_i32_1 = arith.constant 0 : i32
    return %c0_i32, %c0_i32_0 : i32, i32
  }
  func.func @transform_5(%arg0: i32) -> (i32, i32) {
    %c0_i32 = arith.constant 0 : i32
    %c0_i32_0 = arith.constant 0 : i32
    %c0_i32_1 = arith.constant 0 : i32
    return %c0_i32, %c0_i32_0 : i32, i32
  }
  func.func @transform_6(%arg0: i32) -> (i32, i32) {
    %c0_i32 = arith.constant 0 : i32
    %c0_i32_0 = arith.constant 0 : i32
    %c0_i32_1 = arith.constant 0 : i32
    return %c0_i32, %c0_i32_0 : i32, i32
  }
  func.func @transform_7(%arg0: i32) -> (i32, i32, i32) {
    %c0_i32 = arith.constant 0 : i32
    %c0_i32_0 = arith.constant 0 : i32
    %c0_i32_1 = arith.constant 0 : i32
    return %arg0, %c0_i32, %c0_i32_0 : i32, i32, i32
  }
}

</mosaic_0001>

<llo_original>
// kernel: forward.1
$region0: #{forward.1}
  #allocation0 [shape = 'u32[]', space=smem, size = 0x4, offset = 0x4, fixed_abs, tag = 'smem constant byte address 0x4 - core index']
  #allocation1 [shape = 'u32[144,128]{1,0:T(1,128)}', space=vmem, size = 0x12000, scoped, tag = 'internal scratch']
  #allocation2 [shape = 'f32[304,128]{1,0:T(8,128)}', space=vmem, size = 0x26000, scoped, tag = 'scratch operand']
  %s0 = inlined_call_operand.vmem [shape: bf16[2,256,512], index: 0, kind: input, shape index: {}]
  %s1 = inlined_call_operand.vmem [shape: bf16[512,128], index: 1, kind: input, shape index: {}]
  %s2 = inlined_call_operand.vmem [shape: f32[1,128], index: 2, kind: input, shape index: {}]
  %s3 = inlined_call_operand.vmem [shape: bf16[1152,128], index: 3, kind: input, shape index: {}]
  %s4 = inlined_call_operand.vmem [shape: f32[1,128], index: 4, kind: input, shape index: {}]
  %s5 = inlined_call_operand.vmem [shape: bf16[128,512], index: 5, kind: input, shape index: {}]
  %s6 = inlined_call_operand.vmem [shape: f32[1,512], index: 6, kind: input, shape index: {}]
  %s7 = inlined_call_operand.vmem [shape: bf16[2,256,512], index: 7, kind: output, shape index: {}]
  %s8 = sld [smem:[#allocation0]]
  $region61: #{forward.1} parent=0
    _
  %s10 = ssub.s32 1, %s8
  %s11 = scalar_select 0, %s10, %s8
  loop: start=0, step=1, limit=4
  $region2: #{forward.1} parent=0 // loop_pre_header
    _
  $region3: #{forward.1} parent=0 // loop_header
    %s13 = sphi 0, %s17
    %p14 = scmp.ge.s32.totalorder %s13, 4
    %s23 = sphi 0, %s25
    %s26 = sphi 0, %s23
    %s27 = sphi 0, %s26
    %s43 = sphi 0, %s27
    %s47 = sphi 0, %s47
    %s49 = sphi 0, %s47
    %s50 = sphi 0, %s49
    %s64 = sphi 0, %s50
    %s68 = sphi 0, %s68
    %s70 = sphi 0, %s68
    %s71 = sphi 0, %s70
    %s85 = sphi 0, %s71
    %s89 = sphi 0, %s89
    %s91 = sphi 0, %s89
    %s92 = sphi 0, %s91
    %s106 = sphi 0, %s92
    %s110 = sphi 0, %s110
    %s112 = sphi 0, %s110
    %s113 = sphi 0, %s112
    %s127 = sphi 0, %s113
    %s131 = sphi 0, %s131
    %s133 = sphi 0, %s131
    %s134 = sphi 0, %s133
    %s148 = sphi 0, %s134
    %s152 = sphi 0, %s152
    %s154 = sphi 0, %s152
    %s155 = sphi 0, %s154
    %s169 = sphi 0, %s155
    %s175 = sphi 0, %s177
    %s178 = sphi 0, %s175
    %s179 = sphi 0, %s178
    %s195 = sphi 0, %s179
  $region4: #{forward.1} parent=0 // loop_header_branch
    %16 = sbr.rel (%p14) target = $region8
  $region5: #{forward.1} parent=0 // loop_body
    %s18 = ssub.s32 %s13, 1
    %s19 = ssub.s32 %s13, 2
    %s20 = sadd.s32 %s13, 1
    %s21 = ssub.s32 %s13, %s20
    %p22 = scmp.eq.s32.totalorder %s21, 0
    %s24 = sadd.s32 %s23, 1
    %s25 = scalar_select %p22, %s23, %s24
    %p28 = pneg %p22
    %p29 = scmp.eq.s32.totalorder %s13, 1
    %p30 = por %p28, %p29
    %p31 = scmp.ne.s32.totalorder %s23, %s26
    %p32 = scmp.eq.s32.totalorder %s13, 0
    %p33 = por %p31, %p32
    %p34 = scmp.ne.s32.totalorder %s23, %s26
    %p35 = scmp.eq.s32.totalorder %s18, 1
    %p36 = por %p34, %p35
    %p37 = scmp.ne.s32.totalorder %s26, %s27
    %p38 = scmp.eq.s32.totalorder %s18, 0
    %p39 = por %p37, %p38
    %p40 = scmp.ne.s32.totalorder %s26, %s27
    %p41 = scmp.eq.s32.totalorder %s19, 1
    %p42 = por %p40, %p41
    %p44 = scmp.ne.s32.totalorder %s27, %s43
    %p45 = scmp.eq.s32.totalorder %s19, 0
    %p46 = por %p44, %p45
    %s48 = sadd.s32 %s47, 1
    %p51 = scmp.eq.s32.totalorder %s13, 1
    %p52 = scmp.ne.s32.totalorder %s47, %s49
    %p53 = scmp.eq.s32.totalorder %s13, 0
    %p54 = por %p52, %p53
    %p55 = scmp.ne.s32.totalorder %s47, %s49
    %p56 = scmp.eq.s32.totalorder %s18, 1
    %p57 = por %p55, %p56
    %p58 = scmp.ne.s32.totalorder %s49, %s50
    %p59 = scmp.eq.s32.totalorder %s18, 0
    %p60 = por %p58, %p59
    %p61 = scmp.ne.s32.totalorder %s49, %s50
    %p62 = scmp.eq.s32.totalorder %s19, 1
    %p63 = por %p61, %p62
    %p65 = scmp.ne.s32.totalorder %s50, %s64
    %p66 = scmp.eq.s32.totalorder %s19, 0
    %p67 = por %p65, %p66
    %s69 = sadd.s32 %s68, 1
    %p72 = scmp.eq.s32.totalorder %s13, 1
    %p73 = scmp.ne.s32.totalorder %s68, %s70
    %p74 = scmp.eq.s32.totalorder %s13, 0
    %p75 = por %p73, %p74
    %p76 = scmp.ne.s32.totalorder %s68, %s70
    %p77 = scmp.eq.s32.totalorder %s18, 1
    %p78 = por %p76, %p77
    %p79 = scmp.ne.s32.totalorder %s70, %s71
    %p80 = scmp.eq.s32.totalorder %s18, 0
    %p81 = por %p79, %p80
    %p82 = scmp.ne.s32.totalorder %s70, %s71
    %p83 = scmp.eq.s32.totalorder %s19, 1
    %p84 = por %p82, %p83
    %p86 = scmp.ne.s32.totalorder %s71, %s85
    %p87 = scmp.eq.s32.totalorder %s19, 0
    %p88 = por %p86, %p87
    %s90 = sadd.s32 %s89, 1
    %p93 = scmp.eq.s32.totalorder %s13, 1
    %p94 = scmp.ne.s32.totalorder %s89, %s91
    %p95 = scmp.eq.s32.totalorder %s13, 0
    %p96 = por %p94, %p95
    %p97 = scmp.ne.s32.totalorder %s89, %s91
    %p98 = scmp.eq.s32.totalorder %s18, 1
    %p99 = por %p97, %p98
    %p100 = scmp.ne.s32.totalorder %s91, %s92
    %p101 = scmp.eq.s32.totalorder %s18, 0
    %p102 = por %p100, %p101
    %p103 = scmp.ne.s32.totalorder %s91, %s92
    %p104 = scmp.eq.s32.totalorder %s19, 1
    %p105 = por %p103, %p104
    %p107 = scmp.ne.s32.totalorder %s92, %s106
    %p108 = scmp.eq.s32.totalorder %s19, 0
    %p109 = por %p107, %p108
    %s111 = sadd.s32 %s110, 1
    %p114 = scmp.eq.s32.totalorder %s13, 1
    %p115 = scmp.ne.s32.totalorder %s110, %s112
    %p116 = scmp.eq.s32.totalorder %s13, 0
    %p117 = por %p115, %p116
    %p118 = scmp.ne.s32.totalorder %s110, %s112
    %p119 = scmp.eq.s32.totalorder %s18, 1
    %p120 = por %p118, %p119
    %p121 = scmp.ne.s32.totalorder %s112, %s113
    %p122 = scmp.eq.s32.totalorder %s18, 0
    %p123 = por %p121, %p122
    %p124 = scmp.ne.s32.totalorder %s112, %s113
    %p125 = scmp.eq.s32.totalorder %s19, 1
    %p126 = por %p124, %p125
    %p128 = scmp.ne.s32.totalorder %s113, %s127
    %p129 = scmp.eq.s32.totalorder %s19, 0
    %p130 = por %p128, %p129
    %s132 = sadd.s32 %s131, 1
    %p135 = scmp.eq.s32.totalorder %s13, 1
    %p136 = scmp.ne.s32.totalorder %s131, %s133
    %p137 = scmp.eq.s32.totalorder %s13, 0
    %p138 = por %p136, %p137
    %p139 = scmp.ne.s32.totalorder %s131, %s133
    %p140 = scmp.eq.s32.totalorder %s18, 1
    %p141 = por %p139, %p140
    %p142 = scmp.ne.s32.totalorder %s133, %s134
    %p143 = scmp.eq.s32.totalorder %s18, 0
    %p144 = por %p142, %p143
    %p145 = scmp.ne.s32.totalorder %s133, %s134
    %p146 = scmp.eq.s32.totalorder %s19, 1
    %p147 = por %p145, %p146
    %p149 = scmp.ne.s32.totalorder %s134, %s148
    %p150 = scmp.eq.s32.totalorder %s19, 0
    %p151 = por %p149, %p150
    %s153 = sadd.s32 %s152, 1
    %p156 = scmp.eq.s32.totalorder %s13, 1
    %p157 = scmp.ne.s32.totalorder %s152, %s154
    %p158 = scmp.eq.s32.totalorder %s13, 0
    %p159 = por %p157, %p158
    %p160 = scmp.ne.s32.totalorder %s152, %s154
    %p161 = scmp.eq.s32.totalorder %s18, 1
    %p162 = por %p160, %p161
    %p163 = scmp.ne.s32.totalorder %s154, %s155
    %p164 = scmp.eq.s32.totalorder %s18, 0
    %p165 = por %p163, %p164
    %p166 = scmp.ne.s32.totalorder %s154, %s155
    %p167 = scmp.eq.s32.totalorder %s19, 1
    %p168 = por %p166, %p167
    %p170 = scmp.ne.s32.totalorder %s155, %s169
    %p171 = scmp.eq.s32.totalorder %s19, 0
    %p172 = por %p170, %p171
    %s173 = ssub.s32 %s13, %s20
    %p174 = scmp.eq.s32.totalorder %s173, 0
    %s176 = sadd.s32 %s175, 1
    %s177 = scalar_select %p174, %s175, %s176
    %p180 = pneg %p174
    %p181 = scmp.eq.s32.totalorder %s13, 1
    %p182 = por %p180, %p181
    %p183 = scmp.ne.s32.totalorder %s175, %s178
    %p184 = scmp.eq.s32.totalorder %s13, 0
    %p185 = por %p183, %p184
    %p186 = scmp.ne.s32.totalorder %s175, %s178
    %p187 = scmp.eq.s32.totalorder %s18, 1
    %p188 = por %p186, %p187
    %p189 = scmp.ne.s32.totalorder %s178, %s179
    %p190 = scmp.eq.s32.totalorder %s18, 0
    %p191 = por %p189, %p190
    %p192 = scmp.ne.s32.totalorder %s178, %s179
    %p193 = scmp.eq.s32.totalorder %s19, 1
    %p194 = por %p192, %p193
    %p196 = scmp.ne.s32.totalorder %s179, %s195
    %p197 = scmp.eq.s32.totalorder %s19, 0
    %p198 = por %p196, %p197
    %p199 = scmp.le.s32.totalorder 1, %s13
    %p200 = scmp.lt.s32.totalorder %s13, 3
    %p201 = pnand %p199, %p200
    %p202 = pneg %p201
    // Predicated region
    $region9: #{forward.1} parent=5 // pred_check
      _
    $region10: #{forward.1} parent=5 // pred_check_branch
      %204 = sbr.rel (%p201) target = $region12
    $region11: #{forward.1} parent=5 // pred_region
      %s205 = ssub.s32 %s13, 1
      // Predicated region
      $region13: #{forward.1} parent=11 // pred_check
        %p206 = pneg %p60
      $region14: #{forward.1} parent=11 // pred_check_branch
        %208 = sbr.rel (%p206) target = $region16
      $region15: #{forward.1} parent=11 // pred_region
        _
      $region16: #{forward.1} parent=11 // pred_fallthru
        _
      // Predicated region
      $region17: #{forward.1} parent=11 // pred_check
        %p209 = pneg %p81
      $region18: #{forward.1} parent=11 // pred_check_branch
        %211 = sbr.rel (%p209) target = $region20
      $region19: #{forward.1} parent=11 // pred_region
        _
      $region20: #{forward.1} parent=11 // pred_fallthru
        _
      // Predicated region
      $region21: #{forward.1} parent=11 // pred_check
        %p212 = pneg %p102
      $region22: #{forward.1} parent=11 // pred_check_branch
        %214 = sbr.rel (%p212) target = $region24
      $region23: #{forward.1} parent=11 // pred_region
        _
      $region24: #{forward.1} parent=11 // pred_fallthru
        _
      // Predicated region
      $region25: #{forward.1} parent=11 // pred_check
        %p215 = pneg %p123
      $region26: #{forward.1} parent=11 // pred_check_branch
        %217 = sbr.rel (%p215) target = $region28
      $region27: #{forward.1} parent=11 // pred_region
        _
      $region28: #{forward.1} parent=11 // pred_fallthru
        _
      // Predicated region
      $region29: #{forward.1} parent=11 // pred_check
        %p218 = pneg %p144
      $region30: #{forward.1} parent=11 // pred_check_branch
        %220 = sbr.rel (%p218) target = $region32
      $region31: #{forward.1} parent=11 // pred_region
        _
      $region32: #{forward.1} parent=11 // pred_fallthru
        _
      // Predicated region
      $region33: #{forward.1} parent=11 // pred_check
        %p221 = pneg %p165
      $region34: #{forward.1} parent=11 // pred_check_branch
        %223 = sbr.rel (%p221) target = $region36
      $region35: #{forward.1} parent=11 // pred_region
        _
      $region36: #{forward.1} parent=11 // pred_fallthru
        _
    $region12: #{forward.1} parent=5 // pred_fallthru
      _
    %p224 = scmp.lt.s32.totalorder %s13, 2
    // Predicated region
    $region37: #{forward.1} parent=5 // pred_check
      %p225 = pneg %p224
    $region38: #{forward.1} parent=5 // pred_check_branch
      %227 = sbr.rel (%p225) target = $region40
    $region39: #{forward.1} parent=5 // pred_region
      // Predicated region
      $region41: #{forward.1} parent=39 // pred_check
        %p228 = pneg %p33
      $region42: #{forward.1} parent=39 // pred_check_branch
        %230 = sbr.rel (%p228) target = $region44
      $region43: #{forward.1} parent=39 // pred_region
        %p231 = scmp.lt.s32.totalorder %s13, 1
        %s232 = scalar_select %p231, %s13, 1
        %s233 = smul.addr %s232, 128
        %s234 = smul.addr %s233, 4
        %s235 = scalar_lea.vmem %s0, %s234
      $region44: #{forward.1} parent=39 // pred_fallthru
        _
    $region40: #{forward.1} parent=5 // pred_fallthru
      _
    %p236 = scmp.le.s32.totalorder 1, %s13
    %p237 = scmp.lt.s32.totalorder %s13, 3
    %p238 = pnand %p236, %p237
    %p239 = pneg %p238
    // Predicated region
    $region45: #{forward.1} parent=5 // pred_check
      _
    $region46: #{forward.1} parent=5 // pred_check_branch
      %241 = sbr.rel (%p238) target = $region48
    $region47: #{forward.1} parent=5 // pred_region
      %s242 = ssub.s32 %s13, 1
      %p243 = scmp.lt.s32.totalorder %s18, 1
      %s244 = scalar_select %p243, %s18, 1
      %s245 = smul.addr %s244, 128
      %s246 = smul.addr %s245, 4
      %s247 = scalar_lea.vmem %s0, %s246
      %p248 = pneg %p39
      %p249 = pneg %p36
      %p250 = pneg %p60
      %p251 = pneg %p57
      %p252 = pneg %p81
      %p253 = pneg %p78
      %p254 = pneg %p102
      %p255 = pneg %p99
      %p256 = pneg %p123
      %p257 = pneg %p120
      %p258 = pneg %p144
      %p259 = pneg %p141
      %p260 = pneg %p165
      %p261 = pneg %p162
      %p262 = pneg %p191
      %p263 = pneg %p188
      %p264 = scmp.lt.s32.totalorder %s18, 1
      %s265 = scalar_select %p264, %s18, 1
      %s266 = smul.addr %s265, 128
      %s267 = smul.addr %s266, 4
      %s268 = scalar_lea.vmem %s7, %s267
      %p269 = scmp.lt.s32.totalorder %s18, 1
      %s270 = scalar_select %p269, %s18, 1
      %s271 = smul.addr %s270, 128
      %s272 = smul.addr %s271, 4
      %s273 = scalar_lea.vmem %s0, %s272
      %p274 = scmp.lt.s32.totalorder %s18, 1
      %s275 = scalar_select %p274, %s18, 1
      %s276 = smul.addr %s275, 128
      %s277 = smul.addr %s276, 4
      %s278 = scalar_lea.vmem %s7, %s277
      %v280 = vld [vmem:[%s273] sm:$0xff]
      %v281 = vld [vmem:[%s273 + $0x8] sm:$0xff]
      %v282 = vld [vmem:[%s273 + $0x10] sm:$0xff]
      %v283 = vld [vmem:[%s273 + $0x18] sm:$0xff]
      %v284 = vld [vmem:[%s273 + $0x20] sm:$0xff]
      %v285 = vld [vmem:[%s273 + $0x28] sm:$0xff]
      %v286 = vld [vmem:[%s273 + $0x30] sm:$0xff]
      %v287 = vld [vmem:[%s273 + $0x38] sm:$0xff]
      %v288 = vld [vmem:[%s273 + $0x40] sm:$0xff]
      %v289 = vld [vmem:[%s273 + $0x48] sm:$0xff]
      %v290 = vld [vmem:[%s273 + $0x50] sm:$0xff]
      %v291 = vld [vmem:[%s273 + $0x58] sm:$0xff]
      %v292 = vld [vmem:[%s273 + $0x60] sm:$0xff]
      %v293 = vld [vmem:[%s273 + $0x68] sm:$0xff]
      %v294 = vld [vmem:[%s273 + $0x70] sm:$0xff]
      %v295 = vld [vmem:[%s273 + $0x78] sm:$0xff]
      %v296 = vld [vmem:[%s273 + $0x80] sm:$0xff]
      %v297 = vld [vmem:[%s273 + $0x88] sm:$0xff]
      %v298 = vld [vmem:[%s273 + $0x90] sm:$0xff]
      %v299 = vld [vmem:[%s273 + $0x98] sm:$0xff]
      %v300 = vld [vmem:[%s273 + $0xa0] sm:$0xff]
      %v301 = vld [vmem:[%s273 + $0xa8] sm:$0xff]
      %v302 = vld [vmem:[%s273 + $0xb0] sm:$0xff]
      %v303 = vld [vmem:[%s273 + $0xb8] sm:$0xff]
      %v304 = vld [vmem:[%s273 + $0xc0] sm:$0xff]
      %v305 = vld [vmem:[%s273 + $0xc8] sm:$0xff]
      %v306 = vld [vmem:[%s273 + $0xd0] sm:$0xff]
      %v307 = vld [vmem:[%s273 + $0xd8] sm:$0xff]
      %v308 = vld [vmem:[%s273 + $0xe0] sm:$0xff]
      %v309 = vld [vmem:[%s273 + $0xe8] sm:$0xff]
      %v310 = vld [vmem:[%s273 + $0xf0] sm:$0xff]
      %v311 = vld [vmem:[%s273 + $0xf8] sm:$0xff]
      %v312 = vld [vmem:[%s273 + $0x100] sm:$0xff]
      %v313 = vld [vmem:[%s273 + $0x108] sm:$0xff]
      %v314 = vld [vmem:[%s273 + $0x110] sm:$0xff]
      %v315 = vld [vmem:[%s273 + $0x118] sm:$0xff]
      %v316 = vld [vmem:[%s273 + $0x120] sm:$0xff]
      %v317 = vld [vmem:[%s273 + $0x128] sm:$0xff]
      %v318 = vld [vmem:[%s273 + $0x130] sm:$0xff]
      %v319 = vld [vmem:[%s273 + $0x138] sm:$0xff]
      %v320 = vld [vmem:[%s273 + $0x140] sm:$0xff]
      %v321 = vld [vmem:[%s273 + $0x148] sm:$0xff]
      %v322 = vld [vmem:[%s273 + $0x150] sm:$0xff]
      %v323 = vld [vmem:[%s273 + $0x158] sm:$0xff]
      %v324 = vld [vmem:[%s273 + $0x160] sm:$0xff]
      %v325 = vld [vmem:[%s273 + $0x168] sm:$0xff]
      %v326 = vld [vmem:[%s273 + $0x170] sm:$0xff]
      %v327 = vld [vmem:[%s273 + $0x178] sm:$0xff]
      %v328 = vld [vmem:[%s273 + $0x180] sm:$0xff]
      %v329 = vld [vmem:[%s273 + $0x188] sm:$0xff]
      %v330 = vld [vmem:[%s273 + $0x190] sm:$0xff]
      %v331 = vld [vmem:[%s273 + $0x198] sm:$0xff]
      %v332 = vld [vmem:[%s273 + $0x1a0] sm:$0xff]
      %v333 = vld [vmem:[%s273 + $0x1a8] sm:$0xff]
      %v334 = vld [vmem:[%s273 + $0x1b0] sm:$0xff]
      %v335 = vld [vmem:[%s273 + $0x1b8] sm:$0xff]
      %v336 = vld [vmem:[%s273 + $0x1c0] sm:$0xff]
      %v337 = vld [vmem:[%s273 + $0x1c8] sm:$0xff]
      %v338 = vld [vmem:[%s273 + $0x1d0] sm:$0xff]
      %v339 = vld [vmem:[%s273 + $0x1d8] sm:$0xff]
      %v340 = vld [vmem:[%s273 + $0x1e0] sm:$0xff]
      %v341 = vld [vmem:[%s273 + $0x1e8] sm:$0xff]
      %v342 = vld [vmem:[%s273 + $0x1f0] sm:$0xff]
      %v343 = vld [vmem:[%s273 + $0x1f8] sm:$0xff]
      %v344 = vld [vmem:[%s1] sm:$0xf]
      %v345 = vld [vmem:[%s1 + $0x4] sm:$0xf]
      %v346 = vld [vmem:[%s1 + $0x8] sm:$0xf]
      %v347 = vld [vmem:[%s1 + $0xc] sm:$0xf]
      %v348 = vld [vmem:[%s1 + $0x10] sm:$0xf]
      %v349 = vld [vmem:[%s1 + $0x14] sm:$0xf]
      %v350 = vld [vmem:[%s1 + $0x18] sm:$0xf]
      %v351 = vld [vmem:[%s1 + $0x1c] sm:$0xf]
      %v352 = vld [vmem:[%s1 + $0x20] sm:$0xf]
      %v353 = vld [vmem:[%s1 + $0x24] sm:$0xf]
      %v354 = vld [vmem:[%s1 + $0x28] sm:$0xf]
      %v355 = vld [vmem:[%s1 + $0x2c] sm:$0xf]
      %v356 = vld [vmem:[%s1 + $0x30] sm:$0xf]
      %v357 = vld [vmem:[%s1 + $0x34] sm:$0xf]
      %v358 = vld [vmem:[%s1 + $0x38] sm:$0xf]
      %v359 = vld [vmem:[%s1 + $0x3c] sm:$0xf]
      %v360 = vld [vmem:[%s1 + $0x40] sm:$0xf]
      %v361 = vld [vmem:[%s1 + $0x44] sm:$0xf]
      %v362 = vld [vmem:[%s1 + $0x48] sm:$0xf]
      %v363 = vld [vmem:[%s1 + $0x4c] sm:$0xf]
      %v364 = vld [vmem:[%s1 + $0x50] sm:$0xf]
      %v365 = vld [vmem:[%s1 + $0x54] sm:$0xf]
      %v366 = vld [vmem:[%s1 + $0x58] sm:$0xf]
      %v367 = vld [vmem:[%s1 + $0x5c] sm:$0xf]
      %v368 = vld [vmem:[%s1 + $0x60] sm:$0xf]
      %v369 = vld [vmem:[%s1 + $0x64] sm:$0xf]
      %v370 = vld [vmem:[%s1 + $0x68] sm:$0xf]
      %v371 = vld [vmem:[%s1 + $0x6c] sm:$0xf]
      %v372 = vld [vmem:[%s1 + $0x70] sm:$0xf]
      %v373 = vld [vmem:[%s1 + $0x74] sm:$0xf]
      %v374 = vld [vmem:[%s1 + $0x78] sm:$0xf]
      %v375 = vld [vmem:[%s1 + $0x7c] sm:$0xf]
      %v376 = vld [vmem:[%s1 + $0x80] sm:$0xf]
      %v377 = vld [vmem:[%s1 + $0x84] sm:$0xf]
      %v378 = vld [vmem:[%s1 + $0x88] sm:$0xf]
      %v379 = vld [vmem:[%s1 + $0x8c] sm:$0xf]
      %v380 = vld [vmem:[%s1 + $0x90] sm:$0xf]
      %v381 = vld [vmem:[%s1 + $0x94] sm:$0xf]
      %v382 = vld [vmem:[%s1 + $0x98] sm:$0xf]
      %v383 = vld [vmem:[%s1 + $0x9c] sm:$0xf]
      %v384 = vld [vmem:[%s1 + $0xa0] sm:$0xf]
      %v385 = vld [vmem:[%s1 + $0xa4] sm:$0xf]
      %v386 = vld [vmem:[%s1 + $0xa8] sm:$0xf]
      %v387 = vld [vmem:[%s1 + $0xac] sm:$0xf]
      %v388 = vld [vmem:[%s1 + $0xb0] sm:$0xf]
      %v389 = vld [vmem:[%s1 + $0xb4] sm:$0xf]
      %v390 = vld [vmem:[%s1 + $0xb8] sm:$0xf]
      %v391 = vld [vmem:[%s1 + $0xbc] sm:$0xf]
      %v392 = vld [vmem:[%s1 + $0xc0] sm:$0xf]
      %v393 = vld [vmem:[%s1 + $0xc4] sm:$0xf]
      %v394 = vld [vmem:[%s1 + $0xc8] sm:$0xf]
      %v395 = vld [vmem:[%s1 + $0xcc] sm:$0xf]
      %v396 = vld [vmem:[%s1 + $0xd0] sm:$0xf]
      %v397 = vld [vmem:[%s1 + $0xd4] sm:$0xf]
      %v398 = vld [vmem:[%s1 + $0xd8] sm:$0xf]
      %v399 = vld [vmem:[%s1 + $0xdc] sm:$0xf]
      %v400 = vld [vmem:[%s1 + $0xe0] sm:$0xf]
      %v401 = vld [vmem:[%s1 + $0xe4] sm:$0xf]
      %v402 = vld [vmem:[%s1 + $0xe8] sm:$0xf]
      %v403 = vld [vmem:[%s1 + $0xec] sm:$0xf]
      %v404 = vld [vmem:[%s1 + $0xf0] sm:$0xf]
      %v405 = vld [vmem:[%s1 + $0xf4] sm:$0xf]
      %v406 = vld [vmem:[%s1 + $0xf8] sm:$0xf]
      %v407 = vld [vmem:[%s1 + $0xfc] sm:$0xf]
      %v408 = vld [vmem:[%s2] sm:$0x1]
      %v410 = vlaneseq
      %v411 = vshrl.u32 %v410, 7
      %v412 = vsub.s32 0, %v411
      %v413 = vrot.slane %v408, %v412
      %v479 = vunpack.c.l.b16 %v280
      %v480 = vunpack.c.h.b16 %v280
      %v481 = vunpack.c.l.b16 %v281
      %v482 = vunpack.c.h.b16 %v281
      %v483 = vunpack.c.l.b16 %v282
      %v484 = vunpack.c.h.b16 %v282
      %v485 = vunpack.c.l.b16 %v283
      %v486 = vunpack.c.h.b16 %v283
      %v487 = vunpack.c.l.b16 %v284
      %v488 = vunpack.c.h.b16 %v284
      %v489 = vunpack.c.l.b16 %v285
      %v490 = vunpack.c.h.b16 %v285
      %v491 = vunpack.c.l.b16 %v286
      %v492 = vunpack.c.h.b16 %v286
      %v493 = vunpack.c.l.b16 %v287
      %v494 = vunpack.c.h.b16 %v287
      %v495 = vunpack.c.l.b16 %v288
      %v496 = vunpack.c.h.b16 %v288
      %v497 = vunpack.c.l.b16 %v289
      %v498 = vunpack.c.h.b16 %v289
      %v499 = vunpack.c.l.b16 %v290
      %v500 = vunpack.c.h.b16 %v290
      %v501 = vunpack.c.l.b16 %v291
      %v502 = vunpack.c.h.b16 %v291
      %v503 = vunpack.c.l.b16 %v292
      %v504 = vunpack.c.h.b16 %v292
      %v505 = vunpack.c.l.b16 %v293
      %v506 = vunpack.c.h.b16 %v293
      %v507 = vunpack.c.l.b16 %v294
      %v508 = vunpack.c.h.b16 %v294
      %v509 = vunpack.c.l.b16 %v295
      %v510 = vunpack.c.h.b16 %v295
      %v511 = vunpack.c.l.b16 %v296
      %v512 = vunpack.c.h.b16 %v296
      %v513 = vunpack.c.l.b16 %v297
      %v514 = vunpack.c.h.b16 %v297
      %v515 = vunpack.c.l.b16 %v298
      %v516 = vunpack.c.h.b16 %v298
      %v517 = vunpack.c.l.b16 %v299
      %v518 = vunpack.c.h.b16 %v299
      %v519 = vunpack.c.l.b16 %v300
      %v520 = vunpack.c.h.b16 %v300
      %v521 = vunpack.c.l.b16 %v301
      %v522 = vunpack.c.h.b16 %v301
      %v523 = vunpack.c.l.b16 %v302
      %v524 = vunpack.c.h.b16 %v302
      %v525 = vunpack.c.l.b16 %v303
      %v526 = vunpack.c.h.b16 %v303
      %v527 = vunpack.c.l.b16 %v304
      %v528 = vunpack.c.h.b16 %v304
      %v529 = vunpack.c.l.b16 %v305
      %v530 = vunpack.c.h.b16 %v305
      %v531 = vunpack.c.l.b16 %v306
      %v532 = vunpack.c.h.b16 %v306
      %v533 = vunpack.c.l.b16 %v307
      %v534 = vunpack.c.h.b16 %v307
      %v535 = vunpack.c.l.b16 %v308
      %v536 = vunpack.c.h.b16 %v308
      %v537 = vunpack.c.l.b16 %v309
      %v538 = vunpack.c.h.b16 %v309
      %v539 = vunpack.c.l.b16 %v310
      %v540 = vunpack.c.h.b16 %v310
      %v541 = vunpack.c.l.b16 %v311
      %v542 = vunpack.c.h.b16 %v311
      %v543 = vunpack.c.l.b16 %v312
      %v544 = vunpack.c.h.b16 %v312
      %v545 = vunpack.c.l.b16 %v313
      %v546 = vunpack.c.h.b16 %v313
      %v547 = vunpack.c.l.b16 %v314
      %v548 = vunpack.c.h.b16 %v314
      %v549 = vunpack.c.l.b16 %v315
      %v550 = vunpack.c.h.b16 %v315
      %v551 = vunpack.c.l.b16 %v316
      %v552 = vunpack.c.h.b16 %v316
      %v553 = vunpack.c.l.b16 %v317
      %v554 = vunpack.c.h.b16 %v317
      %v555 = vunpack.c.l.b16 %v318
      %v556 = vunpack.c.h.b16 %v318
      %v557 = vunpack.c.l.b16 %v319
      %v558 = vunpack.c.h.b16 %v319
      %v559 = vunpack.c.l.b16 %v320
      %v560 = vunpack.c.h.b16 %v320
      %v561 = vunpack.c.l.b16 %v321
      %v562 = vunpack.c.h.b16 %v321
      %v563 = vunpack.c.l.b16 %v322
      %v564 = vunpack.c.h.b16 %v322
      %v565 = vunpack.c.l.b16 %v323
      %v566 = vunpack.c.h.b16 %v323
      %v567 = vunpack.c.l.b16 %v324
      %v568 = vunpack.c.h.b16 %v324
      %v569 = vunpack.c.l.b16 %v325
      %v570 = vunpack.c.h.b16 %v325
      %v571 = vunpack.c.l.b16 %v326
      %v572 = vunpack.c.h.b16 %v326
      %v573 = vunpack.c.l.b16 %v327
      %v574 = vunpack.c.h.b16 %v327
      %v575 = vunpack.c.l.b16 %v328
      %v576 = vunpack.c.h.b16 %v328
      %v577 = vunpack.c.l.b16 %v329
      %v578 = vunpack.c.h.b16 %v329
      %v579 = vunpack.c.l.b16 %v330
      %v580 = vunpack.c.h.b16 %v330
      %v581 = vunpack.c.l.b16 %v331
      %v582 = vunpack.c.h.b16 %v331
      %v583 = vunpack.c.l.b16 %v332
      %v584 = vunpack.c.h.b16 %v332
      %v585 = vunpack.c.l.b16 %v333
      %v586 = vunpack.c.h.b16 %v333
      %v587 = vunpack.c.l.b16 %v334
      %v588 = vunpack.c.h.b16 %v334
      %v589 = vunpack.c.l.b16 %v335
      %v590 = vunpack.c.h.b16 %v335
      %v591 = vunpack.c.l.b16 %v336
      %v592 = vunpack.c.h.b16 %v336
      %v593 = vunpack.c.l.b16 %v337
      %v594 = vunpack.c.h.b16 %v337
      %v595 = vunpack.c.l.b16 %v338
      %v596 = vunpack.c.h.b16 %v338
      %v597 = vunpack.c.l.b16 %v339
      %v598 = vunpack.c.h.b16 %v339
      %v599 = vunpack.c.l.b16 %v340
      %v600 = vunpack.c.h.b16 %v340
      %v601 = vunpack.c.l.b16 %v341
      %v602 = vunpack.c.h.b16 %v341
      %v603 = vunpack.c.l.b16 %v342
      %v604 = vunpack.c.h.b16 %v342
      %v605 = vunpack.c.l.b16 %v343
      %v606 = vunpack.c.h.b16 %v343
      %v607 = vpack.c.b16 %v483, %v479
      %v608 = vpack.c.b16 %v484, %v480
      %v609 = vpack.c.b16 %v485, %v481
      %v610 = vpack.c.b16 %v486, %v482
      %v611 = vpack.c.b16 %v491, %v487
      %v612 = vpack.c.b16 %v492, %v488
      %v613 = vpack.c.b16 %v493, %v489
      %v614 = vpack.c.b16 %v494, %v490
      %v615 = vpack.c.b16 %v499, %v495
      %v616 = vpack.c.b16 %v500, %v496
      %v617 = vpack.c.b16 %v501, %v497
      %v618 = vpack.c.b16 %v502, %v498
      %v619 = vpack.c.b16 %v507, %v503
      %v620 = vpack.c.b16 %v508, %v504
      %v621 = vpack.c.b16 %v509, %v505
      %v622 = vpack.c.b16 %v510, %v506
      %v623 = vpack.c.b16 %v515, %v511
      %v624 = vpack.c.b16 %v516, %v512
      %v625 = vpack.c.b16 %v517, %v513
      %v626 = vpack.c.b16 %v518, %v514
      %v627 = vpack.c.b16 %v523, %v519
      %v628 = vpack.c.b16 %v524, %v520
      %v629 = vpack.c.b16 %v525, %v521
      %v630 = vpack.c.b16 %v526, %v522
      %v631 = vpack.c.b16 %v531, %v527
      %v632 = vpack.c.b16 %v532, %v528
      %v633 = vpack.c.b16 %v533, %v529
      %v634 = vpack.c.b16 %v534, %v530
      %v635 = vpack.c.b16 %v539, %v535
      %v636 = vpack.c.b16 %v540, %v536
      %v637 = vpack.c.b16 %v541, %v537
      %v638 = vpack.c.b16 %v542, %v538
      %v639 = vpack.c.b16 %v547, %v543
      %v640 = vpack.c.b16 %v548, %v544
      %v641 = vpack.c.b16 %v549, %v545
      %v642 = vpack.c.b16 %v550, %v546
      %v643 = vpack.c.b16 %v555, %v551
      %v644 = vpack.c.b16 %v556, %v552
      %v645 = vpack.c.b16 %v557, %v553
      %v646 = vpack.c.b16 %v558, %v554
      %v647 = vpack.c.b16 %v563, %v559
      %v648 = vpack.c.b16 %v564, %v560
      %v649 = vpack.c.b16 %v565, %v561
      %v650 = vpack.c.b16 %v566, %v562
      %v651 = vpack.c.b16 %v571, %v567
      %v652 = vpack.c.b16 %v572, %v568
      %v653 = vpack.c.b16 %v573, %v569
      %v654 = vpack.c.b16 %v574, %v570
      %v655 = vpack.c.b16 %v579, %v575
      %v656 = vpack.c.b16 %v580, %v576
      %v657 = vpack.c.b16 %v581, %v577
      %v658 = vpack.c.b16 %v582, %v578
      %v659 = vpack.c.b16 %v587, %v583
      %v660 = vpack.c.b16 %v588, %v584
      %v661 = vpack.c.b16 %v589, %v585
      %v662 = vpack.c.b16 %v590, %v586
      %v663 = vpack.c.b16 %v595, %v591
      %v664 = vpack.c.b16 %v596, %v592
      %v665 = vpack.c.b16 %v597, %v593
      %v666 = vpack.c.b16 %v598, %v594
      %v667 = vpack.c.b16 %v603, %v599
      %v668 = vpack.c.b16 %v604, %v600
      %v669 = vpack.c.b16 %v605, %v601
      %v670 = vpack.c.b16 %v606, %v602
      %v799 = vunpack.c.l.b16 %v344
      %v800 = vunpack.c.l.b16 %v345
      %v801 = vunpack.c.l.b16 %v346
      %v802 = vunpack.c.l.b16 %v347
      %v803 = vunpack.c.l.b16 %v348
      %v804 = vunpack.c.l.b16 %v349
      %v805 = vunpack.c.l.b16 %v350
      %v806 = vunpack.c.l.b16 %v351
      %v807 = vunpack.c.l.b16 %v352
      %v808 = vunpack.c.l.b16 %v353
      %v809 = vunpack.c.l.b16 %v354
      %v810 = vunpack.c.l.b16 %v355
      %v811 = vunpack.c.l.b16 %v356
      %v812 = vunpack.c.l.b16 %v357
      %v813 = vunpack.c.l.b16 %v358
      %v814 = vunpack.c.l.b16 %v359
      %v815 = vunpack.c.l.b16 %v360
      %v816 = vunpack.c.l.b16 %v361
      %v817 = vunpack.c.l.b16 %v362
      %v818 = vunpack.c.l.b16 %v363
      %v819 = vunpack.c.l.b16 %v364
      %v820 = vunpack.c.l.b16 %v365
      %v821 = vunpack.c.l.b16 %v366
      %v822 = vunpack.c.l.b16 %v367
      %v823 = vunpack.c.l.b16 %v368
      %v824 = vunpack.c.l.b16 %v369
      %v825 = vunpack.c.l.b16 %v370
      %v826 = vunpack.c.l.b16 %v371
      %v827 = vunpack.c.l.b16 %v372
      %v828 = vunpack.c.l.b16 %v373
      %v829 = vunpack.c.l.b16 %v374
      %v830 = vunpack.c.l.b16 %v375
      %v831 = vunpack.c.l.b16 %v376
      %v832 = vunpack.c.l.b16 %v377
      %v833 = vunpack.c.l.b16 %v378
      %v834 = vunpack.c.l.b16 %v379
      %v835 = vunpack.c.l.b16 %v380
      %v836 = vunpack.c.l.b16 %v381
      %v837 = vunpack.c.l.b16 %v382
      %v838 = vunpack.c.l.b16 %v383
      %v839 = vunpack.c.l.b16 %v384
      %v840 = vunpack.c.l.b16 %v385
      %v841 = vunpack.c.l.b16 %v386
      %v842 = vunpack.c.l.b16 %v387
      %v843 = vunpack.c.l.b16 %v388
      %v844 = vunpack.c.l.b16 %v389
      %v845 = vunpack.c.l.b16 %v390
      %v846 = vunpack.c.l.b16 %v391
      %v847 = vunpack.c.l.b16 %v392
      %v848 = vunpack.c.l.b16 %v393
      %v849 = vunpack.c.l.b16 %v394
      %v850 = vunpack.c.l.b16 %v395
      %v851 = vunpack.c.l.b16 %v396
      %v852 = vunpack.c.l.b16 %v397
      %v853 = vunpack.c.l.b16 %v398
      %v854 = vunpack.c.l.b16 %v399
      %v855 = vunpack.c.l.b16 %v400
      %v856 = vunpack.c.l.b16 %v401
      %v857 = vunpack.c.l.b16 %v402
      %v858 = vunpack.c.l.b16 %v403
      %v859 = vunpack.c.l.b16 %v404
      %v860 = vunpack.c.l.b16 %v405
      %v861 = vunpack.c.l.b16 %v406
      %v862 = vunpack.c.l.b16 %v407
      %v863 = vpack.c.b16 %v800, %v799
      %v864 = vpack.c.b16 %v802, %v801
      %v865 = vpack.c.b16 %v804, %v803
      %v866 = vpack.c.b16 %v806, %v805
      %v867 = vpack.c.b16 %v808, %v807
      %v868 = vpack.c.b16 %v810, %v809
      %v869 = vpack.c.b16 %v812, %v811
      %v870 = vpack.c.b16 %v814, %v813
      %v871 = vpack.c.b16 %v816, %v815
      %v872 = vpack.c.b16 %v818, %v817
      %v873 = vpack.c.b16 %v820, %v819
      %v874 = vpack.c.b16 %v822, %v821
      %v875 = vpack.c.b16 %v824, %v823
      %v876 = vpack.c.b16 %v826, %v825
      %v877 = vpack.c.b16 %v828, %v827
      %v878 = vpack.c.b16 %v830, %v829
      %v879 = vpack.c.b16 %v832, %v831
      %v880 = vpack.c.b16 %v834, %v833
      %v881 = vpack.c.b16 %v836, %v835
      %v882 = vpack.c.b16 %v838, %v837
      %v883 = vpack.c.b16 %v840, %v839
      %v884 = vpack.c.b16 %v842, %v841
      %v885 = vpack.c.b16 %v844, %v843
      %v886 = vpack.c.b16 %v846, %v845
      %v887 = vpack.c.b16 %v848, %v847
      %v888 = vpack.c.b16 %v850, %v849
      %v889 = vpack.c.b16 %v852, %v851
      %v890 = vpack.c.b16 %v854, %v853
      %v891 = vpack.c.b16 %v856, %v855
      %v892 = vpack.c.b16 %v858, %v857
      %v893 = vpack.c.b16 %v860, %v859
      %v894 = vpack.c.b16 %v862, %v861
      %927 = vmatprep.subr.bf16.mxu0 0
      %928 = vmatpush1.bf16.msra.mxu0 %v863
      %929 = vmatprep.subr.bf16.mxu0 0
      %930 = vmatpush1.bf16.msra.mxu0 %v864
      %931 = vmatprep.subr.bf16.mxu0 0
      %932 = vmatpush1.bf16.msra.mxu0 %v865
      %933 = vmatprep.subr.bf16.mxu0 0
      %934 = vmatpush1.bf16.msra.mxu0 %v866
      %935 = vmatprep.subr.bf16.mxu0 0
      %936 = vmatpush1.bf16.msra.mxu0 %v867
      %937 = vmatprep.subr.bf16.mxu0 0
      %938 = vmatpush1.bf16.msra.mxu0 %v868
      %939 = vmatprep.subr.bf16.mxu0 0
      %940 = vmatpush1.bf16.msra.mxu0 %v869
      %941 = vmatprep.subr.bf16.mxu0 0
      %942 = vmatpush1.bf16.msra.mxu0 %v870
      %943 = vmatprep.subr.bf16.mxu0 0
      %944 = vmatpush1.bf16.msra.mxu0 %v871
      %945 = vmatprep.subr.bf16.mxu0 0
      %946 = vmatpush1.bf16.msra.mxu0 %v872
      %947 = vmatprep.subr.bf16.mxu0 0
      %948 = vmatpush1.bf16.msra.mxu0 %v873
      %949 = vmatprep.subr.bf16.mxu0 0
      %950 = vmatpush1.bf16.msra.mxu0 %v874
      %951 = vmatprep.subr.bf16.mxu0 0
      %952 = vmatpush1.bf16.msra.mxu0 %v875
      %953 = vmatprep.subr.bf16.mxu0 0
      %954 = vmatpush1.bf16.msra.mxu0 %v876
      %955 = vmatprep.subr.bf16.mxu0 0
      %956 = vmatpush1.bf16.msra.mxu0 %v877
      %957 = vmatprep.subr.bf16.mxu0 0
      %958 = vmatpush1.bf16.msra.mxu0 %v878
      %959 = vmatprep.mubr.bf16.mxu0 %v608
      %960 = vmatmul.mubr.bf16.gmra.mrb[0].mxu0 %v607
      %v961 = vpop.f32.mrb[0].mxu0
      %v962 = vadd.f32 %v413, %v961
      %v963 = vpop.f32.mrb[0].mxu0
      %v964 = vpop.f32.mrb[0].mxu0
      %v965 = vadd.f32 %v413, %v964
      %v966 = vpop.f32.mrb[0].mxu0
      %967 = vmatprep.mubr.bf16.mxu0 %v612
      %968 = vmatmul.mubr.bf16.gmra.mrb[0].mxu0 %v611
      %v969 = vpop.f32.mrb[0].mxu0
      %v970 = vadd.f32 %v413, %v969
      %v971 = vpop.f32.mrb[0].mxu0
      %v972 = vpop.f32.mrb[0].mxu0
      %v973 = vadd.f32 %v413, %v972
      %v974 = vpop.f32.mrb[0].mxu0
      %975 = vmatprep.mubr.bf16.mxu0 %v616
      %976 = vmatmul.mubr.bf16.gmra.mrb[0].mxu0 %v615
      %v977 = vpop.f32.mrb[0].mxu0
      %v978 = vadd.f32 %v413, %v977
      %v979 = vpop.f32.mrb[0].mxu0
      %v980 = vpop.f32.mrb[0].mxu0
      %v981 = vadd.f32 %v413, %v980
      %v982 = vpop.f32.mrb[0].mxu0
      %983 = vmatprep.mubr.bf16.mxu0 %v620
      %984 = vmatmul.mubr.bf16.gmra.mrb[0].mxu0 %v619
      %v985 = vpop.f32.mrb[0].mxu0
      %v986 = vadd.f32 %v413, %v985
      %v987 = vpop.f32.mrb[0].mxu0
      %v988 = vpop.f32.mrb[0].mxu0
      %v989 = vadd.f32 %v413, %v988
      %v990 = vpop.f32.mrb[0].mxu0
      %991 = vmatprep.mubr.bf16.mxu0 %v624
      %992 = vmatmul.mubr.bf16.gmra.mrb[0].mxu0 %v623
      %v993 = vpop.f32.mrb[0].mxu0
      %v994 = vadd.f32 %v413, %v993
      %v995 = vpop.f32.mrb[0].mxu0
      %v996 = vpop.f32.mrb[0].mxu0
      %v997 = vadd.f32 %v413, %v996
      %v998 = vpop.f32.mrb[0].mxu0
      %999 = vmatprep.mubr.bf16.mxu0 %v628
      %1000 = vmatmul.mubr.bf16.gmra.mrb[0].mxu0 %v627
      %v1001 = vpop.f32.mrb[0].mxu0
      %v1002 = vadd.f32 %v413, %v1001
      %v1003 = vpop.f32.mrb[0].mxu0
      %v1004 = vpop.f32.mrb[0].mxu0
      %v1005 = vadd.f32 %v413, %v1004
      %v1006 = vpop.f32.mrb[0].mxu0
      %1007 = vmatprep.mubr.bf16.mxu0 %v632
      %1008 = vmatmul.mubr.bf16.gmra.mrb[0].mxu0 %v631
      %v1009 = vpop.f32.mrb[0].mxu0
      %v1010 = vadd.f32 %v413, %v1009
      %v1011 = vpop.f32.mrb[0].mxu0
      %v1012 = vpop.f32.mrb[0].mxu0
      %v1013 = vadd.f32 %v413, %v1012
      %v1014 = vpop.f32.mrb[0].mxu0
      %1015 = vmatprep.mubr.bf16.mxu0 %v636
      %1016 = vmatmul.mubr.bf16.gmra.mrb[0].mxu0 %v635
      %v1017 = vpop.f32.mrb[0].mxu0
      %v1018 = vadd.f32 %v413, %v1017
      %v1019 = vpop.f32.mrb[0].mxu0
      %v1020 = vpop.f32.mrb[0].mxu0
      %v1021 = vadd.f32 %v413, %v1020
      %v1022 = vpop.f32.mrb[0].mxu0
      %1023 = vmatprep.mubr.bf16.mxu0 %v640
      %1024 = vmatmul.mubr.bf16.gmra.mrb[0].mxu0 %v639
      %v1025 = vpop.f32.mrb[0].mxu0
      %v1026 = vadd.f32 %v413, %v1025
      %v1027 = vpop.f32.mrb[0].mxu0
      %v1028 = vpop.f32.mrb[0].mxu0
      %v1029 = vadd.f32 %v413, %v1028
      %v1030 = vpop.f32.mrb[0].mxu0
      %1031 = vmatprep.mubr.bf16.mxu0 %v644
      %1032 = vmatmul.mubr.bf16.gmra.mrb[0].mxu0 %v643
      %v1033 = vpop.f32.mrb[0].mxu0
      %v1034 = vadd.f32 %v413, %v1033
      %v1035 = vpop.f32.mrb[0].mxu0
      %v1036 = vpop.f32.mrb[0].mxu0
      %v1037 = vadd.f32 %v413, %v1036
      %v1038 = vpop.f32.mrb[0].mxu0
      %1039 = vmatprep.mubr.bf16.mxu0 %v648
      %1040 = vmatmul.mubr.bf16.gmra.mrb[0].mxu0 %v647
      %v1041 = vpop.f32.mrb[0].mxu0
      %v1042 = vadd.f32 %v413, %v1041
      %v1043 = vpop.f32.mrb[0].mxu0
      %v1044 = vpop.f32.mrb[0].mxu0
      %v1045 = vadd.f32 %v413, %v1044
      %v1046 = vpop.f32.mrb[0].mxu0
      %1047 = vmatprep.mubr.bf16.mxu0 %v652
      %1048 = vmatmul.mubr.bf16.gmra.mrb[0].mxu0 %v651
      %v1049 = vpop.f32.mrb[0].mxu0
      %v1050 = vadd.f32 %v413, %v1049
      %v1051 = vpop.f32.mrb[0].mxu0
      %v1052 = vpop.f32.mrb[0].mxu0
      %v1053 = vadd.f32 %v413, %v1052
      %v1054 = vpop.f32.mrb[0].mxu0
      %1055 = vmatprep.mubr.bf16.mxu0 %v656
      %1056 = vmatmul.mubr.bf16.gmra.mrb[0].mxu0 %v655
      %v1057 = vpop.f32.mrb[0].mxu0
      %v1058 = vadd.f32 %v413, %v1057
      %v1059 = vpop.f32.mrb[0].mxu0
      %v1060 = vpop.f32.mrb[0].mxu0
      %v1061 = vadd.f32 %v413, %v1060
      %v1062 = vpop.f32.mrb[0].mxu0
      %1063 = vmatprep.mubr.bf16.mxu0 %v660
      %1064 = vmatmul.mubr.bf16.gmra.mrb[0].mxu0 %v659
      %v1065 = vpop.f32.mrb[0].mxu0
      %v1066 = vadd.f32 %v413, %v1065
      %v1067 = vpop.f32.mrb[0].mxu0
      %v1068 = vpop.f32.mrb[0].mxu0
      %v1069 = vadd.f32 %v413, %v1068
      %v1070 = vpop.f32.mrb[0].mxu0
      %1071 = vmatprep.mubr.bf16.mxu0 %v664
      %1072 = vmatmul.mubr.bf16.gmra.mrb[0].mxu0 %v663
      %v1073 = vpop.f32.mrb[0].mxu0
      %v1074 = vadd.f32 %v413, %v1073
      %v1075 = vpop.f32.mrb[0].mxu0
      %v1076 = vpop.f32.mrb[0].mxu0
      %v1077 = vadd.f32 %v413, %v1076
      %v1078 = vpop.f32.mrb[0].mxu0
      %1079 = vmatprep.mubr.bf16.mxu0 %v668
      %1080 = vmatmul.mubr.bf16.gmra.mrb[0].mxu0 %v667
      %v1081 = vpop.f32.mrb[0].mxu0
      %v1082 = vadd.f32 %v413, %v1081
      %v1083 = vpop.f32.mrb[0].mxu0
      %v1084 = vpop.f32.mrb[0].mxu0
      %v1085 = vadd.f32 %v413, %v1084
      %v1086 = vpop.f32.mrb[0].mxu0
      %1087 = vdwg.mxu0
      %1088 = vmatprep.subr.bf16.mxu0 0
      %1089 = vmatpush1.bf16.msra.mxu0 %v879
      %1090 = vmatprep.subr.bf16.mxu0 0
      %1091 = vmatpush1.bf16.msra.mxu0 %v880
      %1092 = vmatprep.subr.bf16.mxu0 0
      %1093 = vmatpush1.bf16.msra.mxu0 %v881
      %1094 = vmatprep.subr.bf16.mxu0 0
      %1095 = vmatpush1.bf16.msra.mxu0 %v882
      %1096 = vmatprep.subr.bf16.mxu0 0
      %1097 = vmatpush1.bf16.msra.mxu0 %v883
      %1098 = vmatprep.subr.bf16.mxu0 0
      %1099 = vmatpush1.bf16.msra.mxu0 %v884
      %1100 = vmatprep.subr.bf16.mxu0 0
      %1101 = vmatpush1.bf16.msra.mxu0 %v885
      %1102 = vmatprep.subr.bf16.mxu0 0
      %1103 = vmatpush1.bf16.msra.mxu0 %v886
      %1104 = vmatprep.subr.bf16.mxu0 0
      %1105 = vmatpush1.bf16.msra.mxu0 %v887
      %1106 = vmatprep.subr.bf16.mxu0 0
      %1107 = vmatpush1.bf16.msra.mxu0 %v888
      %1108 = vmatprep.subr.bf16.mxu0 0
      %1109 = vmatpush1.bf16.msra.mxu0 %v889
      %1110 = vmatprep.subr.bf16.mxu0 0
      %1111 = vmatpush1.bf16.msra.mxu0 %v890
      %1112 = vmatprep.subr.bf16.mxu0 0
      %1113 = vmatpush1.bf16.msra.mxu0 %v891
      %1114 = vmatprep.subr.bf16.mxu0 0
      %1115 = vmatpush1.bf16.msra.mxu0 %v892
      %1116 = vmatprep.subr.bf16.mxu0 0
      %1117 = vmatpush1.bf16.msra.mxu0 %v893
      %1118 = vmatprep.subr.bf16.mxu0 0
      %1119 = vmatpush1.bf16.msra.mxu0 %v894
      %1120 = vmatprep.mubr.bf16.mxu0 %v610
      %1121 = vmatmul.mubr.bf16.gmra.mrb[0].mxu0 %v609
      %v1122 = vpop.f32.mrb[0].mxu0
      %v1123 = vadd.f32 %v962, %v1122
      %v1124 = vpop.f32.mrb[0].mxu0
      %v1125 = vpop.f32.mrb[0].mxu0
      %v1126 = vadd.f32 %v965, %v1125
      %v1127 = vpop.f32.mrb[0].mxu0
      %1128 = vmatprep.mubr.bf16.mxu0 %v614
      %1129 = vmatmul.mubr.bf16.gmra.mrb[0].mxu0 %v613
      %v1130 = vpop.f32.mrb[0].mxu0
      %v1131 = vadd.f32 %v970, %v1130
      %v1132 = vpop.f32.mrb[0].mxu0
      %v1133 = vpop.f32.mrb[0].mxu0
      %v1134 = vadd.f32 %v973, %v1133
      %v1135 = vpop.f32.mrb[0].mxu0
      %1136 = vmatprep.mubr.bf16.mxu0 %v618
      %1137 = vmatmul.mubr.bf16.gmra.mrb[0].mxu0 %v617
      %v1138 = vpop.f32.mrb[0].mxu0
      %v1139 = vadd.f32 %v978, %v1138
      %v1140 = vpop.f32.mrb[0].mxu0
      %v1141 = vpop.f32.mrb[0].mxu0
      %v1142 = vadd.f32 %v981, %v1141
      %v1143 = vpop.f32.mrb[0].mxu0
      %1144 = vmatprep.mubr.bf16.mxu0 %v622
      %1145 = vmatmul.mubr.bf16.gmra.mrb[0].mxu0 %v621
      %v1146 = vpop.f32.mrb[0].mxu0
      %v1147 = vadd.f32 %v986, %v1146
      %v1148 = vpop.f32.mrb[0].mxu0
      %v1149 = vpop.f32.mrb[0].mxu0
      %v1150 = vadd.f32 %v989, %v1149
      %v1151 = vpop.f32.mrb[0].mxu0
      %1152 = vmatprep.mubr.bf16.mxu0 %v626
      %1153 = vmatmul.mubr.bf16.gmra.mrb[0].mxu0 %v625
      %v1154 = vpop.f32.mrb[0].mxu0
      %v1155 = vadd.f32 %v994, %v1154
      %v1156 = vpop.f32.mrb[0].mxu0
      %v1157 = vpop.f32.mrb[0].mxu0
      %v1158 = vadd.f32 %v997, %v1157
      %v1159 = vpop.f32.mrb[0].mxu0
      %1160 = vmatprep.mubr.bf16.mxu0 %v630
      %1161 = vmatmul.mubr.bf16.gmra.mrb[0].mxu0 %v629
      %v1162 = vpop.f32.mrb[0].mxu0
      %v1163 = vadd.f32 %v1002, %v1162
      %v1164 = vpop.f32.mrb[0].mxu0
      %v1165 = vpop.f32.mrb[0].mxu0
      %v1166 = vadd.f32 %v1005, %v1165
      %v1167 = vpop.f32.mrb[0].mxu0
      %1168 = vmatprep.mubr.bf16.mxu0 %v634
      %1169 = vmatmul.mubr.bf16.gmra.mrb[0].mxu0 %v633
      %v1170 = vpop.f32.mrb[0].mxu0
      %v1171 = vadd.f32 %v1010, %v1170
      %v1172 = vpop.f32.mrb[0].mxu0
      %v1173 = vpop.f32.mrb[0].mxu0
      %v1174 = vadd.f32 %v1013, %v1173
      %v1175 = vpop.f32.mrb[0].mxu0
      %1176 = vmatprep.mubr.bf16.mxu0 %v638
      %1177 = vmatmul.mubr.bf16.gmra.mrb[0].mxu0 %v637
      %v1178 = vpop.f32.mrb[0].mxu0
      %v1179 = vadd.f32 %v1018, %v1178
      %v1180 = vpop.f32.mrb[0].mxu0
      %v1181 = vpop.f32.mrb[0].mxu0
      %v1182 = vadd.f32 %v1021, %v1181
      %v1183 = vpop.f32.mrb[0].mxu0
      %1184 = vmatprep.mubr.bf16.mxu0 %v642
      %1185 = vmatmul.mubr.bf16.gmra.mrb[0].mxu0 %v641
      %v1186 = vpop.f32.mrb[0].mxu0
      %v1187 = vadd.f32 %v1026, %v1186
      %v1188 = vpop.f32.mrb[0].mxu0
      %v1189 = vpop.f32.mrb[0].mxu0
      %v1190 = vadd.f32 %v1029, %v1189
      %v1191 = vpop.f32.mrb[0].mxu0
      %1192 = vmatprep.mubr.bf16.mxu0 %v646
      %1193 = vmatmul.mubr.bf16.gmra.mrb[0].mxu0 %v645
      %v1194 = vpop.f32.mrb[0].mxu0
      %v1195 = vadd.f32 %v1034, %v1194
      %v1196 = vpop.f32.mrb[0].mxu0
      %v1197 = vpop.f32.mrb[0].mxu0
      %v1198 = vadd.f32 %v1037, %v1197
      %v1199 = vpop.f32.mrb[0].mxu0
      %1200 = vmatprep.mubr.bf16.mxu0 %v650
      %1201 = vmatmul.mubr.bf16.gmra.mrb[0].mxu0 %v649
      %v1202 = vpop.f32.mrb[0].mxu0
      %v1203 = vadd.f32 %v1042, %v1202
      %v1204 = vpop.f32.mrb[0].mxu0
      %v1205 = vpop.f32.mrb[0].mxu0
      %v1206 = vadd.f32 %v1045, %v1205
      %v1207 = vpop.f32.mrb[0].mxu0
      %1208 = vmatprep.mubr.bf16.mxu0 %v654
      %1209 = vmatmul.mubr.bf16.gmra.mrb[0].mxu0 %v653
      %v1210 = vpop.f32.mrb[0].mxu0
      %v1211 = vadd.f32 %v1050, %v1210
      %v1212 = vpop.f32.mrb[0].mxu0
      %v1213 = vpop.f32.mrb[0].mxu0
      %v1214 = vadd.f32 %v1053, %v1213
      %v1215 = vpop.f32.mrb[0].mxu0
      %1216 = vmatprep.mubr.bf16.mxu0 %v658
      %1217 = vmatmul.mubr.bf16.gmra.mrb[0].mxu0 %v657
      %v1218 = vpop.f32.mrb[0].mxu0
      %v1219 = vadd.f32 %v1058, %v1218
      %v1220 = vpop.f32.mrb[0].mxu0
      %v1221 = vpop.f32.mrb[0].mxu0
      %v1222 = vadd.f32 %v1061, %v1221
      %v1223 = vpop.f32.mrb[0].mxu0
      %1224 = vmatprep.mubr.bf16.mxu0 %v662
      %1225 = vmatmul.mubr.bf16.gmra.mrb[0].mxu0 %v661
      %v1226 = vpop.f32.mrb[0].mxu0
      %v1227 = vadd.f32 %v1066, %v1226
      %v1228 = vpop.f32.mrb[0].mxu0
      %v1229 = vpop.f32.mrb[0].mxu0
      %v1230 = vadd.f32 %v1069, %v1229
      %v1231 = vpop.f32.mrb[0].mxu0
      %1232 = vmatprep.mubr.bf16.mxu0 %v666
      %1233 = vmatmul.mubr.bf16.gmra.mrb[0].mxu0 %v665
      %v1234 = vpop.f32.mrb[0].mxu0
      %v1235 = vadd.f32 %v1074, %v1234
      %v1236 = vpop.f32.mrb[0].mxu0
      %v1237 = vpop.f32.mrb[0].mxu0
      %v1238 = vadd.f32 %v1077, %v1237
      %v1239 = vpop.f32.mrb[0].mxu0
      %1240 = vmatprep.mubr.bf16.mxu0 %v670
      %1241 = vmatmul.mubr.bf16.gmra.mrb[0].mxu0 %v669
      %v1242 = vpop.f32.mrb[0].mxu0
      %v1243 = vadd.f32 %v1082, %v1242
      %v1244 = vpop.f32.mrb[0].mxu0
      %v1245 = vpop.f32.mrb[0].mxu0
      %v1246 = vadd.f32 %v1085, %v1245
      %v1247 = vpop.f32.mrb[0].mxu0
      %1248 = vdwg.mxu0
      %v1249 = vmax.f32 %v1123, 0.0
      %v1250 = vmax.f32 %v1126, 0.0
      %v1251 = vmax.f32 %v1131, 0.0
      %v1252 = vmax.f32 %v1134, 0.0
      %v1253 = vmax.f32 %v1139, 0.0
      %v1254 = vmax.f32 %v1142, 0.0
      %v1255 = vmax.f32 %v1147, 0.0
      %v1256 = vmax.f32 %v1150, 0.0
      %v1257 = vmax.f32 %v1155, 0.0
      %v1258 = vmax.f32 %v1158, 0.0
      %v1259 = vmax.f32 %v1163, 0.0
      %v1260 = vmax.f32 %v1166, 0.0
      %v1261 = vmax.f32 %v1171, 0.0
      %v1262 = vmax.f32 %v1174, 0.0
      %v1263 = vmax.f32 %v1179, 0.0
      %v1264 = vmax.f32 %v1182, 0.0
      %v1265 = vmax.f32 %v1187, 0.0
      %v1266 = vmax.f32 %v1190, 0.0
      %v1267 = vmax.f32 %v1195, 0.0
      %v1268 = vmax.f32 %v1198, 0.0
      %v1269 = vmax.f32 %v1203, 0.0
      %v1270 = vmax.f32 %v1206, 0.0
      %v1271 = vmax.f32 %v1211, 0.0
      %v1272 = vmax.f32 %v1214, 0.0
      %v1273 = vmax.f32 %v1219, 0.0
      %v1274 = vmax.f32 %v1222, 0.0
      %v1275 = vmax.f32 %v1227, 0.0
      %v1276 = vmax.f32 %v1230, 0.0
      %v1277 = vmax.f32 %v1235, 0.0
      %v1278 = vmax.f32 %v1238, 0.0
      %v1279 = vmax.f32 %v1243, 0.0
      %v1280 = vmax.f32 %v1246, 0.0
      %1281 = vst [vmem:[#allocation2] sm:$0xff] 0.0
      %1282 = vst [vmem:[#allocation2 + $0x8] sm:$0xff] 0.0
      %1283 = vst [vmem:[#allocation2 + $0x10] sm:$0xff] 0.0
      %1284 = vst [vmem:[#allocation2 + $0x18] sm:$0xff] 0.0
      %1285 = vst [vmem:[#allocation2 + $0x20] sm:$0xff] 0.0
      %1286 = vst [vmem:[#allocation2 + $0x28] sm:$0xff] 0.0
      %1287 = vst [vmem:[#allocation2 + $0x30] sm:$0xff] 0.0
      %1288 = vst [vmem:[#allocation2 + $0x38] sm:$0xff] 0.0
      %1289 = vst [vmem:[#allocation2 + $0x40] sm:$0xff] 0.0
      %1290 = vst [vmem:[#allocation2 + $0x48] sm:$0xff] 0.0
      %1291 = vst [vmem:[#allocation2 + $0x50] sm:$0xff] 0.0
      %1292 = vst [vmem:[#allocation2 + $0x58] sm:$0xff] 0.0
      %1293 = vst [vmem:[#allocation2 + $0x60] sm:$0xff] 0.0
      %1294 = vst [vmem:[#allocation2 + $0x68] sm:$0xff] 0.0
      %1295 = vst [vmem:[#allocation2 + $0x70] sm:$0xff] 0.0
      %1296 = vst [vmem:[#allocation2 + $0x78] sm:$0xff] 0.0
      %1297 = vst [vmem:[#allocation2 + $0x80] sm:$0xff] 0.0
      %1298 = vst [vmem:[#allocation2 + $0x88] sm:$0xff] 0.0
      %1299 = vst [vmem:[#allocation2 + $0x90] sm:$0xff] 0.0
      %1300 = vst [vmem:[#allocation2 + $0x98] sm:$0xff] 0.0
      %1301 = vst [vmem:[#allocation2 + $0xa0] sm:$0xff] 0.0
      %1302 = vst [vmem:[#allocation2 + $0xa8] sm:$0xff] 0.0
      %1303 = vst [vmem:[#allocation2 + $0xb0] sm:$0xff] 0.0
      %1304 = vst [vmem:[#allocation2 + $0xb8] sm:$0xff] 0.0
      %1305 = vst [vmem:[#allocation2 + $0xc0] sm:$0xff] 0.0
      %1306 = vst [vmem:[#allocation2 + $0xc8] sm:$0xff] 0.0
      %1307 = vst [vmem:[#allocation2 + $0xd0] sm:$0xff] 0.0
      %1308 = vst [vmem:[#allocation2 + $0xd8] sm:$0xff] 0.0
      %1309 = vst [vmem:[#allocation2 + $0xe0] sm:$0xff] 0.0
      %1310 = vst [vmem:[#allocation2 + $0xe8] sm:$0xff] 0.0
      %1311 = vst [vmem:[#allocation2 + $0xf0] sm:$0xff] 0.0
      %1312 = vst [vmem:[#allocation2 + $0xf8] sm:$0xff] 0.0
      %1313 = vst [vmem:[#allocation2 + $0x100] sm:$0xff] 0.0
      %1314 = vst [vmem:[#allocation2 + $0x108] sm:$0xff] 0.0
      %1315 = vst [vmem:[#allocation2 + $0x110] sm:$0xff] 0.0
      %1316 = vst [vmem:[#allocation2 + $0x118] sm:$0xff] 0.0
      %1317 = vst [vmem:[#allocation2 + $0x120] sm:$0xff] 0.0
      %1318 = vst [vmem:[#allocation2 + $0x128] sm:$0xff] 0.0
      %1319 = vst [vmem:[#allocation2 + $0x18] sm:$0xff] %v1249
      %1320 = vst [vmem:[#allocation2 + $0x20] sm:$0xff] %v1250
      %1321 = vst [vmem:[#allocation2 + $0x28] sm:$0xff] %v1251
      %1322 = vst [vmem:[#allocation2 + $0x30] sm:$0xff] %v1252
      %1323 = vst [vmem:[#allocation2 + $0x38] sm:$0xff] %v1253
      %1324 = vst [vmem:[#allocation2 + $0x40] sm:$0xff] %v1254
      %1325 = vst [vmem:[#allocation2 + $0x48] sm:$0xff] %v1255
      %1326 = vst [vmem:[#allocation2 + $0x50] sm:$0xff] %v1256
      %1327 = vst [vmem:[#allocation2 + $0x58] sm:$0xff] %v1257
      %1328 = vst [vmem:[#allocation2 + $0x60] sm:$0xff] %v1258
      %1329 = vst [vmem:[#allocation2 + $0x68] sm:$0xff] %v1259
      %1330 = vst [vmem:[#allocation2 + $0x70] sm:$0xff] %v1260
      %1331 = vst [vmem:[#allocation2 + $0x78] sm:$0xff] %v1261
      %1332 = vst [vmem:[#allocation2 + $0x80] sm:$0xff] %v1262
      %1333 = vst [vmem:[#allocation2 + $0x88] sm:$0xff] %v1263
      %1334 = vst [vmem:[#allocation2 + $0x90] sm:$0xff] %v1264
      %1335 = vst [vmem:[#allocation2 + $0x98] sm:$0xff] %v1265
      %1336 = vst [vmem:[#allocation2 + $0xa0] sm:$0xff] %v1266
      %1337 = vst [vmem:[#allocation2 + $0xa8] sm:$0xff] %v1267
      %1338 = vst [vmem:[#allocation2 + $0xb0] sm:$0xff] %v1268
      %1339 = vst [vmem:[#allocation2 + $0xb8] sm:$0xff] %v1269
      %1340 = vst [vmem:[#allocation2 + $0xc0] sm:$0xff] %v1270
      %1341 = vst [vmem:[#allocation2 + $0xc8] sm:$0xff] %v1271
      %1342 = vst [vmem:[#allocation2 + $0xd0] sm:$0xff] %v1272
      %1343 = vst [vmem:[#allocation2 + $0xd8] sm:$0xff] %v1273
      %1344 = vst [vmem:[#allocation2 + $0xe0] sm:$0xff] %v1274
      %1345 = vst [vmem:[#allocation2 + $0xe8] sm:$0xff] %v1275
      %1346 = vst [vmem:[#allocation2 + $0xf0] sm:$0xff] %v1276
      %1347 = vst [vmem:[#allocation2 + $0xf8] sm:$0xff] %v1277
      %1348 = vst [vmem:[#allocation2 + $0x100] sm:$0xff] %v1278
      %1349 = vst [vmem:[#allocation2 + $0x108] sm:$0xff] %v1279
      %1350 = vst [vmem:[#allocation2 + $0x110] sm:$0xff] %v1280
      %v1351 = vlaneseq
      %v1352 = vshrl.u32 %v1351, 7
      %v1353 = vadd.s32 %v1352, 8
      %v1354 = vadd.s32 %v1352, 16
      %v1355 = vadd.s32 %v1352, 24
      %v1356 = vadd.s32 %v1352, 32
      %v1357 = vadd.s32 %v1352, 40
      %v1358 = vadd.s32 %v1352, 48
      %v1359 = vadd.s32 %v1352, 56
      %v1360 = vadd.s32 %v1352, 64
      %v1361 = vadd.s32 %v1352, 72
      %v1362 = vadd.s32 %v1352, 80
      %v1363 = vadd.s32 %v1352, 88
      %v1364 = vadd.s32 %v1352, 96
      %v1365 = vadd.s32 %v1352, 104
      %v1366 = vadd.s32 %v1352, 112
      %v1367 = vadd.s32 %v1352, 120
      %v1368 = vadd.s32 %v1352, 128
      %v1369 = vadd.s32 %v1352, 136
      %v1370 = vadd.s32 %v1352, 144
      %v1371 = vadd.s32 %v1352, 152
      %v1372 = vadd.s32 %v1352, 160
      %v1373 = vadd.s32 %v1352, 168
      %v1374 = vadd.s32 %v1352, 176
      %v1375 = vadd.s32 %v1352, 184
      %v1376 = vadd.s32 %v1352, 192
      %v1377 = vadd.s32 %v1352, 200
      %v1378 = vadd.s32 %v1352, 208
      %v1379 = vadd.s32 %v1352, 216
      %v1380 = vadd.s32 %v1352, 224
      %v1381 = vadd.s32 %v1352, 232
      %v1382 = vadd.s32 %v1352, 240
      %v1383 = vadd.s32 %v1352, 248
      %vm1384 = vcmp.lt.s32.totalorder %v1352, 0
      %v1385 = vsub.s32 0, %v1352
      %v1386 = vsel %vm1384, %v1385, %v1352
      %v1387 = vshrl.u32 %v1386, 4
      %v1388 = vand.u32 %v1386, 15
      %v1389 = vsub.s32 0, %v1388
      %v1390 = vsel %vm1384, %v1389, %v1388
      %vm1391 = vcmp.lt.s32.totalorder %v1353, 0
      %v1392 = vsub.s32 0, %v1353
      %v1393 = vsel %vm1391, %v1392, %v1353
      %v1394 = vshrl.u32 %v1393, 4
      %v1395 = vand.u32 %v1393, 15
      %v1396 = vsub.s32 0, %v1395
      %v1397 = vsel %vm1391, %v1396, %v1395
      %vm1398 = vcmp.lt.s32.totalorder %v1354, 0
      %v1399 = vsub.s32 0, %v1354
      %v1400 = vsel %vm1398, %v1399, %v1354
      %v1401 = vshrl.u32 %v1400, 4
      %v1402 = vand.u32 %v1400, 15
      %v1403 = vsub.s32 0, %v1402
      %v1404 = vsel %vm1398, %v1403, %v1402
      %vm1405 = vcmp.lt.s32.totalorder %v1355, 0
      %v1406 = vsub.s32 0, %v1355
      %v1407 = vsel %vm1405, %v1406, %v1355
      %v1408 = vshrl.u32 %v1407, 4
      %v1409 = vand.u32 %v1407, 15
      %v1410 = vsub.s32 0, %v1409
      %v1411 = vsel %vm1405, %v1410, %v1409
      %vm1412 = vcmp.lt.s32.totalorder %v1356, 0
      %v1413 = vsub.s32 0, %v1356
      %v1414 = vsel %vm1412, %v1413, %v1356
      %v1415 = vshrl.u32 %v1414, 4
      %v1416 = vand.u32 %v1414, 15
      %v1417 = vsub.s32 0, %v1416
      %v1418 = vsel %vm1412, %v1417, %v1416
      %vm1419 = vcmp.lt.s32.totalorder %v1357, 0
      %v1420 = vsub.s32 0, %v1357
      %v1421 = vsel %vm1419, %v1420, %v1357
      %v1422 = vshrl.u32 %v1421, 4
      %v1423 = vand.u32 %v1421, 15
      %v1424 = vsub.s32 0, %v1423
      %v1425 = vsel %vm1419, %v1424, %v1423
      %vm1426 = vcmp.lt.s32.totalorder %v1358, 0
      %v1427 = vsub.s32 0, %v1358
      %v1428 = vsel %vm1426, %v1427, %v1358
      %v1429 = vshrl.u32 %v1428, 4
      %v1430 = vand.u32 %v1428, 15
      %v1431 = vsub.s32 0, %v1430
      %v1432 = vsel %vm1426, %v1431, %v1430
      %vm1433 = vcmp.lt.s32.totalorder %v1359, 0
      %v1434 = vsub.s32 0, %v1359
      %v1435 = vsel %vm1433, %v1434, %v1359
      %v1436 = vshrl.u32 %v1435, 4
      %v1437 = vand.u32 %v1435, 15
      %v1438 = vsub.s32 0, %v1437
      %v1439 = vsel %vm1433, %v1438, %v1437
      %vm1440 = vcmp.lt.s32.totalorder %v1360, 0
      %v1441 = vsub.s32 0, %v1360
      %v1442 = vsel %vm1440, %v1441, %v1360
      %v1443 = vshrl.u32 %v1442, 4
      %v1444 = vand.u32 %v1442, 15
      %v1445 = vsub.s32 0, %v1444
      %v1446 = vsel %vm1440, %v1445, %v1444
      %vm1447 = vcmp.lt.s32.totalorder %v1361, 0
      %v1448 = vsub.s32 0, %v1361
      %v1449 = vsel %vm1447, %v1448, %v1361
      %v1450 = vshrl.u32 %v1449, 4
      %v1451 = vand.u32 %v1449, 15
      %v1452 = vsub.s32 0, %v1451
      %v1453 = vsel %vm1447, %v1452, %v1451
      %vm1454 = vcmp.lt.s32.totalorder %v1362, 0
      %v1455 = vsub.s32 0, %v1362
      %v1456 = vsel %vm1454, %v1455, %v1362
      %v1457 = vshrl.u32 %v1456, 4
      %v1458 = vand.u32 %v1456, 15
      %v1459 = vsub.s32 0, %v1458
      %v1460 = vsel %vm1454, %v1459, %v1458
      %vm1461 = vcmp.lt.s32.totalorder %v1363, 0
      %v1462 = vsub.s32 0, %v1363
      %v1463 = vsel %vm1461, %v1462, %v1363
      %v1464 = vshrl.u32 %v1463, 4
      %v1465 = vand.u32 %v1463, 15
      %v1466 = vsub.s32 0, %v1465
      %v1467 = vsel %vm1461, %v1466, %v1465
      %vm1468 = vcmp.lt.s32.totalorder %v1364, 0
      %v1469 = vsub.s32 0, %v1364
      %v1470 = vsel %vm1468, %v1469, %v1364
      %v1471 = vshrl.u32 %v1470, 4
      %v1472 = vand.u32 %v1470, 15
      %v1473 = vsub.s32 0, %v1472
      %v1474 = vsel %vm1468, %v1473, %v1472
      %vm1475 = vcmp.lt.s32.totalorder %v1365, 0
      %v1476 = vsub.s32 0, %v1365
      %v1477 = vsel %vm1475, %v1476, %v1365
      %v1478 = vshrl.u32 %v1477, 4
      %v1479 = vand.u32 %v1477, 15
      %v1480 = vsub.s32 0, %v1479
      %v1481 = vsel %vm1475, %v1480, %v1479
      %vm1482 = vcmp.lt.s32.totalorder %v1366, 0
      %v1483 = vsub.s32 0, %v1366
      %v1484 = vsel %vm1482, %v1483, %v1366
      %v1485 = vshrl.u32 %v1484, 4
      %v1486 = vand.u32 %v1484, 15
      %v1487 = vsub.s32 0, %v1486
      %v1488 = vsel %vm1482, %v1487, %v1486
      %vm1489 = vcmp.lt.s32.totalorder %v1367, 0
      %v1490 = vsub.s32 0, %v1367
      %v1491 = vsel %vm1489, %v1490, %v1367
      %v1492 = vshrl.u32 %v1491, 4
      %v1493 = vand.u32 %v1491, 15
      %v1494 = vsub.s32 0, %v1493
      %v1495 = vsel %vm1489, %v1494, %v1493
      %vm1496 = vcmp.lt.s32.totalorder %v1368, 0
      %v1497 = vsub.s32 0, %v1368
      %v1498 = vsel %vm1496, %v1497, %v1368
      %v1499 = vshrl.u32 %v1498, 4
      %v1500 = vand.u32 %v1498, 15
      %v1501 = vsub.s32 0, %v1500
      %v1502 = vsel %vm1496, %v1501, %v1500
      %vm1503 = vcmp.lt.s32.totalorder %v1369, 0
      %v1504 = vsub.s32 0, %v1369
      %v1505 = vsel %vm1503, %v1504, %v1369
      %v1506 = vshrl.u32 %v1505, 4
      %v1507 = vand.u32 %v1505, 15
      %v1508 = vsub.s32 0, %v1507
      %v1509 = vsel %vm1503, %v1508, %v1507
      %vm1510 = vcmp.lt.s32.totalorder %v1370, 0
      %v1511 = vsub.s32 0, %v1370
      %v1512 = vsel %vm1510, %v1511, %v1370
      %v1513 = vshrl.u32 %v1512, 4
      %v1514 = vand.u32 %v1512, 15
      %v1515 = vsub.s32 0, %v1514
      %v1516 = vsel %vm1510, %v1515, %v1514
      %vm1517 = vcmp.lt.s32.totalorder %v1371, 0
      %v1518 = vsub.s32 0, %v1371
      %v1519 = vsel %vm1517, %v1518, %v1371
      %v1520 = vshrl.u32 %v1519, 4
      %v1521 = vand.u32 %v1519, 15
      %v1522 = vsub.s32 0, %v1521
      %v1523 = vsel %vm1517, %v1522, %v1521
      %vm1524 = vcmp.lt.s32.totalorder %v1372, 0
      %v1525 = vsub.s32 0, %v1372
      %v1526 = vsel %vm1524, %v1525, %v1372
      %v1527 = vshrl.u32 %v1526, 4
      %v1528 = vand.u32 %v1526, 15
      %v1529 = vsub.s32 0, %v1528
      %v1530 = vsel %vm1524, %v1529, %v1528
      %vm1531 = vcmp.lt.s32.totalorder %v1373, 0
      %v1532 = vsub.s32 0, %v1373
      %v1533 = vsel %vm1531, %v1532, %v1373
      %v1534 = vshrl.u32 %v1533, 4
      %v1535 = vand.u32 %v1533, 15
      %v1536 = vsub.s32 0, %v1535
      %v1537 = vsel %vm1531, %v1536, %v1535
      %vm1538 = vcmp.lt.s32.totalorder %v1374, 0
      %v1539 = vsub.s32 0, %v1374
      %v1540 = vsel %vm1538, %v1539, %v1374
      %v1541 = vshrl.u32 %v1540, 4
      %v1542 = vand.u32 %v1540, 15
      %v1543 = vsub.s32 0, %v1542
      %v1544 = vsel %vm1538, %v1543, %v1542
      %vm1545 = vcmp.lt.s32.totalorder %v1375, 0
      %v1546 = vsub.s32 0, %v1375
      %v1547 = vsel %vm1545, %v1546, %v1375
      %v1548 = vshrl.u32 %v1547, 4
      %v1549 = vand.u32 %v1547, 15
      %v1550 = vsub.s32 0, %v1549
      %v1551 = vsel %vm1545, %v1550, %v1549
      %vm1552 = vcmp.lt.s32.totalorder %v1376, 0
      %v1553 = vsub.s32 0, %v1376
      %v1554 = vsel %vm1552, %v1553, %v1376
      %v1555 = vshrl.u32 %v1554, 4
      %v1556 = vand.u32 %v1554, 15
      %v1557 = vsub.s32 0, %v1556
      %v1558 = vsel %vm1552, %v1557, %v1556
      %vm1559 = vcmp.lt.s32.totalorder %v1377, 0
      %v1560 = vsub.s32 0, %v1377
      %v1561 = vsel %vm1559, %v1560, %v1377
      %v1562 = vshrl.u32 %v1561, 4
      %v1563 = vand.u32 %v1561, 15
      %v1564 = vsub.s32 0, %v1563
      %v1565 = vsel %vm1559, %v1564, %v1563
      %vm1566 = vcmp.lt.s32.totalorder %v1378, 0
      %v1567 = vsub.s32 0, %v1378
      %v1568 = vsel %vm1566, %v1567, %v1378
      %v1569 = vshrl.u32 %v1568, 4
      %v1570 = vand.u32 %v1568, 15
      %v1571 = vsub.s32 0, %v1570
      %v1572 = vsel %vm1566, %v1571, %v1570
      %vm1573 = vcmp.lt.s32.totalorder %v1379, 0
      %v1574 = vsub.s32 0, %v1379
      %v1575 = vsel %vm1573, %v1574, %v1379
      %v1576 = vshrl.u32 %v1575, 4
      %v1577 = vand.u32 %v1575, 15
      %v1578 = vsub.s32 0, %v1577
      %v1579 = vsel %vm1573, %v1578, %v1577
      %vm1580 = vcmp.lt.s32.totalorder %v1380, 0
      %v1581 = vsub.s32 0, %v1380
      %v1582 = vsel %vm1580, %v1581, %v1380
      %v1583 = vshrl.u32 %v1582, 4
      %v1584 = vand.u32 %v1582, 15
      %v1585 = vsub.s32 0, %v1584
      %v1586 = vsel %vm1580, %v1585, %v1584
      %vm1587 = vcmp.lt.s32.totalorder %v1381, 0
      %v1588 = vsub.s32 0, %v1381
      %v1589 = vsel %vm1587, %v1588, %v1381
      %v1590 = vshrl.u32 %v1589, 4
      %v1591 = vand.u32 %v1589, 15
      %v1592 = vsub.s32 0, %v1591
      %v1593 = vsel %vm1587, %v1592, %v1591
      %vm1594 = vcmp.lt.s32.totalorder %v1382, 0
      %v1595 = vsub.s32 0, %v1382
      %v1596 = vsel %vm1594, %v1595, %v1382
      %v1597 = vshrl.u32 %v1596, 4
      %v1598 = vand.u32 %v1596, 15
      %v1599 = vsub.s32 0, %v1598
      %v1600 = vsel %vm1594, %v1599, %v1598
      %vm1601 = vcmp.lt.s32.totalorder %v1383, 0
      %v1602 = vsub.s32 0, %v1383
      %v1603 = vsel %vm1601, %v1602, %v1383
      %v1604 = vshrl.u32 %v1603, 4
      %v1605 = vand.u32 %v1603, 15
      %v1606 = vsub.s32 0, %v1605
      %v1607 = vsel %vm1601, %v1606, %v1605
      %vm1608 = vcmp.ne.s32.totalorder %v1390, 0
      %vm1609 = vcmp.ne.s32.totalorder %v1397, 0
      %vm1610 = vcmp.ne.s32.totalorder %v1404, 0
      %vm1611 = vcmp.ne.s32.totalorder %v1411, 0
      %vm1612 = vcmp.ne.s32.totalorder %v1418, 0
      %vm1613 = vcmp.ne.s32.totalorder %v1425, 0
      %vm1614 = vcmp.ne.s32.totalorder %v1432, 0
      %vm1615 = vcmp.ne.s32.totalorder %v1439, 0
      %vm1616 = vcmp.ne.s32.totalorder %v1446, 0
      %vm1617 = vcmp.ne.s32.totalorder %v1453, 0
      %vm1618 = vcmp.ne.s32.totalorder %v1460, 0
      %vm1619 = vcmp.ne.s32.totalorder %v1467, 0
      %vm1620 = vcmp.ne.s32.totalorder %v1474, 0
      %vm1621 = vcmp.ne.s32.totalorder %v1481, 0
      %vm1622 = vcmp.ne.s32.totalorder %v1488, 0
      %vm1623 = vcmp.ne.s32.totalorder %v1495, 0
      %vm1624 = vcmp.ne.s32.totalorder %v1502, 0
      %vm1625 = vcmp.ne.s32.totalorder %v1509, 0
      %vm1626 = vcmp.ne.s32.totalorder %v1516, 0
      %vm1627 = vcmp.ne.s32.totalorder %v1523, 0
      %vm1628 = vcmp.ne.s32.totalorder %v1530, 0
      %vm1629 = vcmp.ne.s32.totalorder %v1537, 0
      %vm1630 = vcmp.ne.s32.totalorder %v1544, 0
      %vm1631 = vcmp.ne.s32.totalorder %v1551, 0
      %vm1632 = vcmp.ne.s32.totalorder %v1558, 0
      %vm1633 = vcmp.ne.s32.totalorder %v1565, 0
      %vm1634 = vcmp.ne.s32.totalorder %v1572, 0
      %vm1635 = vcmp.ne.s32.totalorder %v1579, 0
      %vm1636 = vcmp.ne.s32.totalorder %v1586, 0
      %vm1637 = vcmp.ne.s32.totalorder %v1593, 0
      %vm1638 = vcmp.ne.s32.totalorder %v1600, 0
      %vm1639 = vcmp.ne.s32.totalorder %v1607, 0
      %vm1640 = vcmp.lt.s32.totalorder %v1390, 0
      %vm1641 = vcmp.lt.s32.totalorder %v1397, 0
      %vm1642 = vcmp.lt.s32.totalorder %v1404, 0
      %vm1643 = vcmp.lt.s32.totalorder %v1411, 0
      %vm1644 = vcmp.lt.s32.totalorder %v1418, 0
      %vm1645 = vcmp.lt.s32.totalorder %v1425, 0
      %vm1646 = vcmp.lt.s32.totalorder %v1432, 0
      %vm1647 = vcmp.lt.s32.totalorder %v1439, 0
      %vm1648 = vcmp.lt.s32.totalorder %v1446, 0
      %vm1649 = vcmp.lt.s32.totalorder %v1453, 0
      %vm1650 = vcmp.lt.s32.totalorder %v1460, 0
      %vm1651 = vcmp.lt.s32.totalorder %v1467, 0
      %vm1652 = vcmp.lt.s32.totalorder %v1474, 0
      %vm1653 = vcmp.lt.s32.totalorder %v1481, 0
      %vm1654 = vcmp.lt.s32.totalorder %v1488, 0
      %vm1655 = vcmp.lt.s32.totalorder %v1495, 0
      %vm1656 = vcmp.lt.s32.totalorder %v1502, 0
      %vm1657 = vcmp.lt.s32.totalorder %v1509, 0
      %vm1658 = vcmp.lt.s32.totalorder %v1516, 0
      %vm1659 = vcmp.lt.s32.totalorder %v1523, 0
      %vm1660 = vcmp.lt.s32.totalorder %v1530, 0
      %vm1661 = vcmp.lt.s32.totalorder %v1537, 0
      %vm1662 = vcmp.lt.s32.totalorder %v1544, 0
      %vm1663 = vcmp.lt.s32.totalorder %v1551, 0
      %vm1664 = vcmp.lt.s32.totalorder %v1558, 0
      %vm1665 = vcmp.lt.s32.totalorder %v1565, 0
      %vm1666 = vcmp.lt.s32.totalorder %v1572, 0
      %vm1667 = vcmp.lt.s32.totalorder %v1579, 0
      %vm1668 = vcmp.lt.s32.totalorder %v1586, 0
      %vm1669 = vcmp.lt.s32.totalorder %v1593, 0
      %vm1670 = vcmp.lt.s32.totalorder %v1600, 0
      %vm1671 = vcmp.lt.s32.totalorder %v1607, 0
      %vm1672 = vmand %vm1640, %vm1608
      %vm1673 = vmand %vm1641, %vm1609
      %vm1674 = vmand %vm1642, %vm1610
      %vm1675 = vmand %vm1643, %vm1611
      %vm1676 = vmand %vm1644, %vm1612
      %vm1677 = vmand %vm1645, %vm1613
      %vm1678 = vmand %vm1646, %vm1614
      %vm1679 = vmand %vm1647, %vm1615
      %vm1680 = vmand %vm1648, %vm1616
      %vm1681 = vmand %vm1649, %vm1617
      %vm1682 = vmand %vm1650, %vm1618
      %vm1683 = vmand %vm1651, %vm1619
      %vm1684 = vmand %vm1652, %vm1620
      %vm1685 = vmand %vm1653, %vm1621
      %vm1686 = vmand %vm1654, %vm1622
      %vm1687 = vmand %vm1655, %vm1623
      %vm1688 = vmand %vm1656, %vm1624
      %vm1689 = vmand %vm1657, %vm1625
      %vm1690 = vmand %vm1658, %vm1626
      %vm1691 = vmand %vm1659, %vm1627
      %vm1692 = vmand %vm1660, %vm1628
      %vm1693 = vmand %vm1661, %vm1629
      %vm1694 = vmand %vm1662, %vm1630
      %vm1695 = vmand %vm1663, %vm1631
      %vm1696 = vmand %vm1664, %vm1632
      %vm1697 = vmand %vm1665, %vm1633
      %vm1698 = vmand %vm1666, %vm1634
      %vm1699 = vmand %vm1667, %vm1635
      %vm1700 = vmand %vm1668, %vm1636
      %vm1701 = vmand %vm1669, %vm1637
      %vm1702 = vmand %vm1670, %vm1638
      %vm1703 = vmand %vm1671, %vm1639
      %v1704 = vadd.s32 %v1390, 16
      %v1705 = vadd.s32 %v1397, 16
      %v1706 = vadd.s32 %v1404, 16
      %v1707 = vadd.s32 %v1411, 16
      %v1708 = vadd.s32 %v1418, 16
      %v1709 = vadd.s32 %v1425, 16
      %v1710 = vadd.s32 %v1432, 16
      %v1711 = vadd.s32 %v1439, 16
      %v1712 = vadd.s32 %v1446, 16
      %v1713 = vadd.s32 %v1453, 16
      %v1714 = vadd.s32 %v1460, 16
      %v1715 = vadd.s32 %v1467, 16
      %v1716 = vadd.s32 %v1474, 16
      %v1717 = vadd.s32 %v1481, 16
      %v1718 = vadd.s32 %v1488, 16
      %v1719 = vadd.s32 %v1495, 16
      %v1720 = vadd.s32 %v1502, 16
      %v1721 = vadd.s32 %v1509, 16
      %v1722 = vadd.s32 %v1516, 16
      %v1723 = vadd.s32 %v1523, 16
      %v1724 = vadd.s32 %v1530, 16
      %v1725 = vadd.s32 %v1537, 16
      %v1726 = vadd.s32 %v1544, 16
      %v1727 = vadd.s32 %v1551, 16
      %v1728 = vadd.s32 %v1558, 16
      %v1729 = vadd.s32 %v1565, 16
      %v1730 = vadd.s32 %v1572, 16
      %v1731 = vadd.s32 %v1579, 16
      %v1732 = vadd.s32 %v1586, 16
      %v1733 = vadd.s32 %v1593, 16
      %v1734 = vadd.s32 %v1600, 16
      %v1735 = vadd.s32 %v1607, 16
      %v1736 = vsel %vm1672, %v1704, %v1390
      %v1737 = vsel %vm1673, %v1705, %v1397
      %v1738 = vsel %vm1674, %v1706, %v1404
      %v1739 = vsel %vm1675, %v1707, %v1411
      %v1740 = vsel %vm1676, %v1708, %v1418
      %v1741 = vsel %vm1677, %v1709, %v1425
      %v1742 = vsel %vm1678, %v1710, %v1432
      %v1743 = vsel %vm1679, %v1711, %v1439
      %v1744 = vsel %vm1680, %v1712, %v1446
      %v1745 = vsel %vm1681, %v1713, %v1453
      %v1746 = vsel %vm1682, %v1714, %v1460
      %v1747 = vsel %vm1683, %v1715, %v1467
      %v1748 = vsel %vm1684, %v1716, %v1474
      %v1749 = vsel %vm1685, %v1717, %v1481
      %v1750 = vsel %vm1686, %v1718, %v1488
      %v1751 = vsel %vm1687, %v1719, %v1495
      %v1752 = vsel %vm1688, %v1720, %v1502
      %v1753 = vsel %vm1689, %v1721, %v1509
      %v1754 = vsel %vm1690, %v1722, %v1516
      %v1755 = vsel %vm1691, %v1723, %v1523
      %v1756 = vsel %vm1692, %v1724, %v1530
      %v1757 = vsel %vm1693, %v1725, %v1537
      %v1758 = vsel %vm1694, %v1726, %v1544
      %v1759 = vsel %vm1695, %v1727, %v1551
      %v1760 = vsel %vm1696, %v1728, %v1558
      %v1761 = vsel %vm1697, %v1729, %v1565
      %v1762 = vsel %vm1698, %v1730, %v1572
      %v1763 = vsel %vm1699, %v1731, %v1579
      %v1764 = vsel %vm1700, %v1732, %v1586
      %v1765 = vsel %vm1701, %v1733, %v1593
      %v1766 = vsel %vm1702, %v1734, %v1600
      %v1767 = vsel %vm1703, %v1735, %v1607
      %v1768 = vld [vmem:[#allocation2 + $0x7] sm:$0xff]
      %v1769 = vld [vmem:[#allocation2 + $0xf] sm:$0xff]
      %v1770 = vld [vmem:[#allocation2 + $0x17] sm:$0xff]
      %v1771 = vld [vmem:[#allocation2 + $0x1f] sm:$0xff]
      %v1772 = vld [vmem:[#allocation2 + $0x27] sm:$0xff]
      %v1773 = vld [vmem:[#allocation2 + $0x2f] sm:$0xff]
      %v1774 = vld [vmem:[#allocation2 + $0x37] sm:$0xff]
      %v1775 = vld [vmem:[#allocation2 + $0x3f] sm:$0xff]
      %v1776 = vld [vmem:[#allocation2 + $0x47] sm:$0xff]
      %v1777 = vld [vmem:[#allocation2 + $0x4f] sm:$0xff]
      %v1778 = vld [vmem:[#allocation2 + $0x57] sm:$0xff]
      %v1779 = vld [vmem:[#allocation2 + $0x5f] sm:$0xff]
      %v1780 = vld [vmem:[#allocation2 + $0x67] sm:$0xff]
      %v1781 = vld [vmem:[#allocation2 + $0x6f] sm:$0xff]
      %v1782 = vld [vmem:[#allocation2 + $0x77] sm:$0xff]
      %v1783 = vld [vmem:[#allocation2 + $0x7f] sm:$0xff]
      %v1784 = vld [vmem:[#allocation2 + $0x87] sm:$0xff]
      %v1785 = vld [vmem:[#allocation2 + $0x8f] sm:$0xff]
      %v1786 = vld [vmem:[#allocation2 + $0x97] sm:$0xff]
      %v1787 = vld [vmem:[#allocation2 + $0x9f] sm:$0xff]
      %v1788 = vld [vmem:[#allocation2 + $0xa7] sm:$0xff]
      %v1789 = vld [vmem:[#allocation2 + $0xaf] sm:$0xff]
      %v1790 = vld [vmem:[#allocation2 + $0xb7] sm:$0xff]
      %v1791 = vld [vmem:[#allocation2 + $0xbf] sm:$0xff]
      %v1792 = vld [vmem:[#allocation2 + $0xc7] sm:$0xff]
      %v1793 = vld [vmem:[#allocation2 + $0xcf] sm:$0xff]
      %v1794 = vld [vmem:[#allocation2 + $0xd7] sm:$0xff]
      %v1795 = vld [vmem:[#allocation2 + $0xdf] sm:$0xff]
      %v1796 = vld [vmem:[#allocation2 + $0xe7] sm:$0xff]
      %v1797 = vld [vmem:[#allocation2 + $0xef] sm:$0xff]
      %v1798 = vld [vmem:[#allocation2 + $0xf7] sm:$0xff]
      %v1799 = vld [vmem:[#allocation2 + $0xff] sm:$0xff]
      %vm1800 = vcmp.ge.s32.totalorder %v1736, 1
      %vm1801 = vcmp.ge.s32.totalorder %v1737, 1
      %vm1802 = vcmp.ge.s32.totalorder %v1738, 1
      %vm1803 = vcmp.ge.s32.totalorder %v1739, 1
      %vm1804 = vcmp.ge.s32.totalorder %v1740, 1
      %vm1805 = vcmp.ge.s32.totalorder %v1741, 1
      %vm1806 = vcmp.ge.s32.totalorder %v1742, 1
      %vm1807 = vcmp.ge.s32.totalorder %v1743, 1
      %vm1808 = vcmp.ge.s32.totalorder %v1744, 1
      %vm1809 = vcmp.ge.s32.totalorder %v1745, 1
      %vm1810 = vcmp.ge.s32.totalorder %v1746, 1
      %vm1811 = vcmp.ge.s32.totalorder %v1747, 1
      %vm1812 = vcmp.ge.s32.totalorder %v1748, 1
      %vm1813 = vcmp.ge.s32.totalorder %v1749, 1
      %vm1814 = vcmp.ge.s32.totalorder %v1750, 1
      %vm1815 = vcmp.ge.s32.totalorder %v1751, 1
      %vm1816 = vcmp.ge.s32.totalorder %v1752, 1
      %vm1817 = vcmp.ge.s32.totalorder %v1753, 1
      %vm1818 = vcmp.ge.s32.totalorder %v1754, 1
      %vm1819 = vcmp.ge.s32.totalorder %v1755, 1
      %vm1820 = vcmp.ge.s32.totalorder %v1756, 1
      %vm1821 = vcmp.ge.s32.totalorder %v1757, 1
      %vm1822 = vcmp.ge.s32.totalorder %v1758, 1
      %vm1823 = vcmp.ge.s32.totalorder %v1759, 1
      %vm1824 = vcmp.ge.s32.totalorder %v1760, 1
      %vm1825 = vcmp.ge.s32.totalorder %v1761, 1
      %vm1826 = vcmp.ge.s32.totalorder %v1762, 1
      %vm1827 = vcmp.ge.s32.totalorder %v1763, 1
      %vm1828 = vcmp.ge.s32.totalorder %v1764, 1
      %vm1829 = vcmp.ge.s32.totalorder %v1765, 1
      %vm1830 = vcmp.ge.s32.totalorder %v1766, 1
      %vm1831 = vcmp.ge.s32.totalorder %v1767, 1
      %v1832 = vsel %vm1800, %v1768, 0.0
      %v1833 = vsel %vm1801, %v1769, 0.0
      %v1834 = vsel %vm1802, %v1770, 0.0
      %v1835 = vsel %vm1803, %v1771, 0.0
      %v1836 = vsel %vm1804, %v1772, 0.0
      %v1837 = vsel %vm1805, %v1773, 0.0
      %v1838 = vsel %vm1806, %v1774, 0.0
      %v1839 = vsel %vm1807, %v1775, 0.0
      %v1840 = vsel %vm1808, %v1776, 0.0
      %v1841 = vsel %vm1809, %v1777, 0.0
      %v1842 = vsel %vm1810, %v1778, 0.0
      %v1843 = vsel %vm1811, %v1779, 0.0
      %v1844 = vsel %vm1812, %v1780, 0.0
      %v1845 = vsel %vm1813, %v1781, 0.0
      %v1846 = vsel %vm1814, %v1782, 0.0
      %v1847 = vsel %vm1815, %v1783, 0.0
      %v1848 = vsel %vm1816, %v1784, 0.0
      %v1849 = vsel %vm1817, %v1785, 0.0
      %v1850 = vsel %vm1818, %v1786, 0.0
      %v1851 = vsel %vm1819, %v1787, 0.0
      %v1852 = vsel %vm1820, %v1788, 0.0
      %v1853 = vsel %vm1821, %v1789, 0.0
      %v1854 = vsel %vm1822, %v1790, 0.0
      %v1855 = vsel %vm1823, %v1791, 0.0
      %v1856 = vsel %vm1824, %v1792, 0.0
      %v1857 = vsel %vm1825, %v1793, 0.0
      %v1858 = vsel %vm1826, %v1794, 0.0
      %v1859 = vsel %vm1827, %v1795, 0.0
      %v1860 = vsel %vm1828, %v1796, 0.0
      %v1861 = vsel %vm1829, %v1797, 0.0
      %v1862 = vsel %vm1830, %v1798, 0.0
      %v1863 = vsel %vm1831, %v1799, 0.0
      %v1864 = vld [vmem:[#allocation2 + $0x8] sm:$0xff]
      %v1865 = vld [vmem:[#allocation2 + $0x10] sm:$0xff]
      %v1866 = vld [vmem:[#allocation2 + $0x18] sm:$0xff]
      %v1867 = vld [vmem:[#allocation2 + $0x20] sm:$0xff]
      %v1868 = vld [vmem:[#allocation2 + $0x28] sm:$0xff]
      %v1869 = vld [vmem:[#allocation2 + $0x30] sm:$0xff]
      %v1870 = vld [vmem:[#allocation2 + $0x38] sm:$0xff]
      %v1871 = vld [vmem:[#allocation2 + $0x40] sm:$0xff]
      %v1872 = vld [vmem:[#allocation2 + $0x48] sm:$0xff]
      %v1873 = vld [vmem:[#allocation2 + $0x50] sm:$0xff]
      %v1874 = vld [vmem:[#allocation2 + $0x58] sm:$0xff]
      %v1875 = vld [vmem:[#allocation2 + $0x60] sm:$0xff]
      %v1876 = vld [vmem:[#allocation2 + $0x68] sm:$0xff]
      %v1877 = vld [vmem:[#allocation2 + $0x70] sm:$0xff]
      %v1878 = vld [vmem:[#allocation2 + $0x78] sm:$0xff]
      %v1879 = vld [vmem:[#allocation2 + $0x80] sm:$0xff]
      %v1880 = vld [vmem:[#allocation2 + $0x88] sm:$0xff]
      %v1881 = vld [vmem:[#allocation2 + $0x90] sm:$0xff]
      %v1882 = vld [vmem:[#allocation2 + $0x98] sm:$0xff]
      %v1883 = vld [vmem:[#allocation2 + $0xa0] sm:$0xff]
      %v1884 = vld [vmem:[#allocation2 + $0xa8] sm:$0xff]
      %v1885 = vld [vmem:[#allocation2 + $0xb0] sm:$0xff]
      %v1886 = vld [vmem:[#allocation2 + $0xb8] sm:$0xff]
      %v1887 = vld [vmem:[#allocation2 + $0xc0] sm:$0xff]
      %v1888 = vld [vmem:[#allocation2 + $0xc8] sm:$0xff]
      %v1889 = vld [vmem:[#allocation2 + $0xd0] sm:$0xff]
      %v1890 = vld [vmem:[#allocation2 + $0xd8] sm:$0xff]
      %v1891 = vld [vmem:[#allocation2 + $0xe0] sm:$0xff]
      %v1892 = vld [vmem:[#allocation2 + $0xe8] sm:$0xff]
      %v1893 = vld [vmem:[#allocation2 + $0xf0] sm:$0xff]
      %v1894 = vld [vmem:[#allocation2 + $0xf8] sm:$0xff]
      %v1895 = vld [vmem:[#allocation2 + $0x100] sm:$0xff]
      %v1896 = vld [vmem:[#allocation2 + $0x9] sm:$0xff]
      %v1897 = vld [vmem:[#allocation2 + $0x11] sm:$0xff]
      %v1898 = vld [vmem:[#allocation2 + $0x19] sm:$0xff]
      %v1899 = vld [vmem:[#allocation2 + $0x21] sm:$0xff]
      %v1900 = vld [vmem:[#allocation2 + $0x29] sm:$0xff]
      %v1901 = vld [vmem:[#allocation2 + $0x31] sm:$0xff]
      %v1902 = vld [vmem:[#allocation2 + $0x39] sm:$0xff]
      %v1903 = vld [vmem:[#allocation2 + $0x41] sm:$0xff]
      %v1904 = vld [vmem:[#allocation2 + $0x49] sm:$0xff]
      %v1905 = vld [vmem:[#allocation2 + $0x51] sm:$0xff]
      %v1906 = vld [vmem:[#allocation2 + $0x59] sm:$0xff]
      %v1907 = vld [vmem:[#allocation2 + $0x61] sm:$0xff]
      %v1908 = vld [vmem:[#allocation2 + $0x69] sm:$0xff]
      %v1909 = vld [vmem:[#allocation2 + $0x71] sm:$0xff]
      %v1910 = vld [vmem:[#allocation2 + $0x79] sm:$0xff]
      %v1911 = vld [vmem:[#allocation2 + $0x81] sm:$0xff]
      %v1912 = vld [vmem:[#allocation2 + $0x89] sm:$0xff]
      %v1913 = vld [vmem:[#allocation2 + $0x91] sm:$0xff]
      %v1914 = vld [vmem:[#allocation2 + $0x99] sm:$0xff]
      %v1915 = vld [vmem:[#allocation2 + $0xa1] sm:$0xff]
      %v1916 = vld [vmem:[#allocation2 + $0xa9] sm:$0xff]
      %v1917 = vld [vmem:[#allocation2 + $0xb1] sm:$0xff]
      %v1918 = vld [vmem:[#allocation2 + $0xb9] sm:$0xff]
      %v1919 = vld [vmem:[#allocation2 + $0xc1] sm:$0xff]
      %v1920 = vld [vmem:[#allocation2 + $0xc9] sm:$0xff]
      %v1921 = vld [vmem:[#allocation2 + $0xd1] sm:$0xff]
      %v1922 = vld [vmem:[#allocation2 + $0xd9] sm:$0xff]
      %v1923 = vld [vmem:[#allocation2 + $0xe1] sm:$0xff]
      %v1924 = vld [vmem:[#allocation2 + $0xe9] sm:$0xff]
      %v1925 = vld [vmem:[#allocation2 + $0xf1] sm:$0xff]
      %v1926 = vld [vmem:[#allocation2 + $0xf9] sm:$0xff]
      %v1927 = vld [vmem:[#allocation2 + $0x101] sm:$0xff]
      %vm1928 = vcmp.lt.s32.totalorder %v1736, 15
      %vm1929 = vcmp.lt.s32.totalorder %v1737, 15
      %vm1930 = vcmp.lt.s32.totalorder %v1738, 15
      %vm1931 = vcmp.lt.s32.totalorder %v1739, 15
      %vm1932 = vcmp.lt.s32.totalorder %v1740, 15
      %vm1933 = vcmp.lt.s32.totalorder %v1741, 15
      %vm1934 = vcmp.lt.s32.totalorder %v1742, 15
      %vm1935 = vcmp.lt.s32.totalorder %v1743, 15
      %vm1936 = vcmp.lt.s32.totalorder %v1744, 15
      %vm1937 = vcmp.lt.s32.totalorder %v1745, 15
      %vm1938 = vcmp.lt.s32.totalorder %v1746, 15
      %vm1939 = vcmp.lt.s32.totalorder %v1747, 15
      %vm1940 = vcmp.lt.s32.totalorder %v1748, 15
      %vm1941 = vcmp.lt.s32.totalorder %v1749, 15
      %vm1942 = vcmp.lt.s32.totalorder %v1750, 15
      %vm1943 = vcmp.lt.s32.totalorder %v1751, 15
      %vm1944 = vcmp.lt.s32.totalorder %v1752, 15
      %vm1945 = vcmp.lt.s32.totalorder %v1753, 15
      %vm1946 = vcmp.lt.s32.totalorder %v1754, 15
      %vm1947 = vcmp.lt.s32.totalorder %v1755, 15
      %vm1948 = vcmp.lt.s32.totalorder %v1756, 15
      %vm1949 = vcmp.lt.s32.totalorder %v1757, 15
      %vm1950 = vcmp.lt.s32.totalorder %v1758, 15
      %vm1951 = vcmp.lt.s32.totalorder %v1759, 15
      %vm1952 = vcmp.lt.s32.totalorder %v1760, 15
      %vm1953 = vcmp.lt.s32.totalorder %v1761, 15
      %vm1954 = vcmp.lt.s32.totalorder %v1762, 15
      %vm1955 = vcmp.lt.s32.totalorder %v1763, 15
      %vm1956 = vcmp.lt.s32.totalorder %v1764, 15
      %vm1957 = vcmp.lt.s32.totalorder %v1765, 15
      %vm1958 = vcmp.lt.s32.totalorder %v1766, 15
      %vm1959 = vcmp.lt.s32.totalorder %v1767, 15
      %v1960 = vsel %vm1928, %v1896, 0.0
      %v1961 = vsel %vm1929, %v1897, 0.0
      %v1962 = vsel %vm1930, %v1898, 0.0
      %v1963 = vsel %vm1931, %v1899, 0.0
      %v1964 = vsel %vm1932, %v1900, 0.0
      %v1965 = vsel %vm1933, %v1901, 0.0
      %v1966 = vsel %vm1934, %v1902, 0.0
      %v1967 = vsel %vm1935, %v1903, 0.0
      %v1968 = vsel %vm1936, %v1904, 0.0
      %v1969 = vsel %vm1937, %v1905, 0.0
      %v1970 = vsel %vm1938, %v1906, 0.0
      %v1971 = vsel %vm1939, %v1907, 0.0
      %v1972 = vsel %vm1940, %v1908, 0.0
      %v1973 = vsel %vm1941, %v1909, 0.0
      %v1974 = vsel %vm1942, %v1910, 0.0
      %v1975 = vsel %vm1943, %v1911, 0.0
      %v1976 = vsel %vm1944, %v1912, 0.0
      %v1977 = vsel %vm1945, %v1913, 0.0
      %v1978 = vsel %vm1946, %v1914, 0.0
      %v1979 = vsel %vm1947, %v1915, 0.0
      %v1980 = vsel %vm1948, %v1916, 0.0
      %v1981 = vsel %vm1949, %v1917, 0.0
      %v1982 = vsel %vm1950, %v1918, 0.0
      %v1983 = vsel %vm1951, %v1919, 0.0
      %v1984 = vsel %vm1952, %v1920, 0.0
      %v1985 = vsel %vm1953, %v1921, 0.0
      %v1986 = vsel %vm1954, %v1922, 0.0
      %v1987 = vsel %vm1955, %v1923, 0.0
      %v1988 = vsel %vm1956, %v1924, 0.0
      %v1989 = vsel %vm1957, %v1925, 0.0
      %v1990 = vsel %vm1958, %v1926, 0.0
      %v1991 = vsel %vm1959, %v1927, 0.0
      %v1992 = vld [vmem:[#allocation2 + $0x107] sm:$0xff]
      %v1993 = vld [vmem:[#allocation2 + $0x10f] sm:$0xff]
      %v1994 = vsel %vm1800, %v1770, 0.0
      %v1995 = vsel %vm1801, %v1771, 0.0
      %v1996 = vsel %vm1802, %v1772, 0.0
      %v1997 = vsel %vm1803, %v1773, 0.0
      %v1998 = vsel %vm1804, %v1774, 0.0
      %v1999 = vsel %vm1805, %v1775, 0.0
      %v2000 = vsel %vm1806, %v1776, 0.0
      %v2001 = vsel %vm1807, %v1777, 0.0
      %v2002 = vsel %vm1808, %v1778, 0.0
      %v2003 = vsel %vm1809, %v1779, 0.0
      %v2004 = vsel %vm1810, %v1780, 0.0
      %v2005 = vsel %vm1811, %v1781, 0.0
      %v2006 = vsel %vm1812, %v1782, 0.0
      %v2007 = vsel %vm1813, %v1783, 0.0
      %v2008 = vsel %vm1814, %v1784, 0.0
      %v2009 = vsel %vm1815, %v1785, 0.0
      %v2010 = vsel %vm1816, %v1786, 0.0
      %v2011 = vsel %vm1817, %v1787, 0.0
      %v2012 = vsel %vm1818, %v1788, 0.0
      %v2013 = vsel %vm1819, %v1789, 0.0
      %v2014 = vsel %vm1820, %v1790, 0.0
      %v2015 = vsel %vm1821, %v1791, 0.0
      %v2016 = vsel %vm1822, %v1792, 0.0
      %v2017 = vsel %vm1823, %v1793, 0.0
      %v2018 = vsel %vm1824, %v1794, 0.0
      %v2019 = vsel %vm1825, %v1795, 0.0
      %v2020 = vsel %vm1826, %v1796, 0.0
      %v2021 = vsel %vm1827, %v1797, 0.0
      %v2022 = vsel %vm1828, %v1798, 0.0
      %v2023 = vsel %vm1829, %v1799, 0.0
      %v2024 = vsel %vm1830, %v1992, 0.0
      %v2025 = vsel %vm1831, %v1993, 0.0
      %v2026 = vld [vmem:[#allocation2 + $0x108] sm:$0xff]
      %v2027 = vld [vmem:[#allocation2 + $0x110] sm:$0xff]
      %v2028 = vld [vmem:[#allocation2 + $0x109] sm:$0xff]
      %v2029 = vld [vmem:[#allocation2 + $0x111] sm:$0xff]
      %v2030 = vsel %vm1928, %v1898, 0.0
      %v2031 = vsel %vm1929, %v1899, 0.0
      %v2032 = vsel %vm1930, %v1900, 0.0
      %v2033 = vsel %vm1931, %v1901, 0.0
      %v2034 = vsel %vm1932, %v1902, 0.0
      %v2035 = vsel %vm1933, %v1903, 0.0
      %v2036 = vsel %vm1934, %v1904, 0.0
      %v2037 = vsel %vm1935, %v1905, 0.0
      %v2038 = vsel %vm1936, %v1906, 0.0
      %v2039 = vsel %vm1937, %v1907, 0.0
      %v2040 = vsel %vm1938, %v1908, 0.0
      %v2041 = vsel %vm1939, %v1909, 0.0
      %v2042 = vsel %vm1940, %v1910, 0.0
      %v2043 = vsel %vm1941, %v1911, 0.0
      %v2044 = vsel %vm1942, %v1912, 0.0
      %v2045 = vsel %vm1943, %v1913, 0.0
      %v2046 = vsel %vm1944, %v1914, 0.0
      %v2047 = vsel %vm1945, %v1915, 0.0
      %v2048 = vsel %vm1946, %v1916, 0.0
      %v2049 = vsel %vm1947, %v1917, 0.0
      %v2050 = vsel %vm1948, %v1918, 0.0
      %v2051 = vsel %vm1949, %v1919, 0.0
      %v2052 = vsel %vm1950, %v1920, 0.0
      %v2053 = vsel %vm1951, %v1921, 0.0
      %v2054 = vsel %vm1952, %v1922, 0.0
      %v2055 = vsel %vm1953, %v1923, 0.0
      %v2056 = vsel %vm1954, %v1924, 0.0
      %v2057 = vsel %vm1955, %v1925, 0.0
      %v2058 = vsel %vm1956, %v1926, 0.0
      %v2059 = vsel %vm1957, %v1927, 0.0
      %v2060 = vsel %vm1958, %v2028, 0.0
      %v2061 = vsel %vm1959, %v2029, 0.0
      %v2062 = vld [vmem:[#allocation2 + $0x117] sm:$0xff]
      %v2063 = vld [vmem:[#allocation2 + $0x11f] sm:$0xff]
      %v2064 = vsel %vm1800, %v1772, 0.0
      %v2065 = vsel %vm1801, %v1773, 0.0
      %v2066 = vsel %vm1802, %v1774, 0.0
      %v2067 = vsel %vm1803, %v1775, 0.0
      %v2068 = vsel %vm1804, %v1776, 0.0
      %v2069 = vsel %vm1805, %v1777, 0.0
      %v2070 = vsel %vm1806, %v1778, 0.0
      %v2071 = vsel %vm1807, %v1779, 0.0
      %v2072 = vsel %vm1808, %v1780, 0.0
      %v2073 = vsel %vm1809, %v1781, 0.0
      %v2074 = vsel %vm1810, %v1782, 0.0
      %v2075 = vsel %vm1811, %v1783, 0.0
      %v2076 = vsel %vm1812, %v1784, 0.0
      %v2077 = vsel %vm1813, %v1785, 0.0
      %v2078 = vsel %vm1814, %v1786, 0.0
      %v2079 = vsel %vm1815, %v1787, 0.0
      %v2080 = vsel %vm1816, %v1788, 0.0
      %v2081 = vsel %vm1817, %v1789, 0.0
      %v2082 = vsel %vm1818, %v1790, 0.0
      %v2083 = vsel %vm1819, %v1791, 0.0
      %v2084 = vsel %vm1820, %v1792, 0.0
      %v2085 = vsel %vm1821, %v1793, 0.0
      %v2086 = vsel %vm1822, %v1794, 0.0
      %v2087 = vsel %vm1823, %v1795, 0.0
      %v2088 = vsel %vm1824, %v1796, 0.0
      %v2089 = vsel %vm1825, %v1797, 0.0
      %v2090 = vsel %vm1826, %v1798, 0.0
      %v2091 = vsel %vm1827, %v1799, 0.0
      %v2092 = vsel %vm1828, %v1992, 0.0
      %v2093 = vsel %vm1829, %v1993, 0.0
      %v2094 = vsel %vm1830, %v2062, 0.0
      %v2095 = vsel %vm1831, %v2063, 0.0
      %v2096 = vld [vmem:[#allocation2 + $0x118] sm:$0xff]
      %v2097 = vld [vmem:[#allocation2 + $0x120] sm:$0xff]
      %v2098 = vld [vmem:[#allocation2 + $0x119] sm:$0xff]
      %v2099 = vld [vmem:[#allocation2 + $0x121] sm:$0xff]
      %v2100 = vsel %vm1928, %v1900, 0.0
      %v2101 = vsel %vm1929, %v1901, 0.0
      %v2102 = vsel %vm1930, %v1902, 0.0
      %v2103 = vsel %vm1931, %v1903, 0.0
      %v2104 = vsel %vm1932, %v1904, 0.0
      %v2105 = vsel %vm1933, %v1905, 0.0
      %v2106 = vsel %vm1934, %v1906, 0.0
      %v2107 = vsel %vm1935, %v1907, 0.0
      %v2108 = vsel %vm1936, %v1908, 0.0
      %v2109 = vsel %vm1937, %v1909, 0.0
      %v2110 = vsel %vm1938, %v1910, 0.0
      %v2111 = vsel %vm1939, %v1911, 0.0
      %v2112 = vsel %vm1940, %v1912, 0.0
      %v2113 = vsel %vm1941, %v1913, 0.0
      %v2114 = vsel %vm1942, %v1914, 0.0
      %v2115 = vsel %vm1943, %v1915, 0.0
      %v2116 = vsel %vm1944, %v1916, 0.0
      %v2117 = vsel %vm1945, %v1917, 0.0
      %v2118 = vsel %vm1946, %v1918, 0.0
      %v2119 = vsel %vm1947, %v1919, 0.0
      %v2120 = vsel %vm1948, %v1920, 0.0
      %v2121 = vsel %vm1949, %v1921, 0.0
      %v2122 = vsel %vm1950, %v1922, 0.0
      %v2123 = vsel %vm1951, %v1923, 0.0
      %v2124 = vsel %vm1952, %v1924, 0.0
      %v2125 = vsel %vm1953, %v1925, 0.0
      %v2126 = vsel %vm1954, %v1926, 0.0
      %v2127 = vsel %vm1955, %v1927, 0.0
      %v2128 = vsel %vm1956, %v2028, 0.0
      %v2129 = vsel %vm1957, %v2029, 0.0
      %v2130 = vsel %vm1958, %v2098, 0.0
      %v2131 = vsel %vm1959, %v2099, 0.0
      %v2132 = vpack.c.bf16 %v1833, %v1832
      %v2133 = vpack.c.bf16 %v1865, %v1864
      %v2134 = vpack.c.bf16 %v1961, %v1960
      %v2135 = vpack.c.bf16 %v1995, %v1994
      %v2136 = vpack.c.bf16 %v1867, %v1866
      %v2137 = vpack.c.bf16 %v2031, %v2030
      %v2138 = vpack.c.bf16 %v2065, %v2064
      %v2139 = vpack.c.bf16 %v1869, %v1868
      %v2140 = vpack.c.bf16 %v2101, %v2100
      %v2141 = vpack.c.bf16 %v1835, %v1834
      %v2142 = vpack.c.bf16 %v1963, %v1962
      %v2143 = vpack.c.bf16 %v1997, %v1996
      %v2144 = vpack.c.bf16 %v2033, %v2032
      %v2145 = vpack.c.bf16 %v2067, %v2066
      %v2146 = vpack.c.bf16 %v1871, %v1870
      %v2147 = vpack.c.bf16 %v2103, %v2102
      %v2148 = vpack.c.bf16 %v1837, %v1836
      %v2149 = vpack.c.bf16 %v1965, %v1964
      %v2150 = vpack.c.bf16 %v1999, %v1998
      %v2151 = vpack.c.bf16 %v2035, %v2034
      %v2152 = vpack.c.bf16 %v2069, %v2068
      %v2153 = vpack.c.bf16 %v1873, %v1872
      %v2154 = vpack.c.bf16 %v2105, %v2104
      %v2155 = vpack.c.bf16 %v1839, %v1838
      %v2156 = vpack.c.bf16 %v1967, %v1966
      %v2157 = vpack.c.bf16 %v2001, %v2000
      %v2158 = vpack.c.bf16 %v2037, %v2036
      %v2159 = vpack.c.bf16 %v2071, %v2070
      %v2160 = vpack.c.bf16 %v1875, %v1874
      %v2161 = vpack.c.bf16 %v2107, %v2106
      %v2162 = vpack.c.bf16 %v1841, %v1840
      %v2163 = vpack.c.bf16 %v1969, %v1968
      %v2164 = vpack.c.bf16 %v2003, %v2002
      %v2165 = vpack.c.bf16 %v2039, %v2038
      %v2166 = vpack.c.bf16 %v2073, %v2072
      %v2167 = vpack.c.bf16 %v1877, %v1876
      %v2168 = vpack.c.bf16 %v2109, %v2108
      %v2169 = vpack.c.bf16 %v1843, %v1842
      %v2170 = vpack.c.bf16 %v1971, %v1970
      %v2171 = vpack.c.bf16 %v2005, %v2004
      %v2172 = vpack.c.bf16 %v2041, %v2040
      %v2173 = vpack.c.bf16 %v2075, %v2074
      %v2174 = vpack.c.bf16 %v1879, %v1878
      %v2175 = vpack.c.bf16 %v2111, %v2110
      %v2176 = vpack.c.bf16 %v1845, %v1844
      %v2177 = vpack.c.bf16 %v1973, %v1972
      %v2178 = vpack.c.bf16 %v2007, %v2006
      %v2179 = vpack.c.bf16 %v2043, %v2042
      %v2180 = vpack.c.bf16 %v2077, %v2076
      %v2181 = vpack.c.bf16 %v1881, %v1880
      %v2182 = vpack.c.bf16 %v2113, %v2112
      %v2183 = vpack.c.bf16 %v1847, %v1846
      %v2184 = vpack.c.bf16 %v1975, %v1974
      %v2185 = vpack.c.bf16 %v2009, %v2008
      %v2186 = vpack.c.bf16 %v2045, %v2044
      %v2187 = vpack.c.bf16 %v2079, %v2078
      %v2188 = vpack.c.bf16 %v1883, %v1882
      %v2189 = vpack.c.bf16 %v2115, %v2114
      %v2190 = vpack.c.bf16 %v1849, %v1848
      %v2191 = vpack.c.bf16 %v1977, %v1976
      %v2192 = vpack.c.bf16 %v2011, %v2010
      %v2193 = vpack.c.bf16 %v2047, %v2046
      %v2194 = vpack.c.bf16 %v2081, %v2080
      %v2195 = vpack.c.bf16 %v1885, %v1884
      %v2196 = vpack.c.bf16 %v2117, %v2116
      %v2197 = vpack.c.bf16 %v1851, %v1850
      %v2198 = vpack.c.bf16 %v1979, %v1978
      %v2199 = vpack.c.bf16 %v2013, %v2012
      %v2200 = vpack.c.bf16 %v2049, %v2048
      %v2201 = vpack.c.bf16 %v2083, %v2082
      %v2202 = vpack.c.bf16 %v1887, %v1886
      %v2203 = vpack.c.bf16 %v2119, %v2118
      %v2204 = vpack.c.bf16 %v1853, %v1852
      %v2205 = vpack.c.bf16 %v1981, %v1980
      %v2206 = vpack.c.bf16 %v2015, %v2014
      %v2207 = vpack.c.bf16 %v2051, %v2050
      %v2208 = vpack.c.bf16 %v2085, %v2084
      %v2209 = vpack.c.bf16 %v1889, %v1888
      %v2210 = vpack.c.bf16 %v2121, %v2120
      %v2211 = vpack.c.bf16 %v1855, %v1854
      %v2212 = vpack.c.bf16 %v1983, %v1982
      %v2213 = vpack.c.bf16 %v2017, %v2016
      %v2214 = vpack.c.bf16 %v2053, %v2052
      %v2215 = vpack.c.bf16 %v2087, %v2086
      %v2216 = vpack.c.bf16 %v1891, %v1890
      %v2217 = vpack.c.bf16 %v2123, %v2122
      %v2218 = vpack.c.bf16 %v1857, %v1856
      %v2219 = vpack.c.bf16 %v1985, %v1984
      %v2220 = vpack.c.bf16 %v2019, %v2018
      %v2221 = vpack.c.bf16 %v2055, %v2054
      %v2222 = vpack.c.bf16 %v2089, %v2088
      %v2223 = vpack.c.bf16 %v1893, %v1892
      %v2224 = vpack.c.bf16 %v2125, %v2124
      %v2225 = vpack.c.bf16 %v1859, %v1858
      %v2226 = vpack.c.bf16 %v1987, %v1986
      %v2227 = vpack.c.bf16 %v2021, %v2020
      %v2228 = vpack.c.bf16 %v2057, %v2056
      %v2229 = vpack.c.bf16 %v2091, %v2090
      %v2230 = vpack.c.bf16 %v1895, %v1894
      %v2231 = vpack.c.bf16 %v2127, %v2126
      %v2232 = vpack.c.bf16 %v1861, %v1860
      %v2233 = vpack.c.bf16 %v1989, %v1988
      %v2234 = vpack.c.bf16 %v2023, %v2022
      %v2235 = vpack.c.bf16 %v2059, %v2058
      %v2236 = vpack.c.bf16 %v2093, %v2092
      %v2237 = vpack.c.bf16 %v2027, %v2026
      %v2238 = vpack.c.bf16 %v2129, %v2128
      %v2239 = vpack.c.bf16 %v1863, %v1862
      %v2240 = vpack.c.bf16 %v1991, %v1990
      %v2241 = vpack.c.bf16 %v2025, %v2024
      %v2242 = vpack.c.bf16 %v2061, %v2060
      %v2243 = vpack.c.bf16 %v2095, %v2094
      %v2244 = vpack.c.bf16 %v2097, %v2096
      %v2245 = vpack.c.bf16 %v2131, %v2130
      %v2246 = vld [vmem:[%s3] sm:$0xf]
      %v2247 = vld [vmem:[%s3 + $0x4] sm:$0xf]
      %v2248 = vld [vmem:[%s3 + $0x8] sm:$0xf]
      %v2249 = vld [vmem:[%s3 + $0xc] sm:$0xf]
      %v2250 = vld [vmem:[%s3 + $0x10] sm:$0xf]
      %v2251 = vld [vmem:[%s3 + $0x14] sm:$0xf]
      %v2252 = vld [vmem:[%s3 + $0x18] sm:$0xf]
      %v2253 = vld [vmem:[%s3 + $0x1c] sm:$0xf]
      %v2254 = vld [vmem:[%s3 + $0x20] sm:$0xf]
      %v2255 = vld [vmem:[%s3 + $0x24] sm:$0xf]
      %v2256 = vld [vmem:[%s3 + $0x28] sm:$0xf]
      %v2257 = vld [vmem:[%s3 + $0x2c] sm:$0xf]
      %v2258 = vld [vmem:[%s3 + $0x30] sm:$0xf]
      %v2259 = vld [vmem:[%s3 + $0x34] sm:$0xf]
      %v2260 = vld [vmem:[%s3 + $0x38] sm:$0xf]
      %v2261 = vld [vmem:[%s3 + $0x3c] sm:$0xf]
      %v2262 = vld [vmem:[%s3 + $0x40] sm:$0xf]
      %v2263 = vld [vmem:[%s3 + $0x44] sm:$0xf]
      %v2264 = vld [vmem:[%s3 + $0x48] sm:$0xf]
      %v2265 = vld [vmem:[%s3 + $0x4c] sm:$0xf]
      %v2266 = vld [vmem:[%s3 + $0x50] sm:$0xf]
      %v2267 = vld [vmem:[%s3 + $0x54] sm:$0xf]
      %v2268 = vld [vmem:[%s3 + $0x58] sm:$0xf]
      %v2269 = vld [vmem:[%s3 + $0x5c] sm:$0xf]
      %v2270 = vld [vmem:[%s3 + $0x60] sm:$0xf]
      %v2271 = vld [vmem:[%s3 + $0x64] sm:$0xf]
      %v2272 = vld [vmem:[%s3 + $0x68] sm:$0xf]
      %v2273 = vld [vmem:[%s3 + $0x6c] sm:$0xf]
      %v2274 = vld [vmem:[%s3 + $0x70] sm:$0xf]
      %v2275 = vld [vmem:[%s3 + $0x74] sm:$0xf]
      %v2276 = vld [vmem:[%s3 + $0x78] sm:$0xf]
      %v2277 = vld [vmem:[%s3 + $0x7c] sm:$0xf]
      %v2278 = vld [vmem:[%s3 + $0x80] sm:$0xf]
      %v2279 = vld [vmem:[%s3 + $0x84] sm:$0xf]
      %v2280 = vld [vmem:[%s3 + $0x88] sm:$0xf]
      %v2281 = vld [vmem:[%s3 + $0x8c] sm:$0xf]
      %v2282 = vld [vmem:[%s3 + $0x90] sm:$0xf]
      %v2283 = vld [vmem:[%s3 + $0x94] sm:$0xf]
      %v2284 = vld [vmem:[%s3 + $0x98] sm:$0xf]
      %v2285 = vld [vmem:[%s3 + $0x9c] sm:$0xf]
      %v2286 = vld [vmem:[%s3 + $0xa0] sm:$0xf]
      %v2287 = vld [vmem:[%s3 + $0xa4] sm:$0xf]
      %v2288 = vld [vmem:[%s3 + $0xa8] sm:$0xf]
      %v2289 = vld [vmem:[%s3 + $0xac] sm:$0xf]
      %v2290 = vld [vmem:[%s3 + $0xb0] sm:$0xf]
      %v2291 = vld [vmem:[%s3 + $0xb4] sm:$0xf]
      %v2292 = vld [vmem:[%s3 + $0xb8] sm:$0xf]
      %v2293 = vld [vmem:[%s3 + $0xbc] sm:$0xf]
      %v2294 = vld [vmem:[%s3 + $0xc0] sm:$0xf]
      %v2295 = vld [vmem:[%s3 + $0xc4] sm:$0xf]
      %v2296 = vld [vmem:[%s3 + $0xc8] sm:$0xf]
      %v2297 = vld [vmem:[%s3 + $0xcc] sm:$0xf]
      %v2298 = vld [vmem:[%s3 + $0xd0] sm:$0xf]
      %v2299 = vld [vmem:[%s3 + $0xd4] sm:$0xf]
      %v2300 = vld [vmem:[%s3 + $0xd8] sm:$0xf]
      %v2301 = vld [vmem:[%s3 + $0xdc] sm:$0xf]
      %v2302 = vld [vmem:[%s3 + $0xe0] sm:$0xf]
      %v2303 = vld [vmem:[%s3 + $0xe4] sm:$0xf]
      %v2304 = vld [vmem:[%s3 + $0xe8] sm:$0xf]
      %v2305 = vld [vmem:[%s3 + $0xec] sm:$0xf]
      %v2306 = vld [vmem:[%s3 + $0xf0] sm:$0xf]
      %v2307 = vld [vmem:[%s3 + $0xf4] sm:$0xf]
      %v2308 = vld [vmem:[%s3 + $0xf8] sm:$0xf]
      %v2309 = vld [vmem:[%s3 + $0xfc] sm:$0xf]
      %v2310 = vld [vmem:[%s3 + $0x100] sm:$0xf]
      %v2311 = vld [vmem:[%s3 + $0x104] sm:$0xf]
      %v2312 = vld [vmem:[%s3 + $0x108] sm:$0xf]
      %v2313 = vld [vmem:[%s3 + $0x10c] sm:$0xf]
      %v2314 = vld [vmem:[%s3 + $0x110] sm:$0xf]
      %v2315 = vld [vmem:[%s3 + $0x114] sm:$0xf]
      %v2316 = vld [vmem:[%s3 + $0x118] sm:$0xf]
      %v2317 = vld [vmem:[%s3 + $0x11c] sm:$0xf]
      %v2318 = vld [vmem:[%s3 + $0x120] sm:$0xf]
      %v2319 = vld [vmem:[%s3 + $0x124] sm:$0xf]
      %v2320 = vld [vmem:[%s3 + $0x128] sm:$0xf]
      %v2321 = vld [vmem:[%s3 + $0x12c] sm:$0xf]
      %v2322 = vld [vmem:[%s3 + $0x130] sm:$0xf]
      %v2323 = vld [vmem:[%s3 + $0x134] sm:$0xf]
      %v2324 = vld [vmem:[%s3 + $0x138] sm:$0xf]
      %v2325 = vld [vmem:[%s3 + $0x13c] sm:$0xf]
      %v2326 = vld [vmem:[%s3 + $0x140] sm:$0xf]
      %v2327 = vld [vmem:[%s3 + $0x144] sm:$0xf]
      %v2328 = vld [vmem:[%s3 + $0x148] sm:$0xf]
      %v2329 = vld [vmem:[%s3 + $0x14c] sm:$0xf]
      %v2330 = vld [vmem:[%s3 + $0x150] sm:$0xf]
      %v2331 = vld [vmem:[%s3 + $0x154] sm:$0xf]
      %v2332 = vld [vmem:[%s3 + $0x158] sm:$0xf]
      %v2333 = vld [vmem:[%s3 + $0x15c] sm:$0xf]
      %v2334 = vld [vmem:[%s3 + $0x160] sm:$0xf]
      %v2335 = vld [vmem:[%s3 + $0x164] sm:$0xf]
      %v2336 = vld [vmem:[%s3 + $0x168] sm:$0xf]
      %v2337 = vld [vmem:[%s3 + $0x16c] sm:$0xf]
      %v2338 = vld [vmem:[%s3 + $0x170] sm:$0xf]
      %v2339 = vld [vmem:[%s3 + $0x174] sm:$0xf]
      %v2340 = vld [vmem:[%s3 + $0x178] sm:$0xf]
      %v2341 = vld [vmem:[%s3 + $0x17c] sm:$0xf]
      %v2342 = vld [vmem:[%s3 + $0x180] sm:$0xf]
      %v2343 = vld [vmem:[%s3 + $0x184] sm:$0xf]
      %v2344 = vld [vmem:[%s3 + $0x188] sm:$0xf]
      %v2345 = vld [vmem:[%s3 + $0x18c] sm:$0xf]
      %v2346 = vld [vmem:[%s3 + $0x190] sm:$0xf]
      %v2347 = vld [vmem:[%s3 + $0x194] sm:$0xf]
      %v2348 = vld [vmem:[%s3 + $0x198] sm:$0xf]
      %v2349 = vld [vmem:[%s3 + $0x19c] sm:$0xf]
      %v2350 = vld [vmem:[%s3 + $0x1a0] sm:$0xf]
      %v2351 = vld [vmem:[%s3 + $0x1a4] sm:$0xf]
      %v2352 = vld [vmem:[%s3 + $0x1a8] sm:$0xf]
      %v2353 = vld [vmem:[%s3 + $0x1ac] sm:$0xf]
      %v2354 = vld [vmem:[%s3 + $0x1b0] sm:$0xf]
      %v2355 = vld [vmem:[%s3 + $0x1b4] sm:$0xf]
      %v2356 = vld [vmem:[%s3 + $0x1b8] sm:$0xf]
      %v2357 = vld [vmem:[%s3 + $0x1bc] sm:$0xf]
      %v2358 = vld [vmem:[%s3 + $0x1c0] sm:$0xf]
      %v2359 = vld [vmem:[%s3 + $0x1c4] sm:$0xf]
      %v2360 = vld [vmem:[%s3 + $0x1c8] sm:$0xf]
      %v2361 = vld [vmem:[%s3 + $0x1cc] sm:$0xf]
      %v2362 = vld [vmem:[%s3 + $0x1d0] sm:$0xf]
      %v2363 = vld [vmem:[%s3 + $0x1d4] sm:$0xf]
      %v2364 = vld [vmem:[%s3 + $0x1d8] sm:$0xf]
      %v2365 = vld [vmem:[%s3 + $0x1dc] sm:$0xf]
      %v2366 = vld [vmem:[%s3 + $0x1e0] sm:$0xf]
      %v2367 = vld [vmem:[%s3 + $0x1e4] sm:$0xf]
      %v2368 = vld [vmem:[%s3 + $0x1e8] sm:$0xf]
      %v2369 = vld [vmem:[%s3 + $0x1ec] sm:$0xf]
      %v2370 = vld [vmem:[%s3 + $0x1f0] sm:$0xf]
      %v2371 = vld [vmem:[%s3 + $0x1f4] sm:$0xf]
      %v2372 = vld [vmem:[%s3 + $0x1f8] sm:$0xf]
      %v2373 = vld [vmem:[%s3 + $0x1fc] sm:$0xf]
      %v2374 = vld [vmem:[%s3 + $0x200] sm:$0xf]
      %v2375 = vld [vmem:[%s3 + $0x204] sm:$0xf]
      %v2376 = vld [vmem:[%s3 + $0x208] sm:$0xf]
      %v2377 = vld [vmem:[%s3 + $0x20c] sm:$0xf]
      %v2378 = vld [vmem:[%s3 + $0x210] sm:$0xf]
      %v2379 = vld [vmem:[%s3 + $0x214] sm:$0xf]
      %v2380 = vld [vmem:[%s3 + $0x218] sm:$0xf]
      %v2381 = vld [vmem:[%s3 + $0x21c] sm:$0xf]
      %v2382 = vld [vmem:[%s3 + $0x220] sm:$0xf]
      %v2383 = vld [vmem:[%s3 + $0x224] sm:$0xf]
      %v2384 = vld [vmem:[%s3 + $0x228] sm:$0xf]
      %v2385 = vld [vmem:[%s3 + $0x22c] sm:$0xf]
      %v2386 = vld [vmem:[%s3 + $0x230] sm:$0xf]
      %v2387 = vld [vmem:[%s3 + $0x234] sm:$0xf]
      %v2388 = vld [vmem:[%s3 + $0x238] sm:$0xf]
      %v2389 = vld [vmem:[%s3 + $0x23c] sm:$0xf]
      %v2390 = vld [vmem:[%s4] sm:$0x1]
      %v2392 = vlaneseq
      %v2393 = vshrl.u32 %v2392, 7
      %v2394 = vsub.s32 0, %v2393
      %v2395 = vrot.slane %v2390, %v2394
      %v2541 = vunpack.c.l.b16 %v2246
      %v2542 = vunpack.c.l.b16 %v2247
      %v2543 = vunpack.c.l.b16 %v2248
      %v2544 = vunpack.c.l.b16 %v2249
      %v2545 = vunpack.c.l.b16 %v2250
      %v2546 = vunpack.c.l.b16 %v2251
      %v2547 = vunpack.c.l.b16 %v2252
      %v2548 = vunpack.c.l.b16 %v2253
      %v2549 = vunpack.c.l.b16 %v2254
      %v2550 = vunpack.c.l.b16 %v2255
      %v2551 = vunpack.c.l.b16 %v2256
      %v2552 = vunpack.c.l.b16 %v2257
      %v2553 = vunpack.c.l.b16 %v2258
      %v2554 = vunpack.c.l.b16 %v2259
      %v2555 = vunpack.c.l.b16 %v2260
      %v2556 = vunpack.c.l.b16 %v2261
      %v2557 = vunpack.c.l.b16 %v2262
      %v2558 = vunpack.c.l.b16 %v2263
      %v2559 = vunpack.c.l.b16 %v2264
      %v2560 = vunpack.c.l.b16 %v2265
      %v2561 = vunpack.c.l.b16 %v2266
      %v2562 = vunpack.c.l.b16 %v2267
      %v2563 = vunpack.c.l.b16 %v2268
      %v2564 = vunpack.c.l.b16 %v2269
      %v2565 = vunpack.c.l.b16 %v2270
      %v2566 = vunpack.c.l.b16 %v2271
      %v2567 = vunpack.c.l.b16 %v2272
      %v2568 = vunpack.c.l.b16 %v2273
      %v2569 = vunpack.c.l.b16 %v2274
      %v2570 = vunpack.c.l.b16 %v2275
      %v2571 = vunpack.c.l.b16 %v2276
      %v2572 = vunpack.c.l.b16 %v2277
      %v2573 = vunpack.c.l.b16 %v2278
      %v2574 = vunpack.c.l.b16 %v2279
      %v2575 = vunpack.c.l.b16 %v2280
      %v2576 = vunpack.c.l.b16 %v2281
      %v2577 = vunpack.c.l.b16 %v2282
      %v2578 = vunpack.c.l.b16 %v2283
      %v2579 = vunpack.c.l.b16 %v2284
      %v2580 = vunpack.c.l.b16 %v2285
      %v2581 = vunpack.c.l.b16 %v2286
      %v2582 = vunpack.c.l.b16 %v2287
      %v2583 = vunpack.c.l.b16 %v2288
      %v2584 = vunpack.c.l.b16 %v2289
      %v2585 = vunpack.c.l.b16 %v2290
      %v2586 = vunpack.c.l.b16 %v2291
      %v2587 = vunpack.c.l.b16 %v2292
      %v2588 = vunpack.c.l.b16 %v2293
      %v2589 = vunpack.c.l.b16 %v2294
      %v2590 = vunpack.c.l.b16 %v2295
      %v2591 = vunpack.c.l.b16 %v2296
      %v2592 = vunpack.c.l.b16 %v2297
      %v2593 = vunpack.c.l.b16 %v2298
      %v2594 = vunpack.c.l.b16 %v2299
      %v2595 = vunpack.c.l.b16 %v2300
      %v2596 = vunpack.c.l.b16 %v2301
      %v2597 = vunpack.c.l.b16 %v2302
      %v2598 = vunpack.c.l.b16 %v2303
      %v2599 = vunpack.c.l.b16 %v2304
      %v2600 = vunpack.c.l.b16 %v2305
      %v2601 = vunpack.c.l.b16 %v2306
      %v2602 = vunpack.c.l.b16 %v2307
      %v2603 = vunpack.c.l.b16 %v2308
      %v2604 = vunpack.c.l.b16 %v2309
      %v2605 = vunpack.c.l.b16 %v2310
      %v2606 = vunpack.c.l.b16 %v2311
      %v2607 = vunpack.c.l.b16 %v2312
      %v2608 = vunpack.c.l.b16 %v2313
      %v2609 = vunpack.c.l.b16 %v2314
      %v2610 = vunpack.c.l.b16 %v2315
      %v2611 = vunpack.c.l.b16 %v2316
      %v2612 = vunpack.c.l.b16 %v2317
      %v2613 = vunpack.c.l.b16 %v2318
      %v2614 = vunpack.c.l.b16 %v2319
      %v2615 = vunpack.c.l.b16 %v2320
      %v2616 = vunpack.c.l.b16 %v2321
      %v2617 = vunpack.c.l.b16 %v2322
      %v2618 = vunpack.c.l.b16 %v2323
      %v2619 = vunpack.c.l.b16 %v2324
      %v2620 = vunpack.c.l.b16 %v2325
      %v2621 = vunpack.c.l.b16 %v2326
      %v2622 = vunpack.c.l.b16 %v2327
      %v2623 = vunpack.c.l.b16 %v2328
      %v2624 = vunpack.c.l.b16 %v2329
      %v2625 = vunpack.c.l.b16 %v2330
      %v2626 = vunpack.c.l.b16 %v2331
      %v2627 = vunpack.c.l.b16 %v2332
      %v2628 = vunpack.c.l.b16 %v2333
      %v2629 = vunpack.c.l.b16 %v2334
      %v2630 = vunpack.c.l.b16 %v2335
      %v2631 = vunpack.c.l.b16 %v2336
      %v2632 = vunpack.c.l.b16 %v2337
      %v2633 = vunpack.c.l.b16 %v2338
      %v2634 = vunpack.c.l.b16 %v2339
      %v2635 = vunpack.c.l.b16 %v2340
      %v2636 = vunpack.c.l.b16 %v2341
      %v2637 = vunpack.c.l.b16 %v2342
      %v2638 = vunpack.c.l.b16 %v2343
      %v2639 = vunpack.c.l.b16 %v2344
      %v2640 = vunpack.c.l.b16 %v2345
      %v2641 = vunpack.c.l.b16 %v2346
      %v2642 = vunpack.c.l.b16 %v2347
      %v2643 = vunpack.c.l.b16 %v2348
      %v2644 = vunpack.c.l.b16 %v2349
      %v2645 = vunpack.c.l.b16 %v2350
      %v2646 = vunpack.c.l.b16 %v2351
      %v2647 = vunpack.c.l.b16 %v2352
      %v2648 = vunpack.c.l.b16 %v2353
      %v2649 = vunpack.c.l.b16 %v2354
      %v2650 = vunpack.c.l.b16 %v2355
      %v2651 = vunpack.c.l.b16 %v2356
      %v2652 = vunpack.c.l.b16 %v2357
      %v2653 = vunpack.c.l.b16 %v2358
      %v2654 = vunpack.c.l.b16 %v2359
      %v2655 = vunpack.c.l.b16 %v2360
      %v2656 = vunpack.c.l.b16 %v2361
      %v2657 = vunpack.c.l.b16 %v2362
      %v2658 = vunpack.c.l.b16 %v2363
      %v2659 = vunpack.c.l.b16 %v2364
      %v2660 = vunpack.c.l.b16 %v2365
      %v2661 = vunpack.c.l.b16 %v2366
      %v2662 = vunpack.c.l.b16 %v2367
      %v2663 = vunpack.c.l.b16 %v2368
      %v2664 = vunpack.c.l.b16 %v2369
      %v2665 = vunpack.c.l.b16 %v2370
      %v2666 = vunpack.c.l.b16 %v2371
      %v2667 = vunpack.c.l.b16 %v2372
      %v2668 = vunpack.c.l.b16 %v2373
      %v2669 = vunpack.c.l.b16 %v2374
      %v2670 = vunpack.c.l.b16 %v2375
      %v2671 = vunpack.c.l.b16 %v2376
      %v2672 = vunpack.c.l.b16 %v2377
      %v2673 = vunpack.c.l.b16 %v2378
      %v2674 = vunpack.c.l.b16 %v2379
      %v2675 = vunpack.c.l.b16 %v2380
      %v2676 = vunpack.c.l.b16 %v2381
      %v2677 = vunpack.c.l.b16 %v2382
      %v2678 = vunpack.c.l.b16 %v2383
      %v2679 = vunpack.c.l.b16 %v2384
      %v2680 = vunpack.c.l.b16 %v2385
      %v2681 = vunpack.c.l.b16 %v2386
      %v2682 = vunpack.c.l.b16 %v2387
      %v2683 = vunpack.c.l.b16 %v2388
      %v2684 = vunpack.c.l.b16 %v2389
      %v2685 = vpack.c.b16 %v2542, %v2541
      %v2686 = vpack.c.b16 %v2544, %v2543
      %v2687 = vpack.c.b16 %v2546, %v2545
      %v2688 = vpack.c.b16 %v2548, %v2547
      %v2689 = vpack.c.b16 %v2550, %v2549
      %v2690 = vpack.c.b16 %v2552, %v2551
      %v2691 = vpack.c.b16 %v2554, %v2553
      %v2692 = vpack.c.b16 %v2556, %v2555
      %v2693 = vpack.c.b16 %v2558, %v2557
      %v2694 = vpack.c.b16 %v2560, %v2559
      %v2695 = vpack.c.b16 %v2562, %v2561
      %v2696 = vpack.c.b16 %v2564, %v2563
      %v2697 = vpack.c.b16 %v2566, %v2565
      %v2698 = vpack.c.b16 %v2568, %v2567
      %v2699 = vpack.c.b16 %v2570, %v2569
      %v2700 = vpack.c.b16 %v2572, %v2571
      %v2701 = vpack.c.b16 %v2574, %v2573
      %v2702 = vpack.c.b16 %v2576, %v2575
      %v2703 = vpack.c.b16 %v2578, %v2577
      %v2704 = vpack.c.b16 %v2580, %v2579
      %v2705 = vpack.c.b16 %v2582, %v2581
      %v2706 = vpack.c.b16 %v2584, %v2583
      %v2707 = vpack.c.b16 %v2586, %v2585
      %v2708 = vpack.c.b16 %v2588, %v2587
      %v2709 = vpack.c.b16 %v2590, %v2589
      %v2710 = vpack.c.b16 %v2592, %v2591
      %v2711 = vpack.c.b16 %v2594, %v2593
      %v2712 = vpack.c.b16 %v2596, %v2595
      %v2713 = vpack.c.b16 %v2598, %v2597
      %v2714 = vpack.c.b16 %v2600, %v2599
      %v2715 = vpack.c.b16 %v2602, %v2601
      %v2716 = vpack.c.b16 %v2604, %v2603
      %v2717 = vpack.c.b16 %v2606, %v2605
      %v2718 = vpack.c.b16 %v2608, %v2607
      %v2719 = vpack.c.b16 %v2610, %v2609
      %v2720 = vpack.c.b16 %v2612, %v2611
      %v2721 = vpack.c.b16 %v2614, %v2613
      %v2722 = vpack.c.b16 %v2616, %v2615
      %v2723 = vpack.c.b16 %v2618, %v2617
      %v2724 = vpack.c.b16 %v2620, %v2619
      %v2725 = vpack.c.b16 %v2622, %v2621
      %v2726 = vpack.c.b16 %v2624, %v2623
      %v2727 = vpack.c.b16 %v2626, %v2625
      %v2728 = vpack.c.b16 %v2628, %v2627
      %v2729 = vpack.c.b16 %v2630, %v2629
      %v2730 = vpack.c.b16 %v2632, %v2631
      %v2731 = vpack.c.b16 %v2634, %v2633
      %v2732 = vpack.c.b16 %v2636, %v2635
      %v2733 = vpack.c.b16 %v2638, %v2637
      %v2734 = vpack.c.b16 %v2640, %v2639
      %v2735 = vpack.c.b16 %v2642, %v2641
      %v2736 = vpack.c.b16 %v2644, %v2643
      %v2737 = vpack.c.b16 %v2646, %v2645
      %v2738 = vpack.c.b16 %v2648, %v2647
      %v2739 = vpack.c.b16 %v2650, %v2649
      %v2740 = vpack.c.b16 %v2652, %v2651
      %v2741 = vpack.c.b16 %v2654, %v2653
      %v2742 = vpack.c.b16 %v2656, %v2655
      %v2743 = vpack.c.b16 %v2658, %v2657
      %v2744 = vpack.c.b16 %v2660, %v2659
      %v2745 = vpack.c.b16 %v2662, %v2661
      %v2746 = vpack.c.b16 %v2664, %v2663
      %v2747 = vpack.c.b16 %v2666, %v2665
      %v2748 = vpack.c.b16 %v2668, %v2667
      %v2749 = vpack.c.b16 %v2670, %v2669
      %v2750 = vpack.c.b16 %v2672, %v2671
      %v2751 = vpack.c.b16 %v2674, %v2673
      %v2752 = vpack.c.b16 %v2676, %v2675
      %v2753 = vpack.c.b16 %v2678, %v2677
      %v2754 = vpack.c.b16 %v2680, %v2679
      %v2755 = vpack.c.b16 %v2682, %v2681
      %v2756 = vpack.c.b16 %v2684, %v2683
      %2829 = vmatprep.subr.bf16.mxu0 0
      %2830 = vmatpush1.bf16.msra.mxu0 %v2685
      %2831 = vmatprep.subr.bf16.mxu0 0
      %2832 = vmatpush1.bf16.msra.mxu0 %v2686
      %2833 = vmatprep.subr.bf16.mxu0 0
      %2834 = vmatpush1.bf16.msra.mxu0 %v2687
      %2835 = vmatprep.subr.bf16.mxu0 0
      %2836 = vmatpush1.bf16.msra.mxu0 %v2688
      %2837 = vmatprep.subr.bf16.mxu0 0
      %2838 = vmatpush1.bf16.msra.mxu0 %v2689
      %2839 = vmatprep.subr.bf16.mxu0 0
      %2840 = vmatpush1.bf16.msra.mxu0 %v2690
      %2841 = vmatprep.subr.bf16.mxu0 0
      %2842 = vmatpush1.bf16.msra.mxu0 %v2691
      %2843 = vmatprep.subr.bf16.mxu0 0
      %2844 = vmatpush1.bf16.msra.mxu0 %v2692
      %2845 = vmatprep.subr.bf16.mxu0 0
      %2846 = vmatpush1.bf16.msra.mxu0 %v2693
      %2847 = vmatprep.subr.bf16.mxu0 0
      %2848 = vmatpush1.bf16.msra.mxu0 %v2694
      %2849 = vmatprep.subr.bf16.mxu0 0
      %2850 = vmatpush1.bf16.msra.mxu0 %v2695
      %2851 = vmatprep.subr.bf16.mxu0 0
      %2852 = vmatpush1.bf16.msra.mxu0 %v2696
      %2853 = vmatprep.subr.bf16.mxu0 0
      %2854 = vmatpush1.bf16.msra.mxu0 %v2697
      %2855 = vmatprep.subr.bf16.mxu0 0
      %2856 = vmatpush1.bf16.msra.mxu0 %v2698
      %2857 = vmatprep.subr.bf16.mxu0 0
      %2858 = vmatpush1.bf16.msra.mxu0 %v2699
      %2859 = vmatprep.subr.bf16.mxu0 0
      %2860 = vmatpush1.bf16.msra.mxu0 %v2700
      %2861 = vmatprep.mubr.bf16.mxu0 %v2133
      %2862 = vmatmul.mubr.bf16.gmra.mrb[0].mxu0 %v2132
      %v2863 = vpop.f32.mrb[0].mxu0
      %v2864 = vadd.f32 %v2395, %v2863
      %v2865 = vpop.f32.mrb[0].mxu0
      %v2866 = vpop.f32.mrb[0].mxu0
      %v2867 = vadd.f32 %v2395, %v2866
      %v2868 = vpop.f32.mrb[0].mxu0
      %2869 = vmatprep.mubr.bf16.mxu0 %v2136
      %2870 = vmatmul.mubr.bf16.gmra.mrb[0].mxu0 %v2141
      %v2871 = vpop.f32.mrb[0].mxu0
      %v2872 = vadd.f32 %v2395, %v2871
      %v2873 = vpop.f32.mrb[0].mxu0
      %v2874 = vpop.f32.mrb[0].mxu0
      %v2875 = vadd.f32 %v2395, %v2874
      %v2876 = vpop.f32.mrb[0].mxu0
      %2877 = vmatprep.mubr.bf16.mxu0 %v2139
      %2878 = vmatmul.mubr.bf16.gmra.mrb[0].mxu0 %v2148
      %v2879 = vpop.f32.mrb[0].mxu0
      %v2880 = vadd.f32 %v2395, %v2879
      %v2881 = vpop.f32.mrb[0].mxu0
      %v2882 = vpop.f32.mrb[0].mxu0
      %v2883 = vadd.f32 %v2395, %v2882
      %v2884 = vpop.f32.mrb[0].mxu0
      %2885 = vmatprep.mubr.bf16.mxu0 %v2146
      %2886 = vmatmul.mubr.bf16.gmra.mrb[0].mxu0 %v2155
      %v2887 = vpop.f32.mrb[0].mxu0
      %v2888 = vadd.f32 %v2395, %v2887
      %v2889 = vpop.f32.mrb[0].mxu0
      %v2890 = vpop.f32.mrb[0].mxu0
      %v2891 = vadd.f32 %v2395, %v2890
      %v2892 = vpop.f32.mrb[0].mxu0
      %2893 = vmatprep.mubr.bf16.mxu0 %v2153
      %2894 = vmatmul.mubr.bf16.gmra.mrb[0].mxu0 %v2162
      %v2895 = vpop.f32.mrb[0].mxu0
      %v2896 = vadd.f32 %v2395, %v2895
      %v2897 = vpop.f32.mrb[0].mxu0
      %v2898 = vpop.f32.mrb[0].mxu0
      %v2899 = vadd.f32 %v2395, %v2898
      %v2900 = vpop.f32.mrb[0].mxu0
      %2901 = vmatprep.mubr.bf16.mxu0 %v2160
      %2902 = vmatmul.mubr.bf16.gmra.mrb[0].mxu0 %v2169
      %v2903 = vpop.f32.mrb[0].mxu0
      %v2904 = vadd.f32 %v2395, %v2903
      %v2905 = vpop.f32.mrb[0].mxu0
      %v2906 = vpop.f32.mrb[0].mxu0
      %v2907 = vadd.f32 %v2395, %v2906
      %v2908 = vpop.f32.mrb[0].mxu0
      %2909 = vmatprep.mubr.bf16.mxu0 %v2167
      %2910 = vmatmul.mubr.bf16.gmra.mrb[0].mxu0 %v2176
      %v2911 = vpop.f32.mrb[0].mxu0
      %v2912 = vadd.f32 %v2395, %v2911
      %v2913 = vpop.f32.mrb[0].mxu0
      %v2914 = vpop.f32.mrb[0].mxu0
      %v2915 = vadd.f32 %v2395, %v2914
      %v2916 = vpop.f32.mrb[0].mxu0
      %2917 = vmatprep.mubr.bf16.mxu0 %v2174
      %2918 = vmatmul.mubr.bf16.gmra.mrb[0].mxu0 %v2183
      %v2919 = vpop.f32.mrb[0].mxu0
      %v2920 = vadd.f32 %v2395, %v2919
      %v2921 = vpop.f32.mrb[0].mxu0
      %v2922 = vpop.f32.mrb[0].mxu0
      %v2923 = vadd.f32 %v2395, %v2922
      %v2924 = vpop.f32.mrb[0].mxu0
      %2925 = vmatprep.mubr.bf16.mxu0 %v2181
      %2926 = vmatmul.mubr.bf16.gmra.mrb[0].mxu0 %v2190
      %v2927 = vpop.f32.mrb[0].mxu0
      %v2928 = vadd.f32 %v2395, %v2927
      %v2929 = vpop.f32.mrb[0].mxu0
      %v2930 = vpop.f32.mrb[0].mxu0
      %v2931 = vadd.f32 %v2395, %v2930
      %v2932 = vpop.f32.mrb[0].mxu0
      %2933 = vmatprep.mubr.bf16.mxu0 %v2188
      %2934 = vmatmul.mubr.bf16.gmra.mrb[0].mxu0 %v2197
      %v2935 = vpop.f32.mrb[0].mxu0
      %v2936 = vadd.f32 %v2395, %v2935
      %v2937 = vpop.f32.mrb[0].mxu0
      %v2938 = vpop.f32.mrb[0].mxu0
      %v2939 = vadd.f32 %v2395, %v2938
      %v2940 = vpop.f32.mrb[0].mxu0
      %2941 = vmatprep.mubr.bf16.mxu0 %v2195
      %2942 = vmatmul.mubr.bf16.gmra.mrb[0].mxu0 %v2204
      %v2943 = vpop.f32.mrb[0].mxu0
      %v2944 = vadd.f32 %v2395, %v2943
      %v2945 = vpop.f32.mrb[0].mxu0
      %v2946 = vpop.f32.mrb[0].mxu0
      %v2947 = vadd.f32 %v2395, %v2946
      %v2948 = vpop.f32.mrb[0].mxu0
      %2949 = vmatprep.mubr.bf16.mxu0 %v2202
      %2950 = vmatmul.mubr.bf16.gmra.mrb[0].mxu0 %v2211
      %v2951 = vpop.f32.mrb[0].mxu0
      %v2952 = vadd.f32 %v2395, %v2951
      %v2953 = vpop.f32.mrb[0].mxu0
      %v2954 = vpop.f32.mrb[0].mxu0
      %v2955 = vadd.f32 %v2395, %v2954
      %v2956 = vpop.f32.mrb[0].mxu0
      %2957 = vmatprep.mubr.bf16.mxu0 %v2209
      %2958 = vmatmul.mubr.bf16.gmra.mrb[0].mxu0 %v2218
      %v2959 = vpop.f32.mrb[0].mxu0
      %v2960 = vadd.f32 %v2395, %v2959
      %v2961 = vpop.f32.mrb[0].mxu0
      %v2962 = vpop.f32.mrb[0].mxu0
      %v2963 = vadd.f32 %v2395, %v2962
      %v2964 = vpop.f32.mrb[0].mxu0
      %2965 = vmatprep.mubr.bf16.mxu0 %v2216
      %2966 = vmatmul.mubr.bf16.gmra.mrb[0].mxu0 %v2225
      %v2967 = vpop.f32.mrb[0].mxu0
      %v2968 = vadd.f32 %v2395, %v2967
      %v2969 = vpop.f32.mrb[0].mxu0
      %v2970 = vpop.f32.mrb[0].mxu0
      %v2971 = vadd.f32 %v2395, %v2970
      %v2972 = vpop.f32.mrb[0].mxu0
      %2973 = vmatprep.mubr.bf16.mxu0 %v2223
      %2974 = vmatmul.mubr.bf16.gmra.mrb[0].mxu0 %v2232
      %v2975 = vpop.f32.mrb[0].mxu0
      %v2976 = vadd.f32 %v2395, %v2975
      %v2977 = vpop.f32.mrb[0].mxu0
      %v2978 = vpop.f32.mrb[0].mxu0
      %v2979 = vadd.f32 %v2395, %v2978
      %v2980 = vpop.f32.mrb[0].mxu0
      %2981 = vmatprep.mubr.bf16.mxu0 %v2230
      %2982 = vmatmul.mubr.bf16.gmra.mrb[0].mxu0 %v2239
      %v2983 = vpop.f32.mrb[0].mxu0
      %v2984 = vadd.f32 %v2395, %v2983
      %v2985 = vpop.f32.mrb[0].mxu0
      %v2986 = vpop.f32.mrb[0].mxu0
      %v2987 = vadd.f32 %v2395, %v2986
      %v2988 = vpop.f32.mrb[0].mxu0
      %2989 = vdwg.mxu0
      %2990 = vmatprep.subr.bf16.mxu0 0
      %2991 = vmatpush1.bf16.msra.mxu0 %v2701
      %2992 = vmatprep.subr.bf16.mxu0 0
      %2993 = vmatpush1.bf16.msra.mxu0 %v2702
      %2994 = vmatprep.subr.bf16.mxu0 0
      %2995 = vmatpush1.bf16.msra.mxu0 %v2703
      %2996 = vmatprep.subr.bf16.mxu0 0
      %2997 = vmatpush1.bf16.msra.mxu0 %v2704
      %2998 = vmatprep.subr.bf16.mxu0 0
      %2999 = vmatpush1.bf16.msra.mxu0 %v2705
      %3000 = vmatprep.subr.bf16.mxu0 0
      %3001 = vmatpush1.bf16.msra.mxu0 %v2706
      %3002 = vmatprep.subr.bf16.mxu0 0
      %3003 = vmatpush1.bf16.msra.mxu0 %v2707
      %3004 = vmatprep.subr.bf16.mxu0 0
      %3005 = vmatpush1.bf16.msra.mxu0 %v2708
      %3006 = vmatprep.subr.bf16.mxu0 0
      %3007 = vmatpush1.bf16.msra.mxu0 %v2709
      %3008 = vmatprep.subr.bf16.mxu0 0
      %3009 = vmatpush1.bf16.msra.mxu0 %v2710
      %3010 = vmatprep.subr.bf16.mxu0 0
      %3011 = vmatpush1.bf16.msra.mxu0 %v2711
      %3012 = vmatprep.subr.bf16.mxu0 0
      %3013 = vmatpush1.bf16.msra.mxu0 %v2712
      %3014 = vmatprep.subr.bf16.mxu0 0
      %3015 = vmatpush1.bf16.msra.mxu0 %v2713
      %3016 = vmatprep.subr.bf16.mxu0 0
      %3017 = vmatpush1.bf16.msra.mxu0 %v2714
      %3018 = vmatprep.subr.bf16.mxu0 0
      %3019 = vmatpush1.bf16.msra.mxu0 %v2715
      %3020 = vmatprep.subr.bf16.mxu0 0
      %3021 = vmatpush1.bf16.msra.mxu0 %v2716
      %3022 = vmatprep.mubr.bf16.mxu0 %v2135
      %3023 = vmatmul.mubr.bf16.gmra.mrb[0].mxu0 %v2134
      %v3024 = vpop.f32.mrb[0].mxu0
      %v3025 = vadd.f32 %v2864, %v3024
      %v3026 = vpop.f32.mrb[0].mxu0
      %v3027 = vpop.f32.mrb[0].mxu0
      %v3028 = vadd.f32 %v2867, %v3027
      %v3029 = vpop.f32.mrb[0].mxu0
      %3030 = vmatprep.mubr.bf16.mxu0 %v2143
      %3031 = vmatmul.mubr.bf16.gmra.mrb[0].mxu0 %v2142
      %v3032 = vpop.f32.mrb[0].mxu0
      %v3033 = vadd.f32 %v2872, %v3032
      %v3034 = vpop.f32.mrb[0].mxu0
      %v3035 = vpop.f32.mrb[0].mxu0
      %v3036 = vadd.f32 %v2875, %v3035
      %v3037 = vpop.f32.mrb[0].mxu0
      %3038 = vmatprep.mubr.bf16.mxu0 %v2150
      %3039 = vmatmul.mubr.bf16.gmra.mrb[0].mxu0 %v2149
      %v3040 = vpop.f32.mrb[0].mxu0
      %v3041 = vadd.f32 %v2880, %v3040
      %v3042 = vpop.f32.mrb[0].mxu0
      %v3043 = vpop.f32.mrb[0].mxu0
      %v3044 = vadd.f32 %v2883, %v3043
      %v3045 = vpop.f32.mrb[0].mxu0
      %3046 = vmatprep.mubr.bf16.mxu0 %v2157
      %3047 = vmatmul.mubr.bf16.gmra.mrb[0].mxu0 %v2156
      %v3048 = vpop.f32.mrb[0].mxu0
      %v3049 = vadd.f32 %v2888, %v3048
      %v3050 = vpop.f32.mrb[0].mxu0
      %v3051 = vpop.f32.mrb[0].mxu0
      %v3052 = vadd.f32 %v2891, %v3051
      %v3053 = vpop.f32.mrb[0].mxu0
      %3054 = vmatprep.mubr.bf16.mxu0 %v2164
      %3055 = vmatmul.mubr.bf16.gmra.mrb[0].mxu0 %v2163
      %v3056 = vpop.f32.mrb[0].mxu0
      %v3057 = vadd.f32 %v2896, %v3056
      %v3058 = vpop.f32.mrb[0].mxu0
      %v3059 = vpop.f32.mrb[0].mxu0
      %v3060 = vadd.f32 %v2899, %v3059
      %v3061 = vpop.f32.mrb[0].mxu0
      %3062 = vmatprep.mubr.bf16.mxu0 %v2171
      %3063 = vmatmul.mubr.bf16.gmra.mrb[0].mxu0 %v2170
      %v3064 = vpop.f32.mrb[0].mxu0
      %v3065 = vadd.f32 %v2904, %v3064
      %v3066 = vpop.f32.mrb[0].mxu0
      %v3067 = vpop.f32.mrb[0].mxu0
      %v3068 = vadd.f32 %v2907, %v3067
      %v3069 = vpop.f32.mrb[0].mxu0
      %3070 = vmatprep.mubr.bf16.mxu0 %v2178
      %3071 = vmatmul.mubr.bf16.gmra.mrb[0].mxu0 %v2177
      %v3072 = vpop.f32.mrb[0].mxu0
      %v3073 = vadd.f32 %v2912, %v3072
      %v3074 = vpop.f32.mrb[0].mxu0
      %v3075 = vpop.f32.mrb[0].mxu0
      %v3076 = vadd.f32 %v2915, %v3075
      %v3077 = vpop.f32.mrb[0].mxu0
      %3078 = vmatprep.mubr.bf16.mxu0 %v2185
      %3079 = vmatmul.mubr.bf16.gmra.mrb[0].mxu0 %v2184
      %v3080 = vpop.f32.mrb[0].mxu0
      %v3081 = vadd.f32 %v2920, %v3080
      %v3082 = vpop.f32.mrb[0].mxu0
      %v3083 = vpop.f32.mrb[0].mxu0
      %v3084 = vadd.f32 %v2923, %v3083
      %v3085 = vpop.f32.mrb[0].mxu0
      %3086 = vmatprep.mubr.bf16.mxu0 %v2192
      %3087 = vmatmul.mubr.bf16.gmra.mrb[0].mxu0 %v2191
      %v3088 = vpop.f32.mrb[0].mxu0
      %v3089 = vadd.f32 %v2928, %v3088
      %v3090 = vpop.f32.mrb[0].mxu0
      %v3091 = vpop.f32.mrb[0].mxu0
      %v3092 = vadd.f32 %v2931, %v3091
      %v3093 = vpop.f32.mrb[0].mxu0
      %3094 = vmatprep.mubr.bf16.mxu0 %v2199
      %3095 = vmatmul.mubr.bf16.gmra.mrb[0].mxu0 %v2198
      %v3096 = vpop.f32.mrb[0].mxu0
      %v3097 = vadd.f32 %v2936, %v3096
      %v3098 = vpop.f32.mrb[0].mxu0
      %v3099 = vpop.f32.mrb[0].mxu0
      %v3100 = vadd.f32 %v2939, %v3099
      %v3101 = vpop.f32.mrb[0].mxu0
      %3102 = vmatprep.mubr.bf16.mxu0 %v2206
      %3103 = vmatmul.mubr.bf16.gmra.mrb[0].mxu0 %v2205
      %v3104 = vpop.f32.mrb[0].mxu0
      %v3105 = vadd.f32 %v2944, %v3104
      %v3106 = vpop.f32.mrb[0].mxu0
      %v3107 = vpop.f32.mrb[0].mxu0
      %v3108 = vadd.f32 %v2947, %v3107
      %v3109 = vpop.f32.mrb[0].mxu0
      %3110 = vmatprep.mubr.bf16.mxu0 %v2213
      %3111 = vmatmul.mubr.bf16.gmra.mrb[0].mxu0 %v2212
      %v3112 = vpop.f32.mrb[0].mxu0
      %v3113 = vadd.f32 %v2952, %v3112
      %v3114 = vpop.f32.mrb[0].mxu0
      %v3115 = vpop.f32.mrb[0].mxu0
      %v3116 = vadd.f32 %v2955, %v3115
      %v3117 = vpop.f32.mrb[0].mxu0
      %3118 = vmatprep.mubr.bf16.mxu0 %v2220
      %3119 = vmatmul.mubr.bf16.gmra.mrb[0].mxu0 %v2219
      %v3120 = vpop.f32.mrb[0].mxu0
      %v3121 = vadd.f32 %v2960, %v3120
      %v3122 = vpop.f32.mrb[0].mxu0
      %v3123 = vpop.f32.mrb[0].mxu0
      %v3124 = vadd.f32 %v2963, %v3123
      %v3125 = vpop.f32.mrb[0].mxu0
      %3126 = vmatprep.mubr.bf16.mxu0 %v2227
      %3127 = vmatmul.mubr.bf16.gmra.mrb[0].mxu0 %v2226
      %v3128 = vpop.f32.mrb[0].mxu0
      %v3129 = vadd.f32 %v2968, %v3128
      %v3130 = vpop.f32.mrb[0].mxu0
      %v3131 = vpop.f32.mrb[0].mxu0
      %v3132 = vadd.f32 %v2971, %v3131
      %v3133 = vpop.f32.mrb[0].mxu0
      %3134 = vmatprep.mubr.bf16.mxu0 %v2234
      %3135 = vmatmul.mubr.bf16.gmra.mrb[0].mxu0 %v2233
      %v3136 = vpop.f32.mrb[0].mxu0
      %v3137 = vadd.f32 %v2976, %v3136
      %v3138 = vpop.f32.mrb[0].mxu0
      %v3139 = vpop.f32.mrb[0].mxu0
      %v3140 = vadd.f32 %v2979, %v3139
      %v3141 = vpop.f32.mrb[0].mxu0
      %3142 = vmatprep.mubr.bf16.mxu0 %v2241
      %3143 = vmatmul.mubr.bf16.gmra.mrb[0].mxu0 %v2240
      %v3144 = vpop.f32.mrb[0].mxu0
      %v3145 = vadd.f32 %v2984, %v3144
      %v3146 = vpop.f32.mrb[0].mxu0
      %v3147 = vpop.f32.mrb[0].mxu0
      %v3148 = vadd.f32 %v2987, %v3147
      %v3149 = vpop.f32.mrb[0].mxu0
      %3150 = vdwg.mxu0
      %3151 = vmatprep.subr.bf16.mxu0 0
      %3152 = vmatpush1.bf16.msra.mxu0 %v2717
      %3153 = vmatprep.subr.bf16.mxu0 0
      %3154 = vmatpush1.bf16.msra.mxu0 %v2718
      %3155 = vmatprep.subr.bf16.mxu0 0
      %3156 = vmatpush1.bf16.msra.mxu0 %v2719
      %3157 = vmatprep.subr.bf16.mxu0 0
      %3158 = vmatpush1.bf16.msra.mxu0 %v2720
      %3159 = vmatprep.subr.bf16.mxu0 0
      %3160 = vmatpush1.bf16.msra.mxu0 %v2721
      %3161 = vmatprep.subr.bf16.mxu0 0
      %3162 = vmatpush1.bf16.msra.mxu0 %v2722
      %3163 = vmatprep.subr.bf16.mxu0 0
      %3164 = vmatpush1.bf16.msra.mxu0 %v2723
      %3165 = vmatprep.subr.bf16.mxu0 0
      %3166 = vmatpush1.bf16.msra.mxu0 %v2724
      %3167 = vmatprep.subr.bf16.mxu0 0
      %3168 = vmatpush1.bf16.msra.mxu0 %v2725
      %3169 = vmatprep.subr.bf16.mxu0 0
      %3170 = vmatpush1.bf16.msra.mxu0 %v2726
      %3171 = vmatprep.subr.bf16.mxu0 0
      %3172 = vmatpush1.bf16.msra.mxu0 %v2727
      %3173 = vmatprep.subr.bf16.mxu0 0
      %3174 = vmatpush1.bf16.msra.mxu0 %v2728
      %3175 = vmatprep.subr.bf16.mxu0 0
      %3176 = vmatpush1.bf16.msra.mxu0 %v2729
      %3177 = vmatprep.subr.bf16.mxu0 0
      %3178 = vmatpush1.bf16.msra.mxu0 %v2730
      %3179 = vmatprep.subr.bf16.mxu0 0
      %3180 = vmatpush1.bf16.msra.mxu0 %v2731
      %3181 = vmatprep.subr.bf16.mxu0 0
      %3182 = vmatpush1.bf16.msra.mxu0 %v2732
      %3183 = vmatprep.mubr.bf16.mxu0 %v2137
      %3184 = vmatmul.mubr.bf16.gmra.mrb[0].mxu0 %v2136
      %v3185 = vpop.f32.mrb[0].mxu0
      %v3186 = vadd.f32 %v3025, %v3185
      %v3187 = vpop.f32.mrb[0].mxu0
      %v3188 = vpop.f32.mrb[0].mxu0
      %v3189 = vadd.f32 %v3028, %v3188
      %v3190 = vpop.f32.mrb[0].mxu0
      %3191 = vmatprep.mubr.bf16.mxu0 %v2144
      %3192 = vmatmul.mubr.bf16.gmra.mrb[0].mxu0 %v2139
      %v3193 = vpop.f32.mrb[0].mxu0
      %v3194 = vadd.f32 %v3033, %v3193
      %v3195 = vpop.f32.mrb[0].mxu0
      %v3196 = vpop.f32.mrb[0].mxu0
      %v3197 = vadd.f32 %v3036, %v3196
      %v3198 = vpop.f32.mrb[0].mxu0
      %3199 = vmatprep.mubr.bf16.mxu0 %v2151
      %3200 = vmatmul.mubr.bf16.gmra.mrb[0].mxu0 %v2146
      %v3201 = vpop.f32.mrb[0].mxu0
      %v3202 = vadd.f32 %v3041, %v3201
      %v3203 = vpop.f32.mrb[0].mxu0
      %v3204 = vpop.f32.mrb[0].mxu0
      %v3205 = vadd.f32 %v3044, %v3204
      %v3206 = vpop.f32.mrb[0].mxu0
      %3207 = vmatprep.mubr.bf16.mxu0 %v2158
      %3208 = vmatmul.mubr.bf16.gmra.mrb[0].mxu0 %v2153
      %v3209 = vpop.f32.mrb[0].mxu0
      %v3210 = vadd.f32 %v3049, %v3209
      %v3211 = vpop.f32.mrb[0].mxu0
      %v3212 = vpop.f32.mrb[0].mxu0
      %v3213 = vadd.f32 %v3052, %v3212
      %v3214 = vpop.f32.mrb[0].mxu0
      %3215 = vmatprep.mubr.bf16.mxu0 %v2165
      %3216 = vmatmul.mubr.bf16.gmra.mrb[0].mxu0 %v2160
      %v3217 = vpop.f32.mrb[0].mxu0
      %v3218 = vadd.f32 %v3057, %v3217
      %v3219 = vpop.f32.mrb[0].mxu0
      %v3220 = vpop.f32.mrb[0].mxu0
      %v3221 = vadd.f32 %v3060, %v3220
      %v3222 = vpop.f32.mrb[0].mxu0
      %3223 = vmatprep.mubr.bf16.mxu0 %v2172
      %3224 = vmatmul.mubr.bf16.gmra.mrb[0].mxu0 %v2167
      %v3225 = vpop.f32.mrb[0].mxu0
      %v3226 = vadd.f32 %v3065, %v3225
      %v3227 = vpop.f32.mrb[0].mxu0
      %v3228 = vpop.f32.mrb[0].mxu0
      %v3229 = vadd.f32 %v3068, %v3228
      %v3230 = vpop.f32.mrb[0].mxu0
      %3231 = vmatprep.mubr.bf16.mxu0 %v2179
      %3232 = vmatmul.mubr.bf16.gmra.mrb[0].mxu0 %v2174
      %v3233 = vpop.f32.mrb[0].mxu0
      %v3234 = vadd.f32 %v3073, %v3233
      %v3235 = vpop.f32.mrb[0].mxu0
      %v3236 = vpop.f32.mrb[0].mxu0
      %v3237 = vadd.f32 %v3076, %v3236
      %v3238 = vpop.f32.mrb[0].mxu0
      %3239 = vmatprep.mubr.bf16.mxu0 %v2186
      %3240 = vmatmul.mubr.bf16.gmra.mrb[0].mxu0 %v2181
      %v3241 = vpop.f32.mrb[0].mxu0
      %v3242 = vadd.f32 %v3081, %v3241
      %v3243 = vpop.f32.mrb[0].mxu0
      %v3244 = vpop.f32.mrb[0].mxu0
      %v3245 = vadd.f32 %v3084, %v3244
      %v3246 = vpop.f32.mrb[0].mxu0
      %3247 = vmatprep.mubr.bf16.mxu0 %v2193
      %3248 = vmatmul.mubr.bf16.gmra.mrb[0].mxu0 %v2188
      %v3249 = vpop.f32.mrb[0].mxu0
      %v3250 = vadd.f32 %v3089, %v3249
      %v3251 = vpop.f32.mrb[0].mxu0
      %v3252 = vpop.f32.mrb[0].mxu0
      %v3253 = vadd.f32 %v3092, %v3252
      %v3254 = vpop.f32.mrb[0].mxu0
      %3255 = vmatprep.mubr.bf16.mxu0 %v2200
      %3256 = vmatmul.mubr.bf16.gmra.mrb[0].mxu0 %v2195
      %v3257 = vpop.f32.mrb[0].mxu0
      %v3258 = vadd.f32 %v3097, %v3257
      %v3259 = vpop.f32.mrb[0].mxu0
      %v3260 = vpop.f32.mrb[0].mxu0
      %v3261 = vadd.f32 %v3100, %v3260
      %v3262 = vpop.f32.mrb[0].mxu0
      %3263 = vmatprep.mubr.bf16.mxu0 %v2207
      %3264 = vmatmul.mubr.bf16.gmra.mrb[0].mxu0 %v2202
      %v3265 = vpop.f32.mrb[0].mxu0
      %v3266 = vadd.f32 %v3105, %v3265
      %v3267 = vpop.f32.mrb[0].mxu0
      %v3268 = vpop.f32.mrb[0].mxu0
      %v3269 = vadd.f32 %v3108, %v3268
      %v3270 = vpop.f32.mrb[0].mxu0
      %3271 = vmatprep.mubr.bf16.mxu0 %v2214
      %3272 = vmatmul.mubr.bf16.gmra.mrb[0].mxu0 %v2209
      %v3273 = vpop.f32.mrb[0].mxu0
      %v3274 = vadd.f32 %v3113, %v3273
      %v3275 = vpop.f32.mrb[0].mxu0
      %v3276 = vpop.f32.mrb[0].mxu0
      %v3277 = vadd.f32 %v3116, %v3276
      %v3278 = vpop.f32.mrb[0].mxu0
      %3279 = vmatprep.mubr.bf16.mxu0 %v2221
      %3280 = vmatmul.mubr.bf16.gmra.mrb[0].mxu0 %v2216
      %v3281 = vpop.f32.mrb[0].mxu0
      %v3282 = vadd.f32 %v3121, %v3281
      %v3283 = vpop.f32.mrb[0].mxu0
      %v3284 = vpop.f32.mrb[0].mxu0
      %v3285 = vadd.f32 %v3124, %v3284
      %v3286 = vpop.f32.mrb[0].mxu0
      %3287 = vmatprep.mubr.bf16.mxu0 %v2228
      %3288 = vmatmul.mubr.bf16.gmra.mrb[0].mxu0 %v2223
      %v3289 = vpop.f32.mrb[0].mxu0
      %v3290 = vadd.f32 %v3129, %v3289
      %v3291 = vpop.f32.mrb[0].mxu0
      %v3292 = vpop.f32.mrb[0].mxu0
      %v3293 = vadd.f32 %v3132, %v3292
      %v3294 = vpop.f32.mrb[0].mxu0
      %3295 = vmatprep.mubr.bf16.mxu0 %v2235
      %3296 = vmatmul.mubr.bf16.gmra.mrb[0].mxu0 %v2230
      %v3297 = vpop.f32.mrb[0].mxu0
      %v3298 = vadd.f32 %v3137, %v3297
      %v3299 = vpop.f32.mrb[0].mxu0
      %v3300 = vpop.f32.mrb[0].mxu0
      %v3301 = vadd.f32 %v3140, %v3300
      %v3302 = vpop.f32.mrb[0].mxu0
      %3303 = vmatprep.mubr.bf16.mxu0 %v2242
      %3304 = vmatmul.mubr.bf16.gmra.mrb[0].mxu0 %v2237
      %v3305 = vpop.f32.mrb[0].mxu0
      %v3306 = vadd.f32 %v3145, %v3305
      %v3307 = vpop.f32.mrb[0].mxu0
      %v3308 = vpop.f32.mrb[0].mxu0
      %v3309 = vadd.f32 %v3148, %v3308
      %v3310 = vpop.f32.mrb[0].mxu0
      %3311 = vdwg.mxu0
      %3312 = vmatprep.subr.bf16.mxu0 0
      %3313 = vmatpush1.bf16.msra.mxu0 %v2733
      %3314 = vmatprep.subr.bf16.mxu0 0
      %3315 = vmatpush1.bf16.msra.mxu0 %v2734
      %3316 = vmatprep.subr.bf16.mxu0 0
      %3317 = vmatpush1.bf16.msra.mxu0 %v2735
      %3318 = vmatprep.subr.bf16.mxu0 0
      %3319 = vmatpush1.bf16.msra.mxu0 %v2736
      %3320 = vmatprep.subr.bf16.mxu0 0
      %3321 = vmatpush1.bf16.msra.mxu0 %v2737
      %3322 = vmatprep.subr.bf16.mxu0 0
      %3323 = vmatpush1.bf16.msra.mxu0 %v2738
      %3324 = vmatprep.subr.bf16.mxu0 0
      %3325 = vmatpush1.bf16.msra.mxu0 %v2739
      %3326 = vmatprep.subr.bf16.mxu0 0
      %3327 = vmatpush1.bf16.msra.mxu0 %v2740
      %3328 = vmatprep.subr.bf16.mxu0 0
      %3329 = vmatpush1.bf16.msra.mxu0 %v2741
      %3330 = vmatprep.subr.bf16.mxu0 0
      %3331 = vmatpush1.bf16.msra.mxu0 %v2742
      %3332 = vmatprep.subr.bf16.mxu0 0
      %3333 = vmatpush1.bf16.msra.mxu0 %v2743
      %3334 = vmatprep.subr.bf16.mxu0 0
      %3335 = vmatpush1.bf16.msra.mxu0 %v2744
      %3336 = vmatprep.subr.bf16.mxu0 0
      %3337 = vmatpush1.bf16.msra.mxu0 %v2745
      %3338 = vmatprep.subr.bf16.mxu0 0
      %3339 = vmatpush1.bf16.msra.mxu0 %v2746
      %3340 = vmatprep.subr.bf16.mxu0 0
      %3341 = vmatpush1.bf16.msra.mxu0 %v2747
      %3342 = vmatprep.subr.bf16.mxu0 0
      %3343 = vmatpush1.bf16.msra.mxu0 %v2748
      %3344 = vmatprep.mubr.bf16.mxu0 %v2139
      %3345 = vmatmul.mubr.bf16.gmra.mrb[0].mxu0 %v2138
      %v3346 = vpop.f32.mrb[0].mxu0
      %v3347 = vadd.f32 %v3186, %v3346
      %v3348 = vpop.f32.mrb[0].mxu0
      %v3349 = vpop.f32.mrb[0].mxu0
      %v3350 = vadd.f32 %v3189, %v3349
      %v3351 = vpop.f32.mrb[0].mxu0
      %3352 = vmatprep.mubr.bf16.mxu0 %v2146
      %3353 = vmatmul.mubr.bf16.gmra.mrb[0].mxu0 %v2145
      %v3354 = vpop.f32.mrb[0].mxu0
      %v3355 = vadd.f32 %v3194, %v3354
      %v3356 = vpop.f32.mrb[0].mxu0
      %v3357 = vpop.f32.mrb[0].mxu0
      %v3358 = vadd.f32 %v3197, %v3357
      %v3359 = vpop.f32.mrb[0].mxu0
      %3360 = vmatprep.mubr.bf16.mxu0 %v2153
      %3361 = vmatmul.mubr.bf16.gmra.mrb[0].mxu0 %v2152
      %v3362 = vpop.f32.mrb[0].mxu0
      %v3363 = vadd.f32 %v3202, %v3362
      %v3364 = vpop.f32.mrb[0].mxu0
      %v3365 = vpop.f32.mrb[0].mxu0
      %v3366 = vadd.f32 %v3205, %v3365
      %v3367 = vpop.f32.mrb[0].mxu0
      %3368 = vmatprep.mubr.bf16.mxu0 %v2160
      %3369 = vmatmul.mubr.bf16.gmra.mrb[0].mxu0 %v2159
      %v3370 = vpop.f32.mrb[0].mxu0
      %v3371 = vadd.f32 %v3210, %v3370
      %v3372 = vpop.f32.mrb[0].mxu0
      %v3373 = vpop.f32.mrb[0].mxu0
      %v3374 = vadd.f32 %v3213, %v3373
      %v3375 = vpop.f32.mrb[0].mxu0
      %3376 = vmatprep.mubr.bf16.mxu0 %v2167
      %3377 = vmatmul.mubr.bf16.gmra.mrb[0].mxu0 %v2166
      %v3378 = vpop.f32.mrb[0].mxu0
      %v3379 = vadd.f32 %v3218, %v3378
      %v3380 = vpop.f32.mrb[0].mxu0
      %v3381 = vpop.f32.mrb[0].mxu0
      %v3382 = vadd.f32 %v3221, %v3381
      %v3383 = vpop.f32.mrb[0].mxu0
      %3384 = vmatprep.mubr.bf16.mxu0 %v2174
      %3385 = vmatmul.mubr.bf16.gmra.mrb[0].mxu0 %v2173
      %v3386 = vpop.f32.mrb[0].mxu0
      %v3387 = vadd.f32 %v3226, %v3386
      %v3388 = vpop.f32.mrb[0].mxu0
      %v3389 = vpop.f32.mrb[0].mxu0
      %v3390 = vadd.f32 %v3229, %v3389
      %v3391 = vpop.f32.mrb[0].mxu0
      %3392 = vmatprep.mubr.bf16.mxu0 %v2181
      %3393 = vmatmul.mubr.bf16.gmra.mrb[0].mxu0 %v2180
      %v3394 = vpop.f32.mrb[0].mxu0
      %v3395 = vadd.f32 %v3234, %v3394
      %v3396 = vpop.f32.mrb[0].mxu0
      %v3397 = vpop.f32.mrb[0].mxu0
      %v3398 = vadd.f32 %v3237, %v3397
      %v3399 = vpop.f32.mrb[0].mxu0
      %3400 = vmatprep.mubr.bf16.mxu0 %v2188
      %3401 = vmatmul.mubr.bf16.gmra.mrb[0].mxu0 %v2187
      %v3402 = vpop.f32.mrb[0].mxu0
      %v3403 = vadd.f32 %v3242, %v3402
      %v3404 = vpop.f32.mrb[0].mxu0
      %v3405 = vpop.f32.mrb[0].mxu0
      %v3406 = vadd.f32 %v3245, %v3405
      %v3407 = vpop.f32.mrb[0].mxu0
      %3408 = vmatprep.mubr.bf16.mxu0 %v2195
      %3409 = vmatmul.mubr.bf16.gmra.mrb[0].mxu0 %v2194
      %v3410 = vpop.f32.mrb[0].mxu0
      %v3411 = vadd.f32 %v3250, %v3410
      %v3412 = vpop.f32.mrb[0].mxu0
      %v3413 = vpop.f32.mrb[0].mxu0
      %v3414 = vadd.f32 %v3253, %v3413
      %v3415 = vpop.f32.mrb[0].mxu0
      %3416 = vmatprep.mubr.bf16.mxu0 %v2202
      %3417 = vmatmul.mubr.bf16.gmra.mrb[0].mxu0 %v2201
      %v3418 = vpop.f32.mrb[0].mxu0
      %v3419 = vadd.f32 %v3258, %v3418
      %v3420 = vpop.f32.mrb[0].mxu0
      %v3421 = vpop.f32.mrb[0].mxu0
      %v3422 = vadd.f32 %v3261, %v3421
      %v3423 = vpop.f32.mrb[0].mxu0
      %3424 = vmatprep.mubr.bf16.mxu0 %v2209
      %3425 = vmatmul.mubr.bf16.gmra.mrb[0].mxu0 %v2208
      %v3426 = vpop.f32.mrb[0].mxu0
      %v3427 = vadd.f32 %v3266, %v3426
      %v3428 = vpop.f32.mrb[0].mxu0
      %v3429 = vpop.f32.mrb[0].mxu0
      %v3430 = vadd.f32 %v3269, %v3429
      %v3431 = vpop.f32.mrb[0].mxu0
      %3432 = vmatprep.mubr.bf16.mxu0 %v2216
      %3433 = vmatmul.mubr.bf16.gmra.mrb[0].mxu0 %v2215
      %v3434 = vpop.f32.mrb[0].mxu0
      %v3435 = vadd.f32 %v3274, %v3434
      %v3436 = vpop.f32.mrb[0].mxu0
      %v3437 = vpop.f32.mrb[0].mxu0
      %v3438 = vadd.f32 %v3277, %v3437
      %v3439 = vpop.f32.mrb[0].mxu0
      %3440 = vmatprep.mubr.bf16.mxu0 %v2223
      %3441 = vmatmul.mubr.bf16.gmra.mrb[0].mxu0 %v2222
      %v3442 = vpop.f32.mrb[0].mxu0
      %v3443 = vadd.f32 %v3282, %v3442
      %v3444 = vpop.f32.mrb[0].mxu0
      %v3445 = vpop.f32.mrb[0].mxu0
      %v3446 = vadd.f32 %v3285, %v3445
      %v3447 = vpop.f32.mrb[0].mxu0
      %3448 = vmatprep.mubr.bf16.mxu0 %v2230
      %3449 = vmatmul.mubr.bf16.gmra.mrb[0].mxu0 %v2229
      %v3450 = vpop.f32.mrb[0].mxu0
      %v3451 = vadd.f32 %v3290, %v3450
      %v3452 = vpop.f32.mrb[0].mxu0
      %v3453 = vpop.f32.mrb[0].mxu0
      %v3454 = vadd.f32 %v3293, %v3453
      %v3455 = vpop.f32.mrb[0].mxu0
      %3456 = vmatprep.mubr.bf16.mxu0 %v2237
      %3457 = vmatmul.mubr.bf16.gmra.mrb[0].mxu0 %v2236
      %v3458 = vpop.f32.mrb[0].mxu0
      %v3459 = vadd.f32 %v3298, %v3458
      %v3460 = vpop.f32.mrb[0].mxu0
      %v3461 = vpop.f32.mrb[0].mxu0
      %v3462 = vadd.f32 %v3301, %v3461
      %v3463 = vpop.f32.mrb[0].mxu0
      %3464 = vmatprep.mubr.bf16.mxu0 %v2244
      %3465 = vmatmul.mubr.bf16.gmra.mrb[0].mxu0 %v2243
      %v3466 = vpop.f32.mrb[0].mxu0
      %v3467 = vadd.f32 %v3306, %v3466
      %v3468 = vpop.f32.mrb[0].mxu0
      %v3469 = vpop.f32.mrb[0].mxu0
      %v3470 = vadd.f32 %v3309, %v3469
      %v3471 = vpop.f32.mrb[0].mxu0
      %3472 = vdwg.mxu0
      %3473 = vmatprep.subr.bf16.mxu0 0
      %3474 = vmatpush1.bf16.msra.mxu0 %v2749
      %3475 = vmatprep.subr.bf16.mxu0 0
      %3476 = vmatpush1.bf16.msra.mxu0 %v2750
      %3477 = vmatprep.subr.bf16.mxu0 0
      %3478 = vmatpush1.bf16.msra.mxu0 %v2751
      %3479 = vmatprep.subr.bf16.mxu0 0
      %3480 = vmatpush1.bf16.msra.mxu0 %v2752
      %3481 = vmatprep.subr.bf16.mxu0 0
      %3482 = vmatpush1.bf16.msra.mxu0 %v2753
      %3483 = vmatprep.subr.bf16.mxu0 0
      %3484 = vmatpush1.bf16.msra.mxu0 %v2754
      %3485 = vmatprep.subr.bf16.mxu0 0
      %3486 = vmatpush1.bf16.msra.mxu0 %v2755
      %3487 = vmatprep.subr.bf16.mxu0 0
      %3488 = vmatpush1.bf16.msra.mxu0 %v2756
      %3489 = vmatprep.subr.bf16.mxu0 0
      %3490 = vmatpush1.bf16.msra.mxu0 0
      %3491 = vmatprep.subr.bf16.mxu0 0
      %3492 = vmatpush1.bf16.msra.mxu0 0
      %3493 = vmatprep.subr.bf16.mxu0 0
      %3494 = vmatpush1.bf16.msra.mxu0 0
      %3495 = vmatprep.subr.bf16.mxu0 0
      %3496 = vmatpush1.bf16.msra.mxu0 0
      %3497 = vmatprep.subr.bf16.mxu0 0
      %3498 = vmatpush1.bf16.msra.mxu0 0
      %3499 = vmatprep.subr.bf16.mxu0 0
      %3500 = vmatpush1.bf16.msra.mxu0 0
      %3501 = vmatprep.subr.bf16.mxu0 0
      %3502 = vmatpush1.bf16.msra.mxu0 0
      %3503 = vmatprep.subr.bf16.mxu0 0
      %3504 = vmatpush1.bf16.msra.mxu0 0
      %3505 = vmatprep.mubr.bf16.mxu0 0
      %3506 = vmatmul.mubr.bf16.gmra.mrb[0].mxu0 %v2140
      %v3507 = vpop.f32.mrb[0].mxu0
      %v3508 = vadd.f32 %v3347, %v3507
      %v3509 = vpop.f32.mrb[0].mxu0
      %v3510 = vpop.f32.mrb[0].mxu0
      %v3511 = vadd.f32 %v3350, %v3510
      %v3512 = vpop.f32.mrb[0].mxu0
      %3513 = vmatprep.mubr.bf16.mxu0 0
      %3514 = vmatmul.mubr.bf16.gmra.mrb[0].mxu0 %v2147
      %v3515 = vpop.f32.mrb[0].mxu0
      %v3516 = vadd.f32 %v3355, %v3515
      %v3517 = vpop.f32.mrb[0].mxu0
      %v3518 = vpop.f32.mrb[0].mxu0
      %v3519 = vadd.f32 %v3358, %v3518
      %v3520 = vpop.f32.mrb[0].mxu0
      %3521 = vmatprep.mubr.bf16.mxu0 0
      %3522 = vmatmul.mubr.bf16.gmra.mrb[0].mxu0 %v2154
      %v3523 = vpop.f32.mrb[0].mxu0
      %v3524 = vadd.f32 %v3363, %v3523
      %v3525 = vpop.f32.mrb[0].mxu0
      %v3526 = vpop.f32.mrb[0].mxu0
      %v3527 = vadd.f32 %v3366, %v3526
      %v3528 = vpop.f32.mrb[0].mxu0
      %3529 = vmatprep.mubr.bf16.mxu0 0
      %3530 = vmatmul.mubr.bf16.gmra.mrb[0].mxu0 %v2161
      %v3531 = vpop.f32.mrb[0].mxu0
      %v3532 = vadd.f32 %v3371, %v3531
      %v3533 = vpop.f32.mrb[0].mxu0
      %v3534 = vpop.f32.mrb[0].mxu0
      %v3535 = vadd.f32 %v3374, %v3534
      %v3536 = vpop.f32.mrb[0].mxu0
      %3537 = vmatprep.mubr.bf16.mxu0 0
      %3538 = vmatmul.mubr.bf16.gmra.mrb[0].mxu0 %v2168
      %v3539 = vpop.f32.mrb[0].mxu0
      %v3540 = vadd.f32 %v3379, %v3539
      %v3541 = vpop.f32.mrb[0].mxu0
      %v3542 = vpop.f32.mrb[0].mxu0
      %v3543 = vadd.f32 %v3382, %v3542
      %v3544 = vpop.f32.mrb[0].mxu0
      %3545 = vmatprep.mubr.bf16.mxu0 0
      %3546 = vmatmul.mubr.bf16.gmra.mrb[0].mxu0 %v2175
      %v3547 = vpop.f32.mrb[0].mxu0
      %v3548 = vadd.f32 %v3387, %v3547
      %v3549 = vpop.f32.mrb[0].mxu0
      %v3550 = vpop.f32.mrb[0].mxu0
      %v3551 = vadd.f32 %v3390, %v3550
      %v3552 = vpop.f32.mrb[0].mxu0
      %3553 = vmatprep.mubr.bf16.mxu0 0
      %3554 = vmatmul.mubr.bf16.gmra.mrb[0].mxu0 %v2182
      %v3555 = vpop.f32.mrb[0].mxu0
      %v3556 = vadd.f32 %v3395, %v3555
      %v3557 = vpop.f32.mrb[0].mxu0
      %v3558 = vpop.f32.mrb[0].mxu0
      %v3559 = vadd.f32 %v3398, %v3558
      %v3560 = vpop.f32.mrb[0].mxu0
      %3561 = vmatprep.mubr.bf16.mxu0 0
      %3562 = vmatmul.mubr.bf16.gmra.mrb[0].mxu0 %v2189
      %v3563 = vpop.f32.mrb[0].mxu0
      %v3564 = vadd.f32 %v3403, %v3563
      %v3565 = vpop.f32.mrb[0].mxu0
      %v3566 = vpop.f32.mrb[0].mxu0
      %v3567 = vadd.f32 %v3406, %v3566
      %v3568 = vpop.f32.mrb[0].mxu0
      %3569 = vmatprep.mubr.bf16.mxu0 0
      %3570 = vmatmul.mubr.bf16.gmra.mrb[0].mxu0 %v2196
      %v3571 = vpop.f32.mrb[0].mxu0
      %v3572 = vadd.f32 %v3411, %v3571
      %v3573 = vpop.f32.mrb[0].mxu0
      %v3574 = vpop.f32.mrb[0].mxu0
      %v3575 = vadd.f32 %v3414, %v3574
      %v3576 = vpop.f32.mrb[0].mxu0
      %3577 = vmatprep.mubr.bf16.mxu0 0
      %3578 = vmatmul.mubr.bf16.gmra.mrb[0].mxu0 %v2203
      %v3579 = vpop.f32.mrb[0].mxu0
      %v3580 = vadd.f32 %v3419, %v3579
      %v3581 = vpop.f32.mrb[0].mxu0
      %v3582 = vpop.f32.mrb[0].mxu0
      %v3583 = vadd.f32 %v3422, %v3582
      %v3584 = vpop.f32.mrb[0].mxu0
      %3585 = vmatprep.mubr.bf16.mxu0 0
      %3586 = vmatmul.mubr.bf16.gmra.mrb[0].mxu0 %v2210
      %v3587 = vpop.f32.mrb[0].mxu0
      %v3588 = vadd.f32 %v3427, %v3587
      %v3589 = vpop.f32.mrb[0].mxu0
      %v3590 = vpop.f32.mrb[0].mxu0
      %v3591 = vadd.f32 %v3430, %v3590
      %v3592 = vpop.f32.mrb[0].mxu0
      %3593 = vmatprep.mubr.bf16.mxu0 0
      %3594 = vmatmul.mubr.bf16.gmra.mrb[0].mxu0 %v2217
      %v3595 = vpop.f32.mrb[0].mxu0
      %v3596 = vadd.f32 %v3435, %v3595
      %v3597 = vpop.f32.mrb[0].mxu0
      %v3598 = vpop.f32.mrb[0].mxu0
      %v3599 = vadd.f32 %v3438, %v3598
      %v3600 = vpop.f32.mrb[0].mxu0
      %3601 = vmatprep.mubr.bf16.mxu0 0
      %3602 = vmatmul.mubr.bf16.gmra.mrb[0].mxu0 %v2224
      %v3603 = vpop.f32.mrb[0].mxu0
      %v3604 = vadd.f32 %v3443, %v3603
      %v3605 = vpop.f32.mrb[0].mxu0
      %v3606 = vpop.f32.mrb[0].mxu0
      %v3607 = vadd.f32 %v3446, %v3606
      %v3608 = vpop.f32.mrb[0].mxu0
      %3609 = vmatprep.mubr.bf16.mxu0 0
      %3610 = vmatmul.mubr.bf16.gmra.mrb[0].mxu0 %v2231
      %v3611 = vpop.f32.mrb[0].mxu0
      %v3612 = vadd.f32 %v3451, %v3611
      %v3613 = vpop.f32.mrb[0].mxu0
      %v3614 = vpop.f32.mrb[0].mxu0
      %v3615 = vadd.f32 %v3454, %v3614
      %v3616 = vpop.f32.mrb[0].mxu0
      %3617 = vmatprep.mubr.bf16.mxu0 0
      %3618 = vmatmul.mubr.bf16.gmra.mrb[0].mxu0 %v2238
      %v3619 = vpop.f32.mrb[0].mxu0
      %v3620 = vadd.f32 %v3459, %v3619
      %v3621 = vpop.f32.mrb[0].mxu0
      %v3622 = vpop.f32.mrb[0].mxu0
      %v3623 = vadd.f32 %v3462, %v3622
      %v3624 = vpop.f32.mrb[0].mxu0
      %3625 = vmatprep.mubr.bf16.mxu0 0
      %3626 = vmatmul.mubr.bf16.gmra.mrb[0].mxu0 %v2245
      %v3627 = vpop.f32.mrb[0].mxu0
      %v3628 = vadd.f32 %v3467, %v3627
      %v3629 = vpop.f32.mrb[0].mxu0
      %v3630 = vpop.f32.mrb[0].mxu0
      %v3631 = vadd.f32 %v3470, %v3630
      %v3632 = vpop.f32.mrb[0].mxu0
      %3633 = vdwg.mxu0
      %v3634 = vmax.f32 %v3508, 0.0
      %v3635 = vmax.f32 %v3511, 0.0
      %v3636 = vmax.f32 %v3516, 0.0
      %v3637 = vmax.f32 %v3519, 0.0
      %v3638 = vmax.f32 %v3524, 0.0
      %v3639 = vmax.f32 %v3527, 0.0
      %v3640 = vmax.f32 %v3532, 0.0
      %v3641 = vmax.f32 %v3535, 0.0
      %v3642 = vmax.f32 %v3540, 0.0
      %v3643 = vmax.f32 %v3543, 0.0
      %v3644 = vmax.f32 %v3548, 0.0
      %v3645 = vmax.f32 %v3551, 0.0
      %v3646 = vmax.f32 %v3556, 0.0
      %v3647 = vmax.f32 %v3559, 0.0
      %v3648 = vmax.f32 %v3564, 0.0
      %v3649 = vmax.f32 %v3567, 0.0
      %v3650 = vmax.f32 %v3572, 0.0
      %v3651 = vmax.f32 %v3575, 0.0
      %v3652 = vmax.f32 %v3580, 0.0
      %v3653 = vmax.f32 %v3583, 0.0
      %v3654 = vmax.f32 %v3588, 0.0
      %v3655 = vmax.f32 %v3591, 0.0
      %v3656 = vmax.f32 %v3596, 0.0
      %v3657 = vmax.f32 %v3599, 0.0
      %v3658 = vmax.f32 %v3604, 0.0
      %v3659 = vmax.f32 %v3607, 0.0
      %v3660 = vmax.f32 %v3612, 0.0
      %v3661 = vmax.f32 %v3615, 0.0
      %v3662 = vmax.f32 %v3620, 0.0
      %v3663 = vmax.f32 %v3623, 0.0
      %v3664 = vmax.f32 %v3628, 0.0
      %v3665 = vmax.f32 %v3631, 0.0
      %v3666 = vpack.c.bf16 %v3635, %v3634
      %v3667 = vpack.c.bf16 %v3637, %v3636
      %v3668 = vpack.c.bf16 %v3639, %v3638
      %v3669 = vpack.c.bf16 %v3641, %v3640
      %v3670 = vpack.c.bf16 %v3643, %v3642
      %v3671 = vpack.c.bf16 %v3645, %v3644
      %v3672 = vpack.c.bf16 %v3647, %v3646
      %v3673 = vpack.c.bf16 %v3649, %v3648
      %v3674 = vpack.c.bf16 %v3651, %v3650
      %v3675 = vpack.c.bf16 %v3653, %v3652
      %v3676 = vpack.c.bf16 %v3655, %v3654
      %v3677 = vpack.c.bf16 %v3657, %v3656
      %v3678 = vpack.c.bf16 %v3659, %v3658
      %v3679 = vpack.c.bf16 %v3661, %v3660
      %v3680 = vpack.c.bf16 %v3663, %v3662
      %v3681 = vpack.c.bf16 %v3665, %v3664
      %v3682 = vld [vmem:[%s5] sm:$0xff]
      %v3683 = vld [vmem:[%s5 + $0x8] sm:$0xff]
      %v3684 = vld [vmem:[%s5 + $0x10] sm:$0xff]
      %v3685 = vld [vmem:[%s5 + $0x18] sm:$0xff]
      %v3686 = vld [vmem:[%s5 + $0x20] sm:$0xff]
      %v3687 = vld [vmem:[%s5 + $0x28] sm:$0xff]
      %v3688 = vld [vmem:[%s5 + $0x30] sm:$0xff]
      %v3689 = vld [vmem:[%s5 + $0x38] sm:$0xff]
      %v3690 = vld [vmem:[%s5 + $0x40] sm:$0xff]
      %v3691 = vld [vmem:[%s5 + $0x48] sm:$0xff]
      %v3692 = vld [vmem:[%s5 + $0x50] sm:$0xff]
      %v3693 = vld [vmem:[%s5 + $0x58] sm:$0xff]
      %v3694 = vld [vmem:[%s5 + $0x60] sm:$0xff]
      %v3695 = vld [vmem:[%s5 + $0x68] sm:$0xff]
      %v3696 = vld [vmem:[%s5 + $0x70] sm:$0xff]
      %v3697 = vld [vmem:[%s5 + $0x78] sm:$0xff]
      %v3698 = vld [vmem:[%s5 + $0x80] sm:$0xff]
      %v3699 = vld [vmem:[%s5 + $0x88] sm:$0xff]
      %v3700 = vld [vmem:[%s5 + $0x90] sm:$0xff]
      %v3701 = vld [vmem:[%s5 + $0x98] sm:$0xff]
      %v3702 = vld [vmem:[%s5 + $0xa0] sm:$0xff]
      %v3703 = vld [vmem:[%s5 + $0xa8] sm:$0xff]
      %v3704 = vld [vmem:[%s5 + $0xb0] sm:$0xff]
      %v3705 = vld [vmem:[%s5 + $0xb8] sm:$0xff]
      %v3706 = vld [vmem:[%s5 + $0xc0] sm:$0xff]
      %v3707 = vld [vmem:[%s5 + $0xc8] sm:$0xff]
      %v3708 = vld [vmem:[%s5 + $0xd0] sm:$0xff]
      %v3709 = vld [vmem:[%s5 + $0xd8] sm:$0xff]
      %v3710 = vld [vmem:[%s5 + $0xe0] sm:$0xff]
      %v3711 = vld [vmem:[%s5 + $0xe8] sm:$0xff]
      %v3712 = vld [vmem:[%s5 + $0xf0] sm:$0xff]
      %v3713 = vld [vmem:[%s5 + $0xf8] sm:$0xff]
      %v3714 = vld [vmem:[%s6] sm:$0xf]
      %v3716 = vlaneseq
      %v3717 = vshrl.u32 %v3716, 7
      %v3718 = vsub.s32 0, %v3717
      %v3719 = vrot.slane %v3714, %v3718
      %v3720 = vlaneseq
      %v3721 = vshrl.u32 %v3720, 7
      %v3722 = vsub.s32 1, %v3721
      %v3723 = vrot.slane %v3714, %v3722
      %v3724 = vlaneseq
      %v3725 = vshrl.u32 %v3724, 7
      %v3726 = vsub.s32 2, %v3725
      %v3727 = vrot.slane %v3714, %v3726
      %v3728 = vlaneseq
      %v3729 = vshrl.u32 %v3728, 7
      %v3730 = vsub.s32 3, %v3729
      %v3731 = vrot.slane %v3714, %v3730
      %v3768 = vunpack.c.l.b16 %v3682
      %v3769 = vunpack.c.h.b16 %v3682
      %v3770 = vunpack.c.l.b16 %v3683
      %v3771 = vunpack.c.h.b16 %v3683
      %v3772 = vunpack.c.l.b16 %v3684
      %v3773 = vunpack.c.h.b16 %v3684
      %v3774 = vunpack.c.l.b16 %v3685
      %v3775 = vunpack.c.h.b16 %v3685
      %v3776 = vunpack.c.l.b16 %v3686
      %v3777 = vunpack.c.h.b16 %v3686
      %v3778 = vunpack.c.l.b16 %v3687
      %v3779 = vunpack.c.h.b16 %v3687
      %v3780 = vunpack.c.l.b16 %v3688
      %v3781 = vunpack.c.h.b16 %v3688
      %v3782 = vunpack.c.l.b16 %v3689
      %v3783 = vunpack.c.h.b16 %v3689
      %v3784 = vunpack.c.l.b16 %v3690
      %v3785 = vunpack.c.h.b16 %v3690
      %v3786 = vunpack.c.l.b16 %v3691
      %v3787 = vunpack.c.h.b16 %v3691
      %v3788 = vunpack.c.l.b16 %v3692
      %v3789 = vunpack.c.h.b16 %v3692
      %v3790 = vunpack.c.l.b16 %v3693
      %v3791 = vunpack.c.h.b16 %v3693
      %v3792 = vunpack.c.l.b16 %v3694
      %v3793 = vunpack.c.h.b16 %v3694
      %v3794 = vunpack.c.l.b16 %v3695
      %v3795 = vunpack.c.h.b16 %v3695
      %v3796 = vunpack.c.l.b16 %v3696
      %v3797 = vunpack.c.h.b16 %v3696
      %v3798 = vunpack.c.l.b16 %v3697
      %v3799 = vunpack.c.h.b16 %v3697
      %v3800 = vunpack.c.l.b16 %v3698
      %v3801 = vunpack.c.h.b16 %v3698
      %v3802 = vunpack.c.l.b16 %v3699
      %v3803 = vunpack.c.h.b16 %v3699
      %v3804 = vunpack.c.l.b16 %v3700
      %v3805 = vunpack.c.h.b16 %v3700
      %v3806 = vunpack.c.l.b16 %v3701
      %v3807 = vunpack.c.h.b16 %v3701
      %v3808 = vunpack.c.l.b16 %v3702
      %v3809 = vunpack.c.h.b16 %v3702
      %v3810 = vunpack.c.l.b16 %v3703
      %v3811 = vunpack.c.h.b16 %v3703
      %v3812 = vunpack.c.l.b16 %v3704
      %v3813 = vunpack.c.h.b16 %v3704
      %v3814 = vunpack.c.l.b16 %v3705
      %v3815 = vunpack.c.h.b16 %v3705
      %v3816 = vunpack.c.l.b16 %v3706
      %v3817 = vunpack.c.h.b16 %v3706
      %v3818 = vunpack.c.l.b16 %v3707
      %v3819 = vunpack.c.h.b16 %v3707
      %v3820 = vunpack.c.l.b16 %v3708
      %v3821 = vunpack.c.h.b16 %v3708
      %v3822 = vunpack.c.l.b16 %v3709
      %v3823 = vunpack.c.h.b16 %v3709
      %v3824 = vunpack.c.l.b16 %v3710
      %v3825 = vunpack.c.h.b16 %v3710
      %v3826 = vunpack.c.l.b16 %v3711
      %v3827 = vunpack.c.h.b16 %v3711
      %v3828 = vunpack.c.l.b16 %v3712
      %v3829 = vunpack.c.h.b16 %v3712
      %v3830 = vunpack.c.l.b16 %v3713
      %v3831 = vunpack.c.h.b16 %v3713
      %v3832 = vpack.c.b16 %v3772, %v3768
      %v3833 = vpack.c.b16 %v3773, %v3769
      %v3834 = vpack.c.b16 %v3774, %v3770
      %v3835 = vpack.c.b16 %v3775, %v3771
      %v3836 = vpack.c.b16 %v3780, %v3776
      %v3837 = vpack.c.b16 %v3781, %v3777
      %v3838 = vpack.c.b16 %v3782, %v3778
      %v3839 = vpack.c.b16 %v3783, %v3779
      %v3840 = vpack.c.b16 %v3788, %v3784
      %v3841 = vpack.c.b16 %v3789, %v3785
      %v3842 = vpack.c.b16 %v3790, %v3786
      %v3843 = vpack.c.b16 %v3791, %v3787
      %v3844 = vpack.c.b16 %v3796, %v3792
      %v3845 = vpack.c.b16 %v3797, %v3793
      %v3846 = vpack.c.b16 %v3798, %v3794
      %v3847 = vpack.c.b16 %v3799, %v3795
      %v3848 = vpack.c.b16 %v3804, %v3800
      %v3849 = vpack.c.b16 %v3805, %v3801
      %v3850 = vpack.c.b16 %v3806, %v3802
      %v3851 = vpack.c.b16 %v3807, %v3803
      %v3852 = vpack.c.b16 %v3812, %v3808
      %v3853 = vpack.c.b16 %v3813, %v3809
      %v3854 = vpack.c.b16 %v3814, %v3810
      %v3855 = vpack.c.b16 %v3815, %v3811
      %v3856 = vpack.c.b16 %v3820, %v3816
      %v3857 = vpack.c.b16 %v3821, %v3817
      %v3858 = vpack.c.b16 %v3822, %v3818
      %v3859 = vpack.c.b16 %v3823, %v3819
      %v3860 = vpack.c.b16 %v3828, %v3824
      %v3861 = vpack.c.b16 %v3829, %v3825
      %v3862 = vpack.c.b16 %v3830, %v3826
      %v3863 = vpack.c.b16 %v3831, %v3827
      %3896 = vmatprep.subr.bf16.mxu0 %v3833
      %3897 = vmatpush1.bf16.msra.mxu0 %v3832
      %3898 = vmatprep.subr.bf16.mxu0 %v3837
      %3899 = vmatpush1.bf16.msra.mxu0 %v3836
      %3900 = vmatprep.subr.bf16.mxu0 %v3841
      %3901 = vmatpush1.bf16.msra.mxu0 %v3840
      %3902 = vmatprep.subr.bf16.mxu0 %v3845
      %3903 = vmatpush1.bf16.msra.mxu0 %v3844
      %3904 = vmatprep.subr.bf16.mxu0 %v3849
      %3905 = vmatpush1.bf16.msra.mxu0 %v3848
      %3906 = vmatprep.subr.bf16.mxu0 %v3853
      %3907 = vmatpush1.bf16.msra.mxu0 %v3852
      %3908 = vmatprep.subr.bf16.mxu0 %v3857
      %3909 = vmatpush1.bf16.msra.mxu0 %v3856
      %3910 = vmatprep.subr.bf16.mxu0 %v3861
      %3911 = vmatpush1.bf16.msra.mxu0 %v3860
      %3912 = vmatprep.subr.bf16.mxu0 0
      %3913 = vmatpush1.bf16.msra.mxu0 0
      %3914 = vmatprep.subr.bf16.mxu0 0
      %3915 = vmatpush1.bf16.msra.mxu0 0
      %3916 = vmatprep.subr.bf16.mxu0 0
      %3917 = vmatpush1.bf16.msra.mxu0 0
      %3918 = vmatprep.subr.bf16.mxu0 0
      %3919 = vmatpush1.bf16.msra.mxu0 0
      %3920 = vmatprep.subr.bf16.mxu0 0
      %3921 = vmatpush1.bf16.msra.mxu0 0
      %3922 = vmatprep.subr.bf16.mxu0 0
      %3923 = vmatpush1.bf16.msra.mxu0 0
      %3924 = vmatprep.subr.bf16.mxu0 0
      %3925 = vmatpush1.bf16.msra.mxu0 0
      %3926 = vmatprep.subr.bf16.mxu0 0
      %3927 = vmatpush1.bf16.msra.mxu0 0
      %3928 = vmatprep.mubr.bf16.mxu0 0
      %3929 = vmatmul.mubr.bf16.gmra.mrb[0].mxu0 %v3666
      %v3930 = vpop.f32.mrb[0].mxu0
      %v3931 = vadd.f32 %v3719, %v3930
      %v3932 = vpop.f32.mrb[0].mxu0
      %v3933 = vadd.f32 %v3723, %v3932
      %v3934 = vpop.f32.mrb[0].mxu0
      %v3935 = vadd.f32 %v3719, %v3934
      %v3936 = vpop.f32.mrb[0].mxu0
      %v3937 = vadd.f32 %v3723, %v3936
      %3938 = vmatprep.mubr.bf16.mxu0 0
      %3939 = vmatmul.mubr.bf16.gmra.mrb[0].mxu0 %v3667
      %v3940 = vpop.f32.mrb[0].mxu0
      %v3941 = vadd.f32 %v3719, %v3940
      %v3942 = vpop.f32.mrb[0].mxu0
      %v3943 = vadd.f32 %v3723, %v3942
      %v3944 = vpop.f32.mrb[0].mxu0
      %v3945 = vadd.f32 %v3719, %v3944
      %v3946 = vpop.f32.mrb[0].mxu0
      %v3947 = vadd.f32 %v3723, %v3946
      %3948 = vmatprep.mubr.bf16.mxu0 0
      %3949 = vmatmul.mubr.bf16.gmra.mrb[0].mxu0 %v3668
      %v3950 = vpop.f32.mrb[0].mxu0
      %v3951 = vadd.f32 %v3719, %v3950
      %v3952 = vpop.f32.mrb[0].mxu0
      %v3953 = vadd.f32 %v3723, %v3952
      %v3954 = vpop.f32.mrb[0].mxu0
      %v3955 = vadd.f32 %v3719, %v3954
      %v3956 = vpop.f32.mrb[0].mxu0
      %v3957 = vadd.f32 %v3723, %v3956
      %3958 = vmatprep.mubr.bf16.mxu0 0
      %3959 = vmatmul.mubr.bf16.gmra.mrb[0].mxu0 %v3669
      %v3960 = vpop.f32.mrb[0].mxu0
      %v3961 = vadd.f32 %v3719, %v3960
      %v3962 = vpop.f32.mrb[0].mxu0
      %v3963 = vadd.f32 %v3723, %v3962
      %v3964 = vpop.f32.mrb[0].mxu0
      %v3965 = vadd.f32 %v3719, %v3964
      %v3966 = vpop.f32.mrb[0].mxu0
      %v3967 = vadd.f32 %v3723, %v3966
      %3968 = vmatprep.mubr.bf16.mxu0 0
      %3969 = vmatmul.mubr.bf16.gmra.mrb[0].mxu0 %v3670
      %v3970 = vpop.f32.mrb[0].mxu0
      %v3971 = vadd.f32 %v3719, %v3970
      %v3972 = vpop.f32.mrb[0].mxu0
      %v3973 = vadd.f32 %v3723, %v3972
      %v3974 = vpop.f32.mrb[0].mxu0
      %v3975 = vadd.f32 %v3719, %v3974
      %v3976 = vpop.f32.mrb[0].mxu0
      %v3977 = vadd.f32 %v3723, %v3976
      %3978 = vmatprep.mubr.bf16.mxu0 0
      %3979 = vmatmul.mubr.bf16.gmra.mrb[0].mxu0 %v3671
      %v3980 = vpop.f32.mrb[0].mxu0
      %v3981 = vadd.f32 %v3719, %v3980
      %v3982 = vpop.f32.mrb[0].mxu0
      %v3983 = vadd.f32 %v3723, %v3982
      %v3984 = vpop.f32.mrb[0].mxu0
      %v3985 = vadd.f32 %v3719, %v3984
      %v3986 = vpop.f32.mrb[0].mxu0
      %v3987 = vadd.f32 %v3723, %v3986
      %3988 = vmatprep.mubr.bf16.mxu0 0
      %3989 = vmatmul.mubr.bf16.gmra.mrb[0].mxu0 %v3672
      %v3990 = vpop.f32.mrb[0].mxu0
      %v3991 = vadd.f32 %v3719, %v3990
      %v3992 = vpop.f32.mrb[0].mxu0
      %v3993 = vadd.f32 %v3723, %v3992
      %v3994 = vpop.f32.mrb[0].mxu0
      %v3995 = vadd.f32 %v3719, %v3994
      %v3996 = vpop.f32.mrb[0].mxu0
      %v3997 = vadd.f32 %v3723, %v3996
      %3998 = vmatprep.mubr.bf16.mxu0 0
      %3999 = vmatmul.mubr.bf16.gmra.mrb[0].mxu0 %v3673
      %v4000 = vpop.f32.mrb[0].mxu0
      %v4001 = vadd.f32 %v3719, %v4000
      %v4002 = vpop.f32.mrb[0].mxu0
      %v4003 = vadd.f32 %v3723, %v4002
      %v4004 = vpop.f32.mrb[0].mxu0
      %v4005 = vadd.f32 %v3719, %v4004
      %v4006 = vpop.f32.mrb[0].mxu0
      %v4007 = vadd.f32 %v3723, %v4006
      %4008 = vmatprep.mubr.bf16.mxu0 0
      %4009 = vmatmul.mubr.bf16.gmra.mrb[0].mxu0 %v3674
      %v4010 = vpop.f32.mrb[0].mxu0
      %v4011 = vadd.f32 %v3719, %v4010
      %v4012 = vpop.f32.mrb[0].mxu0
      %v4013 = vadd.f32 %v3723, %v4012
      %v4014 = vpop.f32.mrb[0].mxu0
      %v4015 = vadd.f32 %v3719, %v4014
      %v4016 = vpop.f32.mrb[0].mxu0
      %v4017 = vadd.f32 %v3723, %v4016
      %4018 = vmatprep.mubr.bf16.mxu0 0
      %4019 = vmatmul.mubr.bf16.gmra.mrb[0].mxu0 %v3675
      %v4020 = vpop.f32.mrb[0].mxu0
      %v4021 = vadd.f32 %v3719, %v4020
      %v4022 = vpop.f32.mrb[0].mxu0
      %v4023 = vadd.f32 %v3723, %v4022
      %v4024 = vpop.f32.mrb[0].mxu0
      %v4025 = vadd.f32 %v3719, %v4024
      %v4026 = vpop.f32.mrb[0].mxu0
      %v4027 = vadd.f32 %v3723, %v4026
      %4028 = vmatprep.mubr.bf16.mxu0 0
      %4029 = vmatmul.mubr.bf16.gmra.mrb[0].mxu0 %v3676
      %v4030 = vpop.f32.mrb[0].mxu0
      %v4031 = vadd.f32 %v3719, %v4030
      %v4032 = vpop.f32.mrb[0].mxu0
      %v4033 = vadd.f32 %v3723, %v4032
      %v4034 = vpop.f32.mrb[0].mxu0
      %v4035 = vadd.f32 %v3719, %v4034
      %v4036 = vpop.f32.mrb[0].mxu0
      %v4037 = vadd.f32 %v3723, %v4036
      %4038 = vmatprep.mubr.bf16.mxu0 0
      %4039 = vmatmul.mubr.bf16.gmra.mrb[0].mxu0 %v3677
      %v4040 = vpop.f32.mrb[0].mxu0
      %v4041 = vadd.f32 %v3719, %v4040
      %v4042 = vpop.f32.mrb[0].mxu0
      %v4043 = vadd.f32 %v3723, %v4042
      %v4044 = vpop.f32.mrb[0].mxu0
      %v4045 = vadd.f32 %v3719, %v4044
      %v4046 = vpop.f32.mrb[0].mxu0
      %v4047 = vadd.f32 %v3723, %v4046
      %4048 = vmatprep.mubr.bf16.mxu0 0
      %4049 = vmatmul.mubr.bf16.gmra.mrb[0].mxu0 %v3678
      %v4050 = vpop.f32.mrb[0].mxu0
      %v4051 = vadd.f32 %v3719, %v4050
      %v4052 = vpop.f32.mrb[0].mxu0
      %v4053 = vadd.f32 %v3723, %v4052
      %v4054 = vpop.f32.mrb[0].mxu0
      %v4055 = vadd.f32 %v3719, %v4054
      %v4056 = vpop.f32.mrb[0].mxu0
      %v4057 = vadd.f32 %v3723, %v4056
      %4058 = vmatprep.mubr.bf16.mxu0 0
      %4059 = vmatmul.mubr.bf16.gmra.mrb[0].mxu0 %v3679
      %v4060 = vpop.f32.mrb[0].mxu0
      %v4061 = vadd.f32 %v3719, %v4060
      %v4062 = vpop.f32.mrb[0].mxu0
      %v4063 = vadd.f32 %v3723, %v4062
      %v4064 = vpop.f32.mrb[0].mxu0
      %v4065 = vadd.f32 %v3719, %v4064
      %v4066 = vpop.f32.mrb[0].mxu0
      %v4067 = vadd.f32 %v3723, %v4066
      %4068 = vmatprep.mubr.bf16.mxu0 0
      %4069 = vmatmul.mubr.bf16.gmra.mrb[0].mxu0 %v3680
      %v4070 = vpop.f32.mrb[0].mxu0
      %v4071 = vadd.f32 %v3719, %v4070
      %v4072 = vpop.f32.mrb[0].mxu0
      %v4073 = vadd.f32 %v3723, %v4072
      %v4074 = vpop.f32.mrb[0].mxu0
      %v4075 = vadd.f32 %v3719, %v4074
      %v4076 = vpop.f32.mrb[0].mxu0
      %v4077 = vadd.f32 %v3723, %v4076
      %4078 = vmatprep.mubr.bf16.mxu0 0
      %4079 = vmatmul.mubr.bf16.gmra.mrb[0].mxu0 %v3681
      %v4080 = vpop.f32.mrb[0].mxu0
      %v4081 = vadd.f32 %v3719, %v4080
      %v4082 = vpop.f32.mrb[0].mxu0
      %v4083 = vadd.f32 %v3723, %v4082
      %v4084 = vpop.f32.mrb[0].mxu0
      %v4085 = vadd.f32 %v3719, %v4084
      %v4086 = vpop.f32.mrb[0].mxu0
      %v4087 = vadd.f32 %v3723, %v4086
      %4088 = vdwg.mxu0
      %4089 = vmatprep.subr.bf16.mxu0 %v3835
      %4090 = vmatpush1.bf16.msra.mxu0 %v3834
      %4091 = vmatprep.subr.bf16.mxu0 %v3839
      %4092 = vmatpush1.bf16.msra.mxu0 %v3838
      %4093 = vmatprep.subr.bf16.mxu0 %v3843
      %4094 = vmatpush1.bf16.msra.mxu0 %v3842
      %4095 = vmatprep.subr.bf16.mxu0 %v3847
      %4096 = vmatpush1.bf16.msra.mxu0 %v3846
      %4097 = vmatprep.subr.bf16.mxu0 %v3851
      %4098 = vmatpush1.bf16.msra.mxu0 %v3850
      %4099 = vmatprep.subr.bf16.mxu0 %v3855
      %4100 = vmatpush1.bf16.msra.mxu0 %v3854
      %4101 = vmatprep.subr.bf16.mxu0 %v3859
      %4102 = vmatpush1.bf16.msra.mxu0 %v3858
      %4103 = vmatprep.subr.bf16.mxu0 %v3863
      %4104 = vmatpush1.bf16.msra.mxu0 %v3862
      %4105 = vmatprep.subr.bf16.mxu0 0
      %4106 = vmatpush1.bf16.msra.mxu0 0
      %4107 = vmatprep.subr.bf16.mxu0 0
      %4108 = vmatpush1.bf16.msra.mxu0 0
      %4109 = vmatprep.subr.bf16.mxu0 0
      %4110 = vmatpush1.bf16.msra.mxu0 0
      %4111 = vmatprep.subr.bf16.mxu0 0
      %4112 = vmatpush1.bf16.msra.mxu0 0
      %4113 = vmatprep.subr.bf16.mxu0 0
      %4114 = vmatpush1.bf16.msra.mxu0 0
      %4115 = vmatprep.subr.bf16.mxu0 0
      %4116 = vmatpush1.bf16.msra.mxu0 0
      %4117 = vmatprep.subr.bf16.mxu0 0
      %4118 = vmatpush1.bf16.msra.mxu0 0
      %4119 = vmatprep.subr.bf16.mxu0 0
      %4120 = vmatpush1.bf16.msra.mxu0 0
      %4121 = vmatprep.mubr.bf16.mxu0 0
      %4122 = vmatmul.mubr.bf16.gmra.mrb[0].mxu0 %v3666
      %v4123 = vpop.f32.mrb[0].mxu0
      %v4124 = vadd.f32 %v3727, %v4123
      %v4125 = vpop.f32.mrb[0].mxu0
      %v4126 = vadd.f32 %v3731, %v4125
      %v4127 = vpop.f32.mrb[0].mxu0
      %v4128 = vadd.f32 %v3727, %v4127
      %v4129 = vpop.f32.mrb[0].mxu0
      %v4130 = vadd.f32 %v3731, %v4129
      %4131 = vmatprep.mubr.bf16.mxu0 0
      %4132 = vmatmul.mubr.bf16.gmra.mrb[0].mxu0 %v3667
      %v4133 = vpop.f32.mrb[0].mxu0
      %v4134 = vadd.f32 %v3727, %v4133
      %v4135 = vpop.f32.mrb[0].mxu0
      %v4136 = vadd.f32 %v3731, %v4135
      %v4137 = vpop.f32.mrb[0].mxu0
      %v4138 = vadd.f32 %v3727, %v4137
      %v4139 = vpop.f32.mrb[0].mxu0
      %v4140 = vadd.f32 %v3731, %v4139
      %4141 = vmatprep.mubr.bf16.mxu0 0
      %4142 = vmatmul.mubr.bf16.gmra.mrb[0].mxu0 %v3668
      %v4143 = vpop.f32.mrb[0].mxu0
      %v4144 = vadd.f32 %v3727, %v4143
      %v4145 = vpop.f32.mrb[0].mxu0
      %v4146 = vadd.f32 %v3731, %v4145
      %v4147 = vpop.f32.mrb[0].mxu0
      %v4148 = vadd.f32 %v3727, %v4147
      %v4149 = vpop.f32.mrb[0].mxu0
      %v4150 = vadd.f32 %v3731, %v4149
      %4151 = vmatprep.mubr.bf16.mxu0 0
      %4152 = vmatmul.mubr.bf16.gmra.mrb[0].mxu0 %v3669
      %v4153 = vpop.f32.mrb[0].mxu0
      %v4154 = vadd.f32 %v3727, %v4153
      %v4155 = vpop.f32.mrb[0].mxu0
      %v4156 = vadd.f32 %v3731, %v4155
      %v4157 = vpop.f32.mrb[0].mxu0
      %v4158 = vadd.f32 %v3727, %v4157
      %v4159 = vpop.f32.mrb[0].mxu0
      %v4160 = vadd.f32 %v3731, %v4159
      %4161 = vmatprep.mubr.bf16.mxu0 0
      %4162 = vmatmul.mubr.bf16.gmra.mrb[0].mxu0 %v3670
      %v4163 = vpop.f32.mrb[0].mxu0
      %v4164 = vadd.f32 %v3727, %v4163
      %v4165 = vpop.f32.mrb[0].mxu0
      %v4166 = vadd.f32 %v3731, %v4165
      %v4167 = vpop.f32.mrb[0].mxu0
      %v4168 = vadd.f32 %v3727, %v4167
      %v4169 = vpop.f32.mrb[0].mxu0
      %v4170 = vadd.f32 %v3731, %v4169
      %4171 = vmatprep.mubr.bf16.mxu0 0
      %4172 = vmatmul.mubr.bf16.gmra.mrb[0].mxu0 %v3671
      %v4173 = vpop.f32.mrb[0].mxu0
      %v4174 = vadd.f32 %v3727, %v4173
      %v4175 = vpop.f32.mrb[0].mxu0
      %v4176 = vadd.f32 %v3731, %v4175
      %v4177 = vpop.f32.mrb[0].mxu0
      %v4178 = vadd.f32 %v3727, %v4177
      %v4179 = vpop.f32.mrb[0].mxu0
      %v4180 = vadd.f32 %v3731, %v4179
      %4181 = vmatprep.mubr.bf16.mxu0 0
      %4182 = vmatmul.mubr.bf16.gmra.mrb[0].mxu0 %v3672
      %v4183 = vpop.f32.mrb[0].mxu0
      %v4184 = vadd.f32 %v3727, %v4183
      %v4185 = vpop.f32.mrb[0].mxu0
      %v4186 = vadd.f32 %v3731, %v4185
      %v4187 = vpop.f32.mrb[0].mxu0
      %v4188 = vadd.f32 %v3727, %v4187
      %v4189 = vpop.f32.mrb[0].mxu0
      %v4190 = vadd.f32 %v3731, %v4189
      %4191 = vmatprep.mubr.bf16.mxu0 0
      %4192 = vmatmul.mubr.bf16.gmra.mrb[0].mxu0 %v3673
      %v4193 = vpop.f32.mrb[0].mxu0
      %v4194 = vadd.f32 %v3727, %v4193
      %v4195 = vpop.f32.mrb[0].mxu0
      %v4196 = vadd.f32 %v3731, %v4195
      %v4197 = vpop.f32.mrb[0].mxu0
      %v4198 = vadd.f32 %v3727, %v4197
      %v4199 = vpop.f32.mrb[0].mxu0
      %v4200 = vadd.f32 %v3731, %v4199
      %4201 = vmatprep.mubr.bf16.mxu0 0
      %4202 = vmatmul.mubr.bf16.gmra.mrb[0].mxu0 %v3674
      %v4203 = vpop.f32.mrb[0].mxu0
      %v4204 = vadd.f32 %v3727, %v4203
      %v4205 = vpop.f32.mrb[0].mxu0
      %v4206 = vadd.f32 %v3731, %v4205
      %v4207 = vpop.f32.mrb[0].mxu0
      %v4208 = vadd.f32 %v3727, %v4207
      %v4209 = vpop.f32.mrb[0].mxu0
      %v4210 = vadd.f32 %v3731, %v4209
      %4211 = vmatprep.mubr.bf16.mxu0 0
      %4212 = vmatmul.mubr.bf16.gmra.mrb[0].mxu0 %v3675
      %v4213 = vpop.f32.mrb[0].mxu0
      %v4214 = vadd.f32 %v3727, %v4213
      %v4215 = vpop.f32.mrb[0].mxu0
      %v4216 = vadd.f32 %v3731, %v4215
      %v4217 = vpop.f32.mrb[0].mxu0
      %v4218 = vadd.f32 %v3727, %v4217
      %v4219 = vpop.f32.mrb[0].mxu0
      %v4220 = vadd.f32 %v3731, %v4219
      %4221 = vmatprep.mubr.bf16.mxu0 0
      %4222 = vmatmul.mubr.bf16.gmra.mrb[0].mxu0 %v3676
      %v4223 = vpop.f32.mrb[0].mxu0
      %v4224 = vadd.f32 %v3727, %v4223
      %v4225 = vpop.f32.mrb[0].mxu0
      %v4226 = vadd.f32 %v3731, %v4225
      %v4227 = vpop.f32.mrb[0].mxu0
      %v4228 = vadd.f32 %v3727, %v4227
      %v4229 = vpop.f32.mrb[0].mxu0
      %v4230 = vadd.f32 %v3731, %v4229
      %4231 = vmatprep.mubr.bf16.mxu0 0
      %4232 = vmatmul.mubr.bf16.gmra.mrb[0].mxu0 %v3677
      %v4233 = vpop.f32.mrb[0].mxu0
      %v4234 = vadd.f32 %v3727, %v4233
      %v4235 = vpop.f32.mrb[0].mxu0
      %v4236 = vadd.f32 %v3731, %v4235
      %v4237 = vpop.f32.mrb[0].mxu0
      %v4238 = vadd.f32 %v3727, %v4237
      %v4239 = vpop.f32.mrb[0].mxu0
      %v4240 = vadd.f32 %v3731, %v4239
      %4241 = vmatprep.mubr.bf16.mxu0 0
      %4242 = vmatmul.mubr.bf16.gmra.mrb[0].mxu0 %v3678
      %v4243 = vpop.f32.mrb[0].mxu0
      %v4244 = vadd.f32 %v3727, %v4243
      %v4245 = vpop.f32.mrb[0].mxu0
      %v4246 = vadd.f32 %v3731, %v4245
      %v4247 = vpop.f32.mrb[0].mxu0
      %v4248 = vadd.f32 %v3727, %v4247
      %v4249 = vpop.f32.mrb[0].mxu0
      %v4250 = vadd.f32 %v3731, %v4249
      %4251 = vmatprep.mubr.bf16.mxu0 0
      %4252 = vmatmul.mubr.bf16.gmra.mrb[0].mxu0 %v3679
      %v4253 = vpop.f32.mrb[0].mxu0
      %v4254 = vadd.f32 %v3727, %v4253
      %v4255 = vpop.f32.mrb[0].mxu0
      %v4256 = vadd.f32 %v3731, %v4255
      %v4257 = vpop.f32.mrb[0].mxu0
      %v4258 = vadd.f32 %v3727, %v4257
      %v4259 = vpop.f32.mrb[0].mxu0
      %v4260 = vadd.f32 %v3731, %v4259
      %4261 = vmatprep.mubr.bf16.mxu0 0
      %4262 = vmatmul.mubr.bf16.gmra.mrb[0].mxu0 %v3680
      %v4263 = vpop.f32.mrb[0].mxu0
      %v4264 = vadd.f32 %v3727, %v4263
      %v4265 = vpop.f32.mrb[0].mxu0
      %v4266 = vadd.f32 %v3731, %v4265
      %v4267 = vpop.f32.mrb[0].mxu0
      %v4268 = vadd.f32 %v3727, %v4267
      %v4269 = vpop.f32.mrb[0].mxu0
      %v4270 = vadd.f32 %v3731, %v4269
      %4271 = vmatprep.mubr.bf16.mxu0 0
      %4272 = vmatmul.mubr.bf16.gmra.mrb[0].mxu0 %v3681
      %v4273 = vpop.f32.mrb[0].mxu0
      %v4274 = vadd.f32 %v3727, %v4273
      %v4275 = vpop.f32.mrb[0].mxu0
      %v4276 = vadd.f32 %v3731, %v4275
      %v4277 = vpop.f32.mrb[0].mxu0
      %v4278 = vadd.f32 %v3727, %v4277
      %v4279 = vpop.f32.mrb[0].mxu0
      %v4280 = vadd.f32 %v3731, %v4279
      %4281 = vdwg.mxu0
      %v4282 = vmax.f32 %v3931, 0.0
      %v4283 = vmax.f32 %v3933, 0.0
      %v4284 = vmax.f32 %v4124, 0.0
      %v4285 = vmax.f32 %v4126, 0.0
      %v4286 = vmax.f32 %v3935, 0.0
      %v4287 = vmax.f32 %v3937, 0.0
      %v4288 = vmax.f32 %v4128, 0.0
      %v4289 = vmax.f32 %v4130, 0.0
      %v4290 = vmax.f32 %v3941, 0.0
      %v4291 = vmax.f32 %v3943, 0.0
      %v4292 = vmax.f32 %v4134, 0.0
      %v4293 = vmax.f32 %v4136, 0.0
      %v4294 = vmax.f32 %v3945, 0.0
      %v4295 = vmax.f32 %v3947, 0.0
      %v4296 = vmax.f32 %v4138, 0.0
      %v4297 = vmax.f32 %v4140, 0.0
      %v4298 = vmax.f32 %v3951, 0.0
      %v4299 = vmax.f32 %v3953, 0.0
      %v4300 = vmax.f32 %v4144, 0.0
      %v4301 = vmax.f32 %v4146, 0.0
      %v4302 = vmax.f32 %v3955, 0.0
      %v4303 = vmax.f32 %v3957, 0.0
      %v4304 = vmax.f32 %v4148, 0.0
      %v4305 = vmax.f32 %v4150, 0.0
      %v4306 = vmax.f32 %v3961, 0.0
      %v4307 = vmax.f32 %v3963, 0.0
      %v4308 = vmax.f32 %v4154, 0.0
      %v4309 = vmax.f32 %v4156, 0.0
      %v4310 = vmax.f32 %v3965, 0.0
      %v4311 = vmax.f32 %v3967, 0.0
      %v4312 = vmax.f32 %v4158, 0.0
      %v4313 = vmax.f32 %v4160, 0.0
      %v4314 = vmax.f32 %v3971, 0.0
      %v4315 = vmax.f32 %v3973, 0.0
      %v4316 = vmax.f32 %v4164, 0.0
      %v4317 = vmax.f32 %v4166, 0.0
      %v4318 = vmax.f32 %v3975, 0.0
      %v4319 = vmax.f32 %v3977, 0.0
      %v4320 = vmax.f32 %v4168, 0.0
      %v4321 = vmax.f32 %v4170, 0.0
      %v4322 = vmax.f32 %v3981, 0.0
      %v4323 = vmax.f32 %v3983, 0.0
      %v4324 = vmax.f32 %v4174, 0.0
      %v4325 = vmax.f32 %v4176, 0.0
      %v4326 = vmax.f32 %v3985, 0.0
      %v4327 = vmax.f32 %v3987, 0.0
      %v4328 = vmax.f32 %v4178, 0.0
      %v4329 = vmax.f32 %v4180, 0.0
      %v4330 = vmax.f32 %v3991, 0.0
      %v4331 = vmax.f32 %v3993, 0.0
      %v4332 = vmax.f32 %v4184, 0.0
      %v4333 = vmax.f32 %v4186, 0.0
      %v4334 = vmax.f32 %v3995, 0.0
      %v4335 = vmax.f32 %v3997, 0.0
      %v4336 = vmax.f32 %v4188, 0.0
      %v4337 = vmax.f32 %v4190, 0.0
      %v4338 = vmax.f32 %v4001, 0.0
      %v4339 = vmax.f32 %v4003, 0.0
      %v4340 = vmax.f32 %v4194, 0.0
      %v4341 = vmax.f32 %v4196, 0.0
      %v4342 = vmax.f32 %v4005, 0.0
      %v4343 = vmax.f32 %v4007, 0.0
      %v4344 = vmax.f32 %v4198, 0.0
      %v4345 = vmax.f32 %v4200, 0.0
      %v4346 = vmax.f32 %v4011, 0.0
      %v4347 = vmax.f32 %v4013, 0.0
      %v4348 = vmax.f32 %v4204, 0.0
      %v4349 = vmax.f32 %v4206, 0.0
      %v4350 = vmax.f32 %v4015, 0.0
      %v4351 = vmax.f32 %v4017, 0.0
      %v4352 = vmax.f32 %v4208, 0.0
      %v4353 = vmax.f32 %v4210, 0.0
      %v4354 = vmax.f32 %v4021, 0.0
      %v4355 = vmax.f32 %v4023, 0.0
      %v4356 = vmax.f32 %v4214, 0.0
      %v4357 = vmax.f32 %v4216, 0.0
      %v4358 = vmax.f32 %v4025, 0.0
      %v4359 = vmax.f32 %v4027, 0.0
      %v4360 = vmax.f32 %v4218, 0.0
      %v4361 = vmax.f32 %v4220, 0.0
      %v4362 = vmax.f32 %v4031, 0.0
      %v4363 = vmax.f32 %v4033, 0.0
      %v4364 = vmax.f32 %v4224, 0.0
      %v4365 = vmax.f32 %v4226, 0.0
      %v4366 = vmax.f32 %v4035, 0.0
      %v4367 = vmax.f32 %v4037, 0.0
      %v4368 = vmax.f32 %v4228, 0.0
      %v4369 = vmax.f32 %v4230, 0.0
      %v4370 = vmax.f32 %v4041, 0.0
      %v4371 = vmax.f32 %v4043, 0.0
      %v4372 = vmax.f32 %v4234, 0.0
      %v4373 = vmax.f32 %v4236, 0.0
      %v4374 = vmax.f32 %v4045, 0.0
      %v4375 = vmax.f32 %v4047, 0.0
      %v4376 = vmax.f32 %v4238, 0.0
      %v4377 = vmax.f32 %v4240, 0.0
      %v4378 = vmax.f32 %v4051, 0.0
      %v4379 = vmax.f32 %v4053, 0.0
      %v4380 = vmax.f32 %v4244, 0.0
      %v4381 = vmax.f32 %v4246, 0.0
      %v4382 = vmax.f32 %v4055, 0.0
      %v4383 = vmax.f32 %v4057, 0.0
      %v4384 = vmax.f32 %v4248, 0.0
      %v4385 = vmax.f32 %v4250, 0.0
      %v4386 = vmax.f32 %v4061, 0.0
      %v4387 = vmax.f32 %v4063, 0.0
      %v4388 = vmax.f32 %v4254, 0.0
      %v4389 = vmax.f32 %v4256, 0.0
      %v4390 = vmax.f32 %v4065, 0.0
      %v4391 = vmax.f32 %v4067, 0.0
      %v4392 = vmax.f32 %v4258, 0.0
      %v4393 = vmax.f32 %v4260, 0.0
      %v4394 = vmax.f32 %v4071, 0.0
      %v4395 = vmax.f32 %v4073, 0.0
      %v4396 = vmax.f32 %v4264, 0.0
      %v4397 = vmax.f32 %v4266, 0.0
      %v4398 = vmax.f32 %v4075, 0.0
      %v4399 = vmax.f32 %v4077, 0.0
      %v4400 = vmax.f32 %v4268, 0.0
      %v4401 = vmax.f32 %v4270, 0.0
      %v4402 = vmax.f32 %v4081, 0.0
      %v4403 = vmax.f32 %v4083, 0.0
      %v4404 = vmax.f32 %v4274, 0.0
      %v4405 = vmax.f32 %v4276, 0.0
      %v4406 = vmax.f32 %v4085, 0.0
      %v4407 = vmax.f32 %v4087, 0.0
      %v4408 = vmax.f32 %v4278, 0.0
      %v4409 = vmax.f32 %v4280, 0.0
      %v4410 = vunpack.c.l.bf16 %v280
      %v4411 = vunpack.c.h.bf16 %v280
      %v4412 = vunpack.c.l.bf16 %v281
      %v4413 = vunpack.c.h.bf16 %v281
      %v4414 = vunpack.c.l.bf16 %v282
      %v4415 = vunpack.c.h.bf16 %v282
      %v4416 = vunpack.c.l.bf16 %v283
      %v4417 = vunpack.c.h.bf16 %v283
      %v4418 = vunpack.c.l.bf16 %v284
      %v4419 = vunpack.c.h.bf16 %v284
      %v4420 = vunpack.c.l.bf16 %v285
      %v4421 = vunpack.c.h.bf16 %v285
      %v4422 = vunpack.c.l.bf16 %v286
      %v4423 = vunpack.c.h.bf16 %v286
      %v4424 = vunpack.c.l.bf16 %v287
      %v4425 = vunpack.c.h.bf16 %v287
      %v4426 = vunpack.c.l.bf16 %v288
      %v4427 = vunpack.c.h.bf16 %v288
      %v4428 = vunpack.c.l.bf16 %v289
      %v4429 = vunpack.c.h.bf16 %v289
      %v4430 = vunpack.c.l.bf16 %v290
      %v4431 = vunpack.c.h.bf16 %v290
      %v4432 = vunpack.c.l.bf16 %v291
      %v4433 = vunpack.c.h.bf16 %v291
      %v4434 = vunpack.c.l.bf16 %v292
      %v4435 = vunpack.c.h.bf16 %v292
      %v4436 = vunpack.c.l.bf16 %v293
      %v4437 = vunpack.c.h.bf16 %v293
      %v4438 = vunpack.c.l.bf16 %v294
      %v4439 = vunpack.c.h.bf16 %v294
      %v4440 = vunpack.c.l.bf16 %v295
      %v4441 = vunpack.c.h.bf16 %v295
      %v4442 = vunpack.c.l.bf16 %v296
      %v4443 = vunpack.c.h.bf16 %v296
      %v4444 = vunpack.c.l.bf16 %v297
      %v4445 = vunpack.c.h.bf16 %v297
      %v4446 = vunpack.c.l.bf16 %v298
      %v4447 = vunpack.c.h.bf16 %v298
      %v4448 = vunpack.c.l.bf16 %v299
      %v4449 = vunpack.c.h.bf16 %v299
      %v4450 = vunpack.c.l.bf16 %v300
      %v4451 = vunpack.c.h.bf16 %v300
      %v4452 = vunpack.c.l.bf16 %v301
      %v4453 = vunpack.c.h.bf16 %v301
      %v4454 = vunpack.c.l.bf16 %v302
      %v4455 = vunpack.c.h.bf16 %v302
      %v4456 = vunpack.c.l.bf16 %v303
      %v4457 = vunpack.c.h.bf16 %v303
      %v4458 = vunpack.c.l.bf16 %v304
      %v4459 = vunpack.c.h.bf16 %v304
      %v4460 = vunpack.c.l.bf16 %v305
      %v4461 = vunpack.c.h.bf16 %v305
      %v4462 = vunpack.c.l.bf16 %v306
      %v4463 = vunpack.c.h.bf16 %v306
      %v4464 = vunpack.c.l.bf16 %v307
      %v4465 = vunpack.c.h.bf16 %v307
      %v4466 = vunpack.c.l.bf16 %v308
      %v4467 = vunpack.c.h.bf16 %v308
      %v4468 = vunpack.c.l.bf16 %v309
      %v4469 = vunpack.c.h.bf16 %v309
      %v4470 = vunpack.c.l.bf16 %v310
      %v4471 = vunpack.c.h.bf16 %v310
      %v4472 = vunpack.c.l.bf16 %v311
      %v4473 = vunpack.c.h.bf16 %v311
      %v4474 = vunpack.c.l.bf16 %v312
      %v4475 = vunpack.c.h.bf16 %v312
      %v4476 = vunpack.c.l.bf16 %v313
      %v4477 = vunpack.c.h.bf16 %v313
      %v4478 = vunpack.c.l.bf16 %v314
      %v4479 = vunpack.c.h.bf16 %v314
      %v4480 = vunpack.c.l.bf16 %v315
      %v4481 = vunpack.c.h.bf16 %v315
      %v4482 = vunpack.c.l.bf16 %v316
      %v4483 = vunpack.c.h.bf16 %v316
      %v4484 = vunpack.c.l.bf16 %v317
      %v4485 = vunpack.c.h.bf16 %v317
      %v4486 = vunpack.c.l.bf16 %v318
      %v4487 = vunpack.c.h.bf16 %v318
      %v4488 = vunpack.c.l.bf16 %v319
      %v4489 = vunpack.c.h.bf16 %v319
      %v4490 = vunpack.c.l.bf16 %v320
      %v4491 = vunpack.c.h.bf16 %v320
      %v4492 = vunpack.c.l.bf16 %v321
      %v4493 = vunpack.c.h.bf16 %v321
      %v4494 = vunpack.c.l.bf16 %v322
      %v4495 = vunpack.c.h.bf16 %v322
      %v4496 = vunpack.c.l.bf16 %v323
      %v4497 = vunpack.c.h.bf16 %v323
      %v4498 = vunpack.c.l.bf16 %v324
      %v4499 = vunpack.c.h.bf16 %v324
      %v4500 = vunpack.c.l.bf16 %v325
      %v4501 = vunpack.c.h.bf16 %v325
      %v4502 = vunpack.c.l.bf16 %v326
      %v4503 = vunpack.c.h.bf16 %v326
      %v4504 = vunpack.c.l.bf16 %v327
      %v4505 = vunpack.c.h.bf16 %v327
      %v4506 = vunpack.c.l.bf16 %v328
      %v4507 = vunpack.c.h.bf16 %v328
      %v4508 = vunpack.c.l.bf16 %v329
      %v4509 = vunpack.c.h.bf16 %v329
      %v4510 = vunpack.c.l.bf16 %v330
      %v4511 = vunpack.c.h.bf16 %v330
      %v4512 = vunpack.c.l.bf16 %v331
      %v4513 = vunpack.c.h.bf16 %v331
      %v4514 = vunpack.c.l.bf16 %v332
      %v4515 = vunpack.c.h.bf16 %v332
      %v4516 = vunpack.c.l.bf16 %v333
      %v4517 = vunpack.c.h.bf16 %v333
      %v4518 = vunpack.c.l.bf16 %v334
      %v4519 = vunpack.c.h.bf16 %v334
      %v4520 = vunpack.c.l.bf16 %v335
      %v4521 = vunpack.c.h.bf16 %v335
      %v4522 = vunpack.c.l.bf16 %v336
      %v4523 = vunpack.c.h.bf16 %v336
      %v4524 = vunpack.c.l.bf16 %v337
      %v4525 = vunpack.c.h.bf16 %v337
      %v4526 = vunpack.c.l.bf16 %v338
      %v4527 = vunpack.c.h.bf16 %v338
      %v4528 = vunpack.c.l.bf16 %v339
      %v4529 = vunpack.c.h.bf16 %v339
      %v4530 = vunpack.c.l.bf16 %v340
      %v4531 = vunpack.c.h.bf16 %v340
      %v4532 = vunpack.c.l.bf16 %v341
      %v4533 = vunpack.c.h.bf16 %v341
      %v4534 = vunpack.c.l.bf16 %v342
      %v4535 = vunpack.c.h.bf16 %v342
      %v4536 = vunpack.c.l.bf16 %v343
      %v4537 = vunpack.c.h.bf16 %v343
      %v4538 = vadd.f32 %v4282, %v4410
      %v4539 = vadd.f32 %v4283, %v4411
      %v4540 = vadd.f32 %v4284, %v4412
      %v4541 = vadd.f32 %v4285, %v4413
      %v4542 = vadd.f32 %v4286, %v4414
      %v4543 = vadd.f32 %v4287, %v4415
      %v4544 = vadd.f32 %v4288, %v4416
      %v4545 = vadd.f32 %v4289, %v4417
      %v4546 = vadd.f32 %v4290, %v4418
      %v4547 = vadd.f32 %v4291, %v4419
      %v4548 = vadd.f32 %v4292, %v4420
      %v4549 = vadd.f32 %v4293, %v4421
      %v4550 = vadd.f32 %v4294, %v4422
      %v4551 = vadd.f32 %v4295, %v4423
      %v4552 = vadd.f32 %v4296, %v4424
      %v4553 = vadd.f32 %v4297, %v4425
      %v4554 = vadd.f32 %v4298, %v4426
      %v4555 = vadd.f32 %v4299, %v4427
      %v4556 = vadd.f32 %v4300, %v4428
      %v4557 = vadd.f32 %v4301, %v4429
      %v4558 = vadd.f32 %v4302, %v4430
      %v4559 = vadd.f32 %v4303, %v4431
      %v4560 = vadd.f32 %v4304, %v4432
      %v4561 = vadd.f32 %v4305, %v4433
      %v4562 = vadd.f32 %v4306, %v4434
      %v4563 = vadd.f32 %v4307, %v4435
      %v4564 = vadd.f32 %v4308, %v4436
      %v4565 = vadd.f32 %v4309, %v4437
      %v4566 = vadd.f32 %v4310, %v4438
      %v4567 = vadd.f32 %v4311, %v4439
      %v4568 = vadd.f32 %v4312, %v4440
      %v4569 = vadd.f32 %v4313, %v4441
      %v4570 = vadd.f32 %v4314, %v4442
      %v4571 = vadd.f32 %v4315, %v4443
      %v4572 = vadd.f32 %v4316, %v4444
      %v4573 = vadd.f32 %v4317, %v4445
      %v4574 = vadd.f32 %v4318, %v4446
      %v4575 = vadd.f32 %v4319, %v4447
      %v4576 = vadd.f32 %v4320, %v4448
      %v4577 = vadd.f32 %v4321, %v4449
      %v4578 = vadd.f32 %v4322, %v4450
      %v4579 = vadd.f32 %v4323, %v4451
      %v4580 = vadd.f32 %v4324, %v4452
      %v4581 = vadd.f32 %v4325, %v4453
      %v4582 = vadd.f32 %v4326, %v4454
      %v4583 = vadd.f32 %v4327, %v4455
      %v4584 = vadd.f32 %v4328, %v4456
      %v4585 = vadd.f32 %v4329, %v4457
      %v4586 = vadd.f32 %v4330, %v4458
      %v4587 = vadd.f32 %v4331, %v4459
      %v4588 = vadd.f32 %v4332, %v4460
      %v4589 = vadd.f32 %v4333, %v4461
      %v4590 = vadd.f32 %v4334, %v4462
      %v4591 = vadd.f32 %v4335, %v4463
      %v4592 = vadd.f32 %v4336, %v4464
      %v4593 = vadd.f32 %v4337, %v4465
      %v4594 = vadd.f32 %v4338, %v4466
      %v4595 = vadd.f32 %v4339, %v4467
      %v4596 = vadd.f32 %v4340, %v4468
      %v4597 = vadd.f32 %v4341, %v4469
      %v4598 = vadd.f32 %v4342, %v4470
      %v4599 = vadd.f32 %v4343, %v4471
      %v4600 = vadd.f32 %v4344, %v4472
      %v4601 = vadd.f32 %v4345, %v4473
      %v4602 = vadd.f32 %v4346, %v4474
      %v4603 = vadd.f32 %v4347, %v4475
      %v4604 = vadd.f32 %v4348, %v4476
      %v4605 = vadd.f32 %v4349, %v4477
      %v4606 = vadd.f32 %v4350, %v4478
      %v4607 = vadd.f32 %v4351, %v4479
      %v4608 = vadd.f32 %v4352, %v4480
      %v4609 = vadd.f32 %v4353, %v4481
      %v4610 = vadd.f32 %v4354, %v4482
      %v4611 = vadd.f32 %v4355, %v4483
      %v4612 = vadd.f32 %v4356, %v4484
      %v4613 = vadd.f32 %v4357, %v4485
      %v4614 = vadd.f32 %v4358, %v4486
      %v4615 = vadd.f32 %v4359, %v4487
      %v4616 = vadd.f32 %v4360, %v4488
      %v4617 = vadd.f32 %v4361, %v4489
      %v4618 = vadd.f32 %v4362, %v4490
      %v4619 = vadd.f32 %v4363, %v4491
      %v4620 = vadd.f32 %v4364, %v4492
      %v4621 = vadd.f32 %v4365, %v4493
      %v4622 = vadd.f32 %v4366, %v4494
      %v4623 = vadd.f32 %v4367, %v4495
      %v4624 = vadd.f32 %v4368, %v4496
      %v4625 = vadd.f32 %v4369, %v4497
      %v4626 = vadd.f32 %v4370, %v4498
      %v4627 = vadd.f32 %v4371, %v4499
      %v4628 = vadd.f32 %v4372, %v4500
      %v4629 = vadd.f32 %v4373, %v4501
      %v4630 = vadd.f32 %v4374, %v4502
      %v4631 = vadd.f32 %v4375, %v4503
      %v4632 = vadd.f32 %v4376, %v4504
      %v4633 = vadd.f32 %v4377, %v4505
      %v4634 = vadd.f32 %v4378, %v4506
      %v4635 = vadd.f32 %v4379, %v4507
      %v4636 = vadd.f32 %v4380, %v4508
      %v4637 = vadd.f32 %v4381, %v4509
      %v4638 = vadd.f32 %v4382, %v4510
      %v4639 = vadd.f32 %v4383, %v4511
      %v4640 = vadd.f32 %v4384, %v4512
      %v4641 = vadd.f32 %v4385, %v4513
      %v4642 = vadd.f32 %v4386, %v4514
      %v4643 = vadd.f32 %v4387, %v4515
      %v4644 = vadd.f32 %v4388, %v4516
      %v4645 = vadd.f32 %v4389, %v4517
      %v4646 = vadd.f32 %v4390, %v4518
      %v4647 = vadd.f32 %v4391, %v4519
      %v4648 = vadd.f32 %v4392, %v4520
      %v4649 = vadd.f32 %v4393, %v4521
      %v4650 = vadd.f32 %v4394, %v4522
      %v4651 = vadd.f32 %v4395, %v4523
      %v4652 = vadd.f32 %v4396, %v4524
      %v4653 = vadd.f32 %v4397, %v4525
      %v4654 = vadd.f32 %v4398, %v4526
      %v4655 = vadd.f32 %v4399, %v4527
      %v4656 = vadd.f32 %v4400, %v4528
      %v4657 = vadd.f32 %v4401, %v4529
      %v4658 = vadd.f32 %v4402, %v4530
      %v4659 = vadd.f32 %v4403, %v4531
      %v4660 = vadd.f32 %v4404, %v4532
      %v4661 = vadd.f32 %v4405, %v4533
      %v4662 = vadd.f32 %v4406, %v4534
      %v4663 = vadd.f32 %v4407, %v4535
      %v4664 = vadd.f32 %v4408, %v4536
      %v4665 = vadd.f32 %v4409, %v4537
      %v4666 = vpack.c.bf16 %v4542, %v4538
      %v4667 = vpack.c.bf16 %v4543, %v4539
      %v4668 = vpack.c.bf16 %v4544, %v4540
      %v4669 = vpack.c.bf16 %v4545, %v4541
      %v4670 = vpack.c.bf16 %v4550, %v4546
      %v4671 = vpack.c.bf16 %v4551, %v4547
      %v4672 = vpack.c.bf16 %v4552, %v4548
      %v4673 = vpack.c.bf16 %v4553, %v4549
      %v4674 = vpack.c.bf16 %v4558, %v4554
      %v4675 = vpack.c.bf16 %v4559, %v4555
      %v4676 = vpack.c.bf16 %v4560, %v4556
      %v4677 = vpack.c.bf16 %v4561, %v4557
      %v4678 = vpack.c.bf16 %v4566, %v4562
      %v4679 = vpack.c.bf16 %v4567, %v4563
      %v4680 = vpack.c.bf16 %v4568, %v4564
      %v4681 = vpack.c.bf16 %v4569, %v4565
      %v4682 = vpack.c.bf16 %v4574, %v4570
      %v4683 = vpack.c.bf16 %v4575, %v4571
      %v4684 = vpack.c.bf16 %v4576, %v4572
      %v4685 = vpack.c.bf16 %v4577, %v4573
      %v4686 = vpack.c.bf16 %v4582, %v4578
      %v4687 = vpack.c.bf16 %v4583, %v4579
      %v4688 = vpack.c.bf16 %v4584, %v4580
      %v4689 = vpack.c.bf16 %v4585, %v4581
      %v4690 = vpack.c.bf16 %v4590, %v4586
      %v4691 = vpack.c.bf16 %v4591, %v4587
      %v4692 = vpack.c.bf16 %v4592, %v4588
      %v4693 = vpack.c.bf16 %v4593, %v4589
      %v4694 = vpack.c.bf16 %v4598, %v4594
      %v4695 = vpack.c.bf16 %v4599, %v4595
      %v4696 = vpack.c.bf16 %v4600, %v4596
      %v4697 = vpack.c.bf16 %v4601, %v4597
      %v4698 = vpack.c.bf16 %v4606, %v4602
      %v4699 = vpack.c.bf16 %v4607, %v4603
      %v4700 = vpack.c.bf16 %v4608, %v4604
      %v4701 = vpack.c.bf16 %v4609, %v4605
      %v4702 = vpack.c.bf16 %v4614, %v4610
      %v4703 = vpack.c.bf16 %v4615, %v4611
      %v4704 = vpack.c.bf16 %v4616, %v4612
      %v4705 = vpack.c.bf16 %v4617, %v4613
      %v4706 = vpack.c.bf16 %v4622, %v4618
      %v4707 = vpack.c.bf16 %v4623, %v4619
      %v4708 = vpack.c.bf16 %v4624, %v4620
      %v4709 = vpack.c.bf16 %v4625, %v4621
      %v4710 = vpack.c.bf16 %v4630, %v4626
      %v4711 = vpack.c.bf16 %v4631, %v4627
      %v4712 = vpack.c.bf16 %v4632, %v4628
      %v4713 = vpack.c.bf16 %v4633, %v4629
      %v4714 = vpack.c.bf16 %v4638, %v4634
      %v4715 = vpack.c.bf16 %v4639, %v4635
      %v4716 = vpack.c.bf16 %v4640, %v4636
      %v4717 = vpack.c.bf16 %v4641, %v4637
      %v4718 = vpack.c.bf16 %v4646, %v4642
      %v4719 = vpack.c.bf16 %v4647, %v4643
      %v4720 = vpack.c.bf16 %v4648, %v4644
      %v4721 = vpack.c.bf16 %v4649, %v4645
      %v4722 = vpack.c.bf16 %v4654, %v4650
      %v4723 = vpack.c.bf16 %v4655, %v4651
      %v4724 = vpack.c.bf16 %v4656, %v4652
      %v4725 = vpack.c.bf16 %v4657, %v4653
      %v4726 = vpack.c.bf16 %v4662, %v4658
      %v4727 = vpack.c.bf16 %v4663, %v4659
      %v4728 = vpack.c.bf16 %v4664, %v4660
      %v4729 = vpack.c.bf16 %v4665, %v4661
      %v4794 = vunpack.c.l.b16 %v4666
      %v4795 = vunpack.c.l.b16 %v4667
      %v4796 = vunpack.c.l.b16 %v4668
      %v4797 = vunpack.c.l.b16 %v4669
      %v4798 = vunpack.c.h.b16 %v4666
      %v4799 = vunpack.c.h.b16 %v4667
      %v4800 = vunpack.c.h.b16 %v4668
      %v4801 = vunpack.c.h.b16 %v4669
      %v4802 = vunpack.c.l.b16 %v4670
      %v4803 = vunpack.c.l.b16 %v4671
      %v4804 = vunpack.c.l.b16 %v4672
      %v4805 = vunpack.c.l.b16 %v4673
      %v4806 = vunpack.c.h.b16 %v4670
      %v4807 = vunpack.c.h.b16 %v4671
      %v4808 = vunpack.c.h.b16 %v4672
      %v4809 = vunpack.c.h.b16 %v4673
      %v4810 = vunpack.c.l.b16 %v4674
      %v4811 = vunpack.c.l.b16 %v4675
      %v4812 = vunpack.c.l.b16 %v4676
      %v4813 = vunpack.c.l.b16 %v4677
      %v4814 = vunpack.c.h.b16 %v4674
      %v4815 = vunpack.c.h.b16 %v4675
      %v4816 = vunpack.c.h.b16 %v4676
      %v4817 = vunpack.c.h.b16 %v4677
      %v4818 = vunpack.c.l.b16 %v4678
      %v4819 = vunpack.c.l.b16 %v4679
      %v4820 = vunpack.c.l.b16 %v4680
      %v4821 = vunpack.c.l.b16 %v4681
      %v4822 = vunpack.c.h.b16 %v4678
      %v4823 = vunpack.c.h.b16 %v4679
      %v4824 = vunpack.c.h.b16 %v4680
      %v4825 = vunpack.c.h.b16 %v4681
      %v4826 = vunpack.c.l.b16 %v4682
      %v4827 = vunpack.c.l.b16 %v4683
      %v4828 = vunpack.c.l.b16 %v4684
      %v4829 = vunpack.c.l.b16 %v4685
      %v4830 = vunpack.c.h.b16 %v4682
      %v4831 = vunpack.c.h.b16 %v4683
      %v4832 = vunpack.c.h.b16 %v4684
      %v4833 = vunpack.c.h.b16 %v4685
      %v4834 = vunpack.c.l.b16 %v4686
      %v4835 = vunpack.c.l.b16 %v4687
      %v4836 = vunpack.c.l.b16 %v4688
      %v4837 = vunpack.c.l.b16 %v4689
      %v4838 = vunpack.c.h.b16 %v4686
      %v4839 = vunpack.c.h.b16 %v4687
      %v4840 = vunpack.c.h.b16 %v4688
      %v4841 = vunpack.c.h.b16 %v4689
      %v4842 = vunpack.c.l.b16 %v4690
      %v4843 = vunpack.c.l.b16 %v4691
      %v4844 = vunpack.c.l.b16 %v4692
      %v4845 = vunpack.c.l.b16 %v4693
      %v4846 = vunpack.c.h.b16 %v4690
      %v4847 = vunpack.c.h.b16 %v4691
      %v4848 = vunpack.c.h.b16 %v4692
      %v4849 = vunpack.c.h.b16 %v4693
      %v4850 = vunpack.c.l.b16 %v4694
      %v4851 = vunpack.c.l.b16 %v4695
      %v4852 = vunpack.c.l.b16 %v4696
      %v4853 = vunpack.c.l.b16 %v4697
      %v4854 = vunpack.c.h.b16 %v4694
      %v4855 = vunpack.c.h.b16 %v4695
      %v4856 = vunpack.c.h.b16 %v4696
      %v4857 = vunpack.c.h.b16 %v4697
      %v4858 = vunpack.c.l.b16 %v4698
      %v4859 = vunpack.c.l.b16 %v4699
      %v4860 = vunpack.c.l.b16 %v4700
      %v4861 = vunpack.c.l.b16 %v4701
      %v4862 = vunpack.c.h.b16 %v4698
      %v4863 = vunpack.c.h.b16 %v4699
      %v4864 = vunpack.c.h.b16 %v4700
      %v4865 = vunpack.c.h.b16 %v4701
      %v4866 = vunpack.c.l.b16 %v4702
      %v4867 = vunpack.c.l.b16 %v4703
      %v4868 = vunpack.c.l.b16 %v4704
      %v4869 = vunpack.c.l.b16 %v4705
      %v4870 = vunpack.c.h.b16 %v4702
      %v4871 = vunpack.c.h.b16 %v4703
      %v4872 = vunpack.c.h.b16 %v4704
      %v4873 = vunpack.c.h.b16 %v4705
      %v4874 = vunpack.c.l.b16 %v4706
      %v4875 = vunpack.c.l.b16 %v4707
      %v4876 = vunpack.c.l.b16 %v4708
      %v4877 = vunpack.c.l.b16 %v4709
      %v4878 = vunpack.c.h.b16 %v4706
      %v4879 = vunpack.c.h.b16 %v4707
      %v4880 = vunpack.c.h.b16 %v4708
      %v4881 = vunpack.c.h.b16 %v4709
      %v4882 = vunpack.c.l.b16 %v4710
      %v4883 = vunpack.c.l.b16 %v4711
      %v4884 = vunpack.c.l.b16 %v4712
      %v4885 = vunpack.c.l.b16 %v4713
      %v4886 = vunpack.c.h.b16 %v4710
      %v4887 = vunpack.c.h.b16 %v4711
      %v4888 = vunpack.c.h.b16 %v4712
      %v4889 = vunpack.c.h.b16 %v4713
      %v4890 = vunpack.c.l.b16 %v4714
      %v4891 = vunpack.c.l.b16 %v4715
      %v4892 = vunpack.c.l.b16 %v4716
      %v4893 = vunpack.c.l.b16 %v4717
      %v4894 = vunpack.c.h.b16 %v4714
      %v4895 = vunpack.c.h.b16 %v4715
      %v4896 = vunpack.c.h.b16 %v4716
      %v4897 = vunpack.c.h.b16 %v4717
      %v4898 = vunpack.c.l.b16 %v4718
      %v4899 = vunpack.c.l.b16 %v4719
      %v4900 = vunpack.c.l.b16 %v4720
      %v4901 = vunpack.c.l.b16 %v4721
      %v4902 = vunpack.c.h.b16 %v4718
      %v4903 = vunpack.c.h.b16 %v4719
      %v4904 = vunpack.c.h.b16 %v4720
      %v4905 = vunpack.c.h.b16 %v4721
      %v4906 = vunpack.c.l.b16 %v4722
      %v4907 = vunpack.c.l.b16 %v4723
      %v4908 = vunpack.c.l.b16 %v4724
      %v4909 = vunpack.c.l.b16 %v4725
      %v4910 = vunpack.c.h.b16 %v4722
      %v4911 = vunpack.c.h.b16 %v4723
      %v4912 = vunpack.c.h.b16 %v4724
      %v4913 = vunpack.c.h.b16 %v4725
      %v4914 = vunpack.c.l.b16 %v4726
      %v4915 = vunpack.c.l.b16 %v4727
      %v4916 = vunpack.c.l.b16 %v4728
      %v4917 = vunpack.c.l.b16 %v4729
      %v4918 = vunpack.c.h.b16 %v4726
      %v4919 = vunpack.c.h.b16 %v4727
      %v4920 = vunpack.c.h.b16 %v4728
      %v4921 = vunpack.c.h.b16 %v4729
      %v4922 = vpack.c.b16 %v4795, %v4794
      %v4923 = vpack.c.b16 %v4797, %v4796
      %v4924 = vpack.c.b16 %v4799, %v4798
      %v4925 = vpack.c.b16 %v4801, %v4800
      %v4926 = vpack.c.b16 %v4803, %v4802
      %v4927 = vpack.c.b16 %v4805, %v4804
      %v4928 = vpack.c.b16 %v4807, %v4806
      %v4929 = vpack.c.b16 %v4809, %v4808
      %v4930 = vpack.c.b16 %v4811, %v4810
      %v4931 = vpack.c.b16 %v4813, %v4812
      %v4932 = vpack.c.b16 %v4815, %v4814
      %v4933 = vpack.c.b16 %v4817, %v4816
      %v4934 = vpack.c.b16 %v4819, %v4818
      %v4935 = vpack.c.b16 %v4821, %v4820
      %v4936 = vpack.c.b16 %v4823, %v4822
      %v4937 = vpack.c.b16 %v4825, %v4824
      %v4938 = vpack.c.b16 %v4827, %v4826
      %v4939 = vpack.c.b16 %v4829, %v4828
      %v4940 = vpack.c.b16 %v4831, %v4830
      %v4941 = vpack.c.b16 %v4833, %v4832
      %v4942 = vpack.c.b16 %v4835, %v4834
      %v4943 = vpack.c.b16 %v4837, %v4836
      %v4944 = vpack.c.b16 %v4839, %v4838
      %v4945 = vpack.c.b16 %v4841, %v4840
      %v4946 = vpack.c.b16 %v4843, %v4842
      %v4947 = vpack.c.b16 %v4845, %v4844
      %v4948 = vpack.c.b16 %v4847, %v4846
      %v4949 = vpack.c.b16 %v4849, %v4848
      %v4950 = vpack.c.b16 %v4851, %v4850
      %v4951 = vpack.c.b16 %v4853, %v4852
      %v4952 = vpack.c.b16 %v4855, %v4854
      %v4953 = vpack.c.b16 %v4857, %v4856
      %v4954 = vpack.c.b16 %v4859, %v4858
      %v4955 = vpack.c.b16 %v4861, %v4860
      %v4956 = vpack.c.b16 %v4863, %v4862
      %v4957 = vpack.c.b16 %v4865, %v4864
      %v4958 = vpack.c.b16 %v4867, %v4866
      %v4959 = vpack.c.b16 %v4869, %v4868
      %v4960 = vpack.c.b16 %v4871, %v4870
      %v4961 = vpack.c.b16 %v4873, %v4872
      %v4962 = vpack.c.b16 %v4875, %v4874
      %v4963 = vpack.c.b16 %v4877, %v4876
      %v4964 = vpack.c.b16 %v4879, %v4878
      %v4965 = vpack.c.b16 %v4881, %v4880
      %v4966 = vpack.c.b16 %v4883, %v4882
      %v4967 = vpack.c.b16 %v4885, %v4884
      %v4968 = vpack.c.b16 %v4887, %v4886
      %v4969 = vpack.c.b16 %v4889, %v4888
      %v4970 = vpack.c.b16 %v4891, %v4890
      %v4971 = vpack.c.b16 %v4893, %v4892
      %v4972 = vpack.c.b16 %v4895, %v4894
      %v4973 = vpack.c.b16 %v4897, %v4896
      %v4974 = vpack.c.b16 %v4899, %v4898
      %v4975 = vpack.c.b16 %v4901, %v4900
      %v4976 = vpack.c.b16 %v4903, %v4902
      %v4977 = vpack.c.b16 %v4905, %v4904
      %v4978 = vpack.c.b16 %v4907, %v4906
      %v4979 = vpack.c.b16 %v4909, %v4908
      %v4980 = vpack.c.b16 %v4911, %v4910
      %v4981 = vpack.c.b16 %v4913, %v4912
      %v4982 = vpack.c.b16 %v4915, %v4914
      %v4983 = vpack.c.b16 %v4917, %v4916
      %v4984 = vpack.c.b16 %v4919, %v4918
      %v4985 = vpack.c.b16 %v4921, %v4920
      %5050 = vst [vmem:[%s278] sm:$0xff] %v4922
      %5051 = vst [vmem:[%s278 + $0x8] sm:$0xff] %v4923
      %5052 = vst [vmem:[%s278 + $0x10] sm:$0xff] %v4924
      %5053 = vst [vmem:[%s278 + $0x18] sm:$0xff] %v4925
      %5054 = vst [vmem:[%s278 + $0x20] sm:$0xff] %v4926
      %5055 = vst [vmem:[%s278 + $0x28] sm:$0xff] %v4927
      %5056 = vst [vmem:[%s278 + $0x30] sm:$0xff] %v4928
      %5057 = vst [vmem:[%s278 + $0x38] sm:$0xff] %v4929
      %5058 = vst [vmem:[%s278 + $0x40] sm:$0xff] %v4930
      %5059 = vst [vmem:[%s278 + $0x48] sm:$0xff] %v4931
      %5060 = vst [vmem:[%s278 + $0x50] sm:$0xff] %v4932
      %5061 = vst [vmem:[%s278 + $0x58] sm:$0xff] %v4933
      %5062 = vst [vmem:[%s278 + $0x60] sm:$0xff] %v4934
      %5063 = vst [vmem:[%s278 + $0x68] sm:$0xff] %v4935
      %5064 = vst [vmem:[%s278 + $0x70] sm:$0xff] %v4936
      %5065 = vst [vmem:[%s278 + $0x78] sm:$0xff] %v4937
      %5066 = vst [vmem:[%s278 + $0x80] sm:$0xff] %v4938
      %5067 = vst [vmem:[%s278 + $0x88] sm:$0xff] %v4939
      %5068 = vst [vmem:[%s278 + $0x90] sm:$0xff] %v4940
      %5069 = vst [vmem:[%s278 + $0x98] sm:$0xff] %v4941
      %5070 = vst [vmem:[%s278 + $0xa0] sm:$0xff] %v4942
      %5071 = vst [vmem:[%s278 + $0xa8] sm:$0xff] %v4943
      %5072 = vst [vmem:[%s278 + $0xb0] sm:$0xff] %v4944
      %5073 = vst [vmem:[%s278 + $0xb8] sm:$0xff] %v4945
      %5074 = vst [vmem:[%s278 + $0xc0] sm:$0xff] %v4946
      %5075 = vst [vmem:[%s278 + $0xc8] sm:$0xff] %v4947
      %5076 = vst [vmem:[%s278 + $0xd0] sm:$0xff] %v4948
      %5077 = vst [vmem:[%s278 + $0xd8] sm:$0xff] %v4949
      %5078 = vst [vmem:[%s278 + $0xe0] sm:$0xff] %v4950
      %5079 = vst [vmem:[%s278 + $0xe8] sm:$0xff] %v4951
      %5080 = vst [vmem:[%s278 + $0xf0] sm:$0xff] %v4952
      %5081 = vst [vmem:[%s278 + $0xf8] sm:$0xff] %v4953
      %5082 = vst [vmem:[%s278 + $0x100] sm:$0xff] %v4954
      %5083 = vst [vmem:[%s278 + $0x108] sm:$0xff] %v4955
      %5084 = vst [vmem:[%s278 + $0x110] sm:$0xff] %v4956
      %5085 = vst [vmem:[%s278 + $0x118] sm:$0xff] %v4957
      %5086 = vst [vmem:[%s278 + $0x120] sm:$0xff] %v4958
      %5087 = vst [vmem:[%s278 + $0x128] sm:$0xff] %v4959
      %5088 = vst [vmem:[%s278 + $0x130] sm:$0xff] %v4960
      %5089 = vst [vmem:[%s278 + $0x138] sm:$0xff] %v4961
      %5090 = vst [vmem:[%s278 + $0x140] sm:$0xff] %v4962
      %5091 = vst [vmem:[%s278 + $0x148] sm:$0xff] %v4963
      %5092 = vst [vmem:[%s278 + $0x150] sm:$0xff] %v4964
      %5093 = vst [vmem:[%s278 + $0x158] sm:$0xff] %v4965
      %5094 = vst [vmem:[%s278 + $0x160] sm:$0xff] %v4966
      %5095 = vst [vmem:[%s278 + $0x168] sm:$0xff] %v4967
      %5096 = vst [vmem:[%s278 + $0x170] sm:$0xff] %v4968
      %5097 = vst [vmem:[%s278 + $0x178] sm:$0xff] %v4969
      %5098 = vst [vmem:[%s278 + $0x180] sm:$0xff] %v4970
      %5099 = vst [vmem:[%s278 + $0x188] sm:$0xff] %v4971
      %5100 = vst [vmem:[%s278 + $0x190] sm:$0xff] %v4972
      %5101 = vst [vmem:[%s278 + $0x198] sm:$0xff] %v4973
      %5102 = vst [vmem:[%s278 + $0x1a0] sm:$0xff] %v4974
      %5103 = vst [vmem:[%s278 + $0x1a8] sm:$0xff] %v4975
      %5104 = vst [vmem:[%s278 + $0x1b0] sm:$0xff] %v4976
      %5105 = vst [vmem:[%s278 + $0x1b8] sm:$0xff] %v4977
      %5106 = vst [vmem:[%s278 + $0x1c0] sm:$0xff] %v4978
      %5107 = vst [vmem:[%s278 + $0x1c8] sm:$0xff] %v4979
      %5108 = vst [vmem:[%s278 + $0x1d0] sm:$0xff] %v4980
      %5109 = vst [vmem:[%s278 + $0x1d8] sm:$0xff] %v4981
      %5110 = vst [vmem:[%s278 + $0x1e0] sm:$0xff] %v4982
      %5111 = vst [vmem:[%s278 + $0x1e8] sm:$0xff] %v4983
      %5112 = vst [vmem:[%s278 + $0x1f0] sm:$0xff] %v4984
      %5113 = vst [vmem:[%s278 + $0x1f8] sm:$0xff] %v4985
      %p5114 = scmp.lt.s32.totalorder %s18, 1
      %s5115 = scalar_select %p5114, %s18, 1
      %s5116 = smul.addr %s5115, 128
      %s5117 = smul.addr %s5116, 4
      %s5118 = scalar_lea.vmem %s7, %s5117
      // Predicated region
      $region49: #{forward.1} parent=47 // pred_check
        %p5119 = pneg %p188
      $region50: #{forward.1} parent=47 // pred_check_branch
        %5121 = sbr.rel (%p5119) target = $region52
      $region51: #{forward.1} parent=47 // pred_region
        _
      $region52: #{forward.1} parent=47 // pred_fallthru
        _
    $region48: #{forward.1} parent=5 // pred_fallthru
      _
    %p5122 = scmp.le.s32.totalorder 2, %s13
    // Predicated region
    $region53: #{forward.1} parent=5 // pred_check
      %p5123 = pneg %p5122
    $region54: #{forward.1} parent=5 // pred_check_branch
      %5125 = sbr.rel (%p5123) target = $region56
    $region55: #{forward.1} parent=5 // pred_region
      %s5126 = ssub.s32 %s13, 2
      // Predicated region
      $region57: #{forward.1} parent=55 // pred_check
        %p5127 = pneg %p194
      $region58: #{forward.1} parent=55 // pred_check_branch
        %5129 = sbr.rel (%p5127) target = $region60
      $region59: #{forward.1} parent=55 // pred_region
        %p5130 = scmp.lt.s32.totalorder %s19, 1
        %s5131 = scalar_select %p5130, %s19, 1
        %s5132 = smul.addr %s5131, 128
        %s5133 = smul.addr %s5132, 4
        %s5134 = scalar_lea.vmem %s7, %s5133
      $region60: #{forward.1} parent=55 // pred_fallthru
        _
    $region56: #{forward.1} parent=5 // pred_fallthru
      _
  $region6: #{forward.1} parent=0 // loop_footer
    %s17 = sadd.s32 1, %s13
  $region7: #{forward.1} parent=0 // loop_footer_branch
    %12 = sbr.rel target = $region3
  $region8: #{forward.1} parent=0 // loop_exit
    _

</llo_original>
